<compile_context>
chip_gen: v7x
topology: tpu7x:2x2x1
jax: 0.10.0
libtpu: 0.0.40
codegen_flags: <defaults>
</compile_context>

<pallas_src>
import numpy as np
import jax
import jax.numpy as jnp
from jax import lax
from jax.experimental import pallas as pl
from jax.experimental.pallas import tpu as pltpu


def _round_up(x, m):
    return ((x + m - 1) // m) * m


# ----------------------------------------------------------------------------
# Fused kernel: per time-chunk input projection + interleaved fwd/bwd recurrence
# + pooling.  grid = (T_pad // tc,).  h/c carries live in VMEM scratch; the pooled
# (B, 2H) embedding accumulates in a resident output block -> per-timestep hidden
# states never touch HBM.
# ----------------------------------------------------------------------------
def make_bilstm_pool_kernel(pool_type, tc, H, T_orig, mm_dtype):
    G = 4 * H

    def kernel(xf_ref, xb_ref, wih_ref, whh_ref, b_ref, lens_ref, out_ref,
               gxf_scr, gxb_scr, hf_scr, cf_scr, hb_scr, cb_scr):
        tb = pl.program_id(0)
        num_tb = pl.num_programs(0)

        @pl.when(tb == 0)
        def _():
            hf_scr[...] = jnp.zeros_like(hf_scr)
            cf_scr[...] = jnp.zeros_like(cf_scr)
            hb_scr[...] = jnp.zeros_like(hb_scr)
            cb_scr[...] = jnp.zeros_like(cb_scr)
            if pool_type == "max":
                # Invariant: every sequence has length >= 1, so each row gets at
                # least one real (possibly zero) contribution washing out -inf.
                out_ref[...] = jnp.full(out_ref.shape, -jnp.inf, out_ref.dtype)
            else:
                out_ref[...] = jnp.zeros_like(out_ref)

        B = xf_ref.shape[1]
        Dp = xf_ref.shape[2]

        # ---- fused input projection for this chunk: one MXU matmul per dir ----
        xf = xf_ref[...].reshape(tc * B, Dp)          # chunk walked forward
        xb = xb_ref[...].reshape(tc * B, Dp)          # mirrored chunk for bwd dir
        gxf_scr[...] = (jnp.dot(xf, wih_ref[0], preferred_element_type=jnp.float32)
                        .reshape(tc, B, G) + b_ref[0])
        gxb_scr[...] = (jnp.dot(xb, wih_ref[1], preferred_element_type=jnp.float32)
                        .reshape(tc, B, G) + b_ref[1])

        whh_f = whh_ref[0]                            # (H, 4H), resident, mm_dtype
        whh_b = whh_ref[1]
        lens = lens_ref[...]                          # (B, 1) int32

        def lstm_step(gx, h_prev, c_prev, whh, m):
            gates = gx + jnp.dot(h_prev.astype(mm_dtype), whh,
                                 preferred_element_type=jnp.float32)
            i = jax.nn.sigmoid(gates[:, 0:H])
            f = jax.nn.sigmoid(gates[:, H:2 * H])
            g = jnp.tanh(gates[:, 2 * H:3 * H])
            o = jax.nn.sigmoid(gates[:, 3 * H:4 * H])
            c_new = f * c_prev + i * g
            h_new = o * jnp.tanh(c_new)
            # packed-LSTM carry: padded steps do not advance the state
            h = h_prev + m * (h_new - h_prev)
            c = c_prev + m * (c_new - c_prev)
            return h, c, h_new

        def step(j, carry):
            hf, cf, hb, cb, pf, pb = carry
            t_f = tb * tc + j                                   # fwd physical time
            t_b = (num_tb - 1 - tb) * tc + (tc - 1 - j)         # bwd physical time
            vf = t_f < lens                                     # (B, 1) bool
            vb = t_b < lens
            mf = vf.astype(jnp.float32)                         # (B, 1) f32 mask
            mb = vb.astype(jnp.float32)

            # two independent dependence chains -> interleaved for ILP
            hf, cf, hnf = lstm_step(gxf_scr[j], hf, cf, whh_f, mf)
            hb, cb, hnb = lstm_step(gxb_scr[tc - 1 - j], hb, cb, whh_b, mb)

            if pool_type == "max":
                # pad_packed_sequence zero-fills padded outputs for t < T_orig
                # (those zeros join the max: version==1 / max_pad=True); steps that
                # only exist because T was rounded up to a multiple of tc must not
                # participate -> fill with -inf there.
                fill_f = jnp.where(t_f < T_orig, 0.0, -jnp.inf)
                fill_b = jnp.where(t_b < T_orig, 0.0, -jnp.inf)
                pf = jnp.maximum(pf, jnp.where(vf, hnf, fill_f))
                pb = jnp.maximum(pb, jnp.where(vb, hnb, fill_b))
            else:
                pf = pf + mf * hnf
                pb = pb + mb * hnb
            return hf, cf, hb, cb, pf, pb

        init = (hf_scr[...], cf_scr[...], hb_scr[...], cb_scr[...],
                out_ref[:, 0:H], out_ref[:, H:2 * H])
        hf, cf, hb, cb, pf, pb = lax.fori_loop(0, tc, step, init, unroll=True)

        hf_scr[...] = hf
        cf_scr[...] = cf
        hb_scr[...] = hb
        cb_scr[...] = cb
        out_ref[:, 0:H] = pf
        out_ref[:, H:2 * H] = pb

    return kernel


def run_bilstm_pool(x_pad, wih_s, whh_s, b_s, lens2d, pool_type, *,
                    tc, T_orig, mm_dtype):
    T_pad, B, Dp = x_pad.shape
    G = wih_s.shape[-1]
    H = G // 4
    num_tb = T_pad // tc

    kernel = make_bilstm_pool_kernel(pool_type, tc, H, T_orig, mm_dtype)
    return pl.pallas_call(
        kernel,
        out_shape=jax.ShapeDtypeStruct((B, 2 * H), jnp.float32),
        grid_spec=pltpu.PrefetchScalarGridSpec(
            num_scalar_prefetch=0,
            grid=(num_tb,),
            in_specs=[
                # forward direction walks time chunks in ascending order...
                pl.BlockSpec((tc, B, Dp), lambda t: (t, 0, 0)),
                # ...backward direction gets the mirrored chunk of the same array
                pl.BlockSpec((tc, B, Dp), lambda t: (num_tb - 1 - t, 0, 0)),
                pl.BlockSpec((2, Dp, G), lambda t: (0, 0, 0)),   # W_ih^T, resident
                pl.BlockSpec((2, H, G), lambda t: (0, 0, 0)),    # W_hh^T, resident
                pl.BlockSpec((2, 1, G), lambda t: (0, 0, 0)),    # b_ih + b_hh
                pl.BlockSpec((B, 1), lambda t: (0, 0)),          # lengths
            ],
            # pooled output: single lane-dense (B, 2H) block resident over time
            out_specs=pl.BlockSpec((B, 2 * H), lambda t: (0, 0)),
            scratch_shapes=[
                pltpu.VMEM((tc, B, G), jnp.float32),   # gx fwd chunk
                pltpu.VMEM((tc, B, G), jnp.float32),   # gx bwd chunk
                pltpu.VMEM((B, H), jnp.float32),       # h fwd carry
                pltpu.VMEM((B, H), jnp.float32),       # c fwd carry
                pltpu.VMEM((B, H), jnp.float32),       # h bwd carry
                pltpu.VMEM((B, H), jnp.float32),       # c bwd carry
            ],
        ),
        compiler_params=pltpu.CompilerParams(
            dimension_semantics=("arbitrary",),
            vmem_limit_bytes=48 * 1024 * 1024),
    )(x_pad, x_pad, wih_s, whh_s, b_s, lens2d)


# ----------------------------------------------------------------------------
# Glue (plain JAX): parameters, weight packing, forward pass
# ----------------------------------------------------------------------------
def init_params(key, D, H):
    """Deterministic nn.LSTM-style init: uniform(-1/sqrt(H), 1/sqrt(H))."""
    k = 1.0 / np.sqrt(H)
    keys = jax.random.split(key, 8)

    def u(kk, shape):
        return jax.random.uniform(kk, shape, jnp.float32, -k, k)

    params = {}
    for d, name in enumerate(("fwd", "bwd")):
        w_ih = u(keys[4 * d + 0], (4 * H, D))
        w_hh = u(keys[4 * d + 1], (4 * H, H))
        b_ih = u(keys[4 * d + 2], (4 * H,))
        b_hh = u(keys[4 * d + 3], (4 * H,))
        params[name] = (w_ih, w_hh, b_ih, b_hh)
    return params


def infersent_forward(sent, sent_len, params, pool_type, *,
                      mm_dtype=jnp.bfloat16, tc=8):
    T, B, D = sent.shape
    H = params["fwd"][1].shape[1]
    lengths = jnp.asarray(sent_len, jnp.int32)

    def prep(p):
        w_ih, w_hh, b_ih, b_hh = p
        return w_ih.T, w_hh.T, (b_ih + b_hh).reshape(1, -1)

    wihT_f, whhT_f, b_f = prep(params["fwd"])
    wihT_b, whhT_b, b_b = prep(params["bwd"])

    # pad embedding (K) dim to a lane multiple; pad T to a multiple of tc
    Dp = _round_up(D, 128)
    T_pad = _round_up(max(T, 1), tc)

    x = jnp.zeros((T_pad, B, Dp), jnp.float32).at[:T, :, :D].set(sent)
    wih_s = jnp.zeros((2, Dp, 4 * H), jnp.float32)
    wih_s = wih_s.at[0, :D].set(wihT_f).at[1, :D].set(wihT_b)
    whh_s = jnp.stack([whhT_f, whhT_b], axis=0)        # (2, H, 4H)
    b_s = jnp.stack([b_f, b_b], axis=0)                # (2, 1, 4H) -- stays f32

    # bf16 (or f32) matmul operands; accumulation / state / output stay f32
    x = x.astype(mm_dtype)
    wih_s = wih_s.astype(mm_dtype)
    whh_s = whh_s.astype(mm_dtype)

    lens2d = lengths.reshape(B, 1)

    pooled = run_bilstm_pool(x, wih_s, whh_s, b_s, lens2d, pool_type,
                             tc=tc, T_orig=T, mm_dtype=mm_dtype)   # (B, 2H)

    if pool_type == "mean":
        denom = jnp.maximum(lengths, 1).astype(jnp.float32)[:, None]
        pooled = pooled / denom
    return pooled


# ----------------------------------------------------------------------------
# Pure-JAX reference (for correctness check)
# ----------------------------------------------------------------------------
def _lstm_ref_dir(x, lengths, p, reverse):
    w_ih, w_hh, b_ih, b_hh = p
    T, B, _ = x.shape
    H = w_hh.shape[1]

    def step(carry, inp):
        h, c = carry
        xt, t = inp
        gates = xt @ w_ih.T + h @ w_hh.T + b_ih + b_hh
        i = jax.nn.sigmoid(gates[:, 0:H])
        f = jax.nn.sigmoid(gates[:, H:2 * H])
        g = jnp.tanh(gates[:, 2 * H:3 * H])
        o = jax.nn.sigmoid(gates[:, 3 * H:4 * H])
        c_new = f * c + i * g
        h_new = o * jnp.tanh(c_new)
        valid = (t < lengths)[:, None]
        h = jnp.where(valid, h_new, h)
        c = jnp.where(valid, c_new, c)
        out = jnp.where(valid, h_new, 0.0)
        return (h, c), out

    ts = jnp.arange(T)
    xs = x
    if reverse:
        xs, ts = x[::-1], ts[::-1]
    init = (jnp.zeros((B, H), jnp.float32), jnp.zeros((B, H), jnp.float32))
    _, outs = lax.scan(step, init, (xs, ts))
    return outs[::-1] if reverse else outs


def infersent_ref(sent, sent_len, params, pool_type):
    lengths = jnp.asarray(sent_len, jnp.int32)
    fwd = _lstm_ref_dir(sent, lengths, params["fwd"], reverse=False)
    bwd = _lstm_ref_dir(sent, lengths, params["bwd"], reverse=True)
    out = jnp.concatenate([fwd, bwd], axis=-1)
    if pool_type == "mean":
        return jnp.sum(out, axis=0) / lengths.astype(jnp.float32)[:, None]
    return jnp.max(out, axis=0)


# ----------------------------------------------------------------------------
if __name__ == "__main__":
    # Small but representative: T not a multiple of tc (exercises T padding),
    # D not a lane multiple (exercises D padding), B multiple of 8, H multiple of 128.
    T, B, D, H = 13, 8, 72, 128
    key = jax.random.PRNGKey(0)
    kx, kp = jax.random.split(key)

    sent = jax.random.normal(kx, (T, B, D), jnp.float32)
    sent_len = np.array([13, 9, 4, 11, 13, 1, 7, 6], dtype=np.int64)  # max == T

    # get_batch() zero-initializes padded positions -> zero them here too
    lengths = jnp.asarray(sent_len, jnp.int32)
    pad_mask = (jnp.arange(T)[:, None] < lengths[None, :]).astype(jnp.float32)[:, :, None]
    sent = sent * pad_mask

    params = init_params(kp, D, H)

    for pool_type in ("max", "mean"):
        ref = infersent_ref(sent, sent_len, params, pool_type)

        # f32 validation path (tight tolerance vs the f32 reference)
        emb32 = infersent_forward(sent, sent_len, params, pool_type,
                                  mm_dtype=jnp.float32)
        emb32 = jax.block_until_ready(emb32)
        np.testing.assert_allclose(np.asarray(emb32), np.asarray(ref),
                                   rtol=2e-4, atol=2e-4)

        # production bf16-MXU path (f32 accumulation; looser tolerance)
        emb16 = infersent_forward(sent, sent_len, params, pool_type,
                                  mm_dtype=jnp.bfloat16)
        emb16 = jax.block_until_ready(emb16)
        np.testing.assert_allclose(np.asarray(emb16), np.asarray(ref),
                                   rtol=5e-2, atol=5e-2)

    print("KERNEL_OK")
</pallas_src>

<mosaic_0001>
module attributes {stable_mosaic.version = 11 : i64} {
  func.func @kernel(%arg0: i32, %arg1: memref<8x8x128xf32, #tpu.memory_space<vmem>>, %arg2: memref<8x8x128xf32, #tpu.memory_space<vmem>>, %arg3: memref<2x128x512xf32, #tpu.memory_space<vmem>>, %arg4: memref<2x128x512xf32, #tpu.memory_space<vmem>>, %arg5: memref<2x1x512xf32, #tpu.memory_space<vmem>>, %arg6: memref<8x1xi32, #tpu.memory_space<vmem>>, %arg7: memref<8x256xf32, #tpu.memory_space<vmem>>, %arg8: memref<8x8x512xf32, #tpu.memory_space<vmem>>, %arg9: memref<8x8x512xf32, #tpu.memory_space<vmem>>, %arg10: memref<8x128xf32, #tpu.memory_space<vmem>>, %arg11: memref<8x128xf32, #tpu.memory_space<vmem>>, %arg12: memref<8x128xf32, #tpu.memory_space<vmem>>, %arg13: memref<8x128xf32, #tpu.memory_space<vmem>>) attributes {dimension_semantics = [#tpu.dimension_semantics<arbitrary>], iteration_bounds = array<i64: 2>, scalar_prefetch = 0 : i64, scratch_operands = 6 : i64, tpu.core_type = #tpu.core_type<tc>, window_params = [{transform_indices = @transform_0, window_bounds = array<i64: 8, 8, 128>}, {transform_indices = @transform_1, window_bounds = array<i64: 8, 8, 128>}, {pipeline_mode = #tpu.pipeline_mode<synchronous>, transform_indices = @transform_2, window_bounds = array<i64: 2, 128, 512>}, {pipeline_mode = #tpu.pipeline_mode<synchronous>, transform_indices = @transform_3, window_bounds = array<i64: 2, 128, 512>}, {pipeline_mode = #tpu.pipeline_mode<synchronous>, transform_indices = @transform_4, window_bounds = array<i64: 2, 1, 512>}, {pipeline_mode = #tpu.pipeline_mode<synchronous>, transform_indices = @transform_5, window_bounds = array<i64: 8, 1>}, {pipeline_mode = #tpu.pipeline_mode<synchronous>, transform_indices = @transform_6, window_bounds = array<i64: 8, 256>}]} {
    %c0_i32 = arith.constant 0 : i32
    %0 = arith.cmpi eq, %arg0, %c0_i32 : i32
    %1 = arith.extui %0 : i1 to i32
    %c0_i32_0 = arith.constant 0 : i32
    %2 = arith.cmpi ne, %1, %c0_i32_0 : i32
    scf.if %2 {
      %cst_239 = arith.constant 0.000000e+00 : f32
      %884 = vector.broadcast %cst_239 : f32 to vector<8x128xf32>
      %c0_240 = arith.constant 0 : index
      %c0_241 = arith.constant 0 : index
      %885 = vector.load %arg10[%c0_240, %c0_241] : memref<8x128xf32, #tpu.memory_space<vmem>>, vector<8x128xf32>
      tpu.vector_store %arg10[%c0_240, %c0_241], %884 {strides = array<i32>} : memref<8x128xf32, #tpu.memory_space<vmem>>, vector<8x128xf32>,
      %cst_242 = arith.constant 0.000000e+00 : f32
      %886 = vector.broadcast %cst_242 : f32 to vector<8x128xf32>
      %c0_243 = arith.constant 0 : index
      %c0_244 = arith.constant 0 : index
      %887 = vector.load %arg11[%c0_243, %c0_244] : memref<8x128xf32, #tpu.memory_space<vmem>>, vector<8x128xf32>
      tpu.vector_store %arg11[%c0_243, %c0_244], %886 {strides = array<i32>} : memref<8x128xf32, #tpu.memory_space<vmem>>, vector<8x128xf32>,
      %cst_245 = arith.constant 0.000000e+00 : f32
      %888 = vector.broadcast %cst_245 : f32 to vector<8x128xf32>
      %c0_246 = arith.constant 0 : index
      %c0_247 = arith.constant 0 : index
      %889 = vector.load %arg12[%c0_246, %c0_247] : memref<8x128xf32, #tpu.memory_space<vmem>>, vector<8x128xf32>
      tpu.vector_store %arg12[%c0_246, %c0_247], %888 {strides = array<i32>} : memref<8x128xf32, #tpu.memory_space<vmem>>, vector<8x128xf32>,
      %cst_248 = arith.constant 0.000000e+00 : f32
      %890 = vector.broadcast %cst_248 : f32 to vector<8x128xf32>
      %c0_249 = arith.constant 0 : index
      %c0_250 = arith.constant 0 : index
      %891 = vector.load %arg13[%c0_249, %c0_250] : memref<8x128xf32, #tpu.memory_space<vmem>>, vector<8x128xf32>
      tpu.vector_store %arg13[%c0_249, %c0_250], %890 {strides = array<i32>} : memref<8x128xf32, #tpu.memory_space<vmem>>, vector<8x128xf32>,
      %cst_251 = arith.constant 0xFF800000 : f32
      %892 = vector.broadcast %cst_251 : f32 to vector<8x256xf32>
      %c0_252 = arith.constant 0 : index
      %c0_253 = arith.constant 0 : index
      %893 = vector.load %arg7[%c0_252, %c0_253] : memref<8x256xf32, #tpu.memory_space<vmem>>, vector<8x256xf32>
      tpu.vector_store %arg7[%c0_252, %c0_253], %892 {strides = array<i32>} : memref<8x256xf32, #tpu.memory_space<vmem>>, vector<8x256xf32>,
    } else {
    }
    %c0 = arith.constant 0 : index
    %c0_1 = arith.constant 0 : index
    %c0_2 = arith.constant 0 : index
    %3 = vector.load %arg1[%c0, %c0_1, %c0_2] : memref<8x8x128xf32, #tpu.memory_space<vmem>>, vector<8x8x128xf32>
    %4 = vector.shape_cast %3 : vector<8x8x128xf32> to vector<64x128xf32>
    %c0_3 = arith.constant 0 : index
    %c0_4 = arith.constant 0 : index
    %c0_5 = arith.constant 0 : index
    %5 = vector.load %arg2[%c0_3, %c0_4, %c0_5] : memref<8x8x128xf32, #tpu.memory_space<vmem>>, vector<8x8x128xf32>
    %6 = vector.shape_cast %5 : vector<8x8x128xf32> to vector<64x128xf32>
    %c0_6 = arith.constant 0 : index
    %c0_7 = arith.constant 0 : index
    %c0_8 = arith.constant 0 : index
    %7 = vector.load %arg3[%c0_6, %c0_7, %c0_8] : memref<2x128x512xf32, #tpu.memory_space<vmem>>, vector<1x128x512xf32>
    %8 = vector.shape_cast %7 : vector<1x128x512xf32> to vector<128x512xf32>
    %cst = arith.constant dense<0.000000e+00> : vector<64x512xf32>
    %9 = tpu.matmul %4, %8, %cst {dimension_numbers = #tpu.dot_dimension_numbers<[1], [0], [0], [1], [0, 0, 1, 1], [], []>} : vector<64x128xf32>, vector<128x512xf32>, vector<64x512xf32> -> vector<64x512xf32>
    %10 = vector.shape_cast %9 : vector<64x512xf32> to vector<8x8x512xf32>
    %c0_9 = arith.constant 0 : index
    %c0_10 = arith.constant 0 : index
    %c0_11 = arith.constant 0 : index
    %11 = vector.load %arg5[%c0_9, %c0_10, %c0_11] : memref<2x1x512xf32, #tpu.memory_space<vmem>>, vector<1x1x512xf32>
    %12 = vector.shape_cast %11 : vector<1x1x512xf32> to vector<1x512xf32>
    %13 = vector.shape_cast %12 : vector<1x512xf32> to vector<1x1x512xf32>
    %14 = vector.broadcast %13 : vector<1x1x512xf32> to vector<8x8x512xf32>
    %15 = arith.addf %10, %14 : vector<8x8x512xf32>
    %c0_12 = arith.constant 0 : index
    %c0_13 = arith.constant 0 : index
    %c0_14 = arith.constant 0 : index
    %16 = vector.load %arg8[%c0_12, %c0_13, %c0_14] : memref<8x8x512xf32, #tpu.memory_space<vmem>>, vector<8x8x512xf32>
    tpu.vector_store %arg8[%c0_12, %c0_13, %c0_14], %15 {strides = array<i32>} : memref<8x8x512xf32, #tpu.memory_space<vmem>>, vector<8x8x512xf32>,
    %c1 = arith.constant 1 : index
    %c0_15 = arith.constant 0 : index
    %c0_16 = arith.constant 0 : index
    %17 = vector.load %arg3[%c1, %c0_15, %c0_16] : memref<2x128x512xf32, #tpu.memory_space<vmem>>, vector<1x128x512xf32>
    %18 = vector.shape_cast %17 : vector<1x128x512xf32> to vector<128x512xf32>
    %cst_17 = arith.constant dense<0.000000e+00> : vector<64x512xf32>
    %19 = tpu.matmul %6, %18, %cst_17 {dimension_numbers = #tpu.dot_dimension_numbers<[1], [0], [0], [1], [0, 0, 1, 1], [], []>} : vector<64x128xf32>, vector<128x512xf32>, vector<64x512xf32> -> vector<64x512xf32>
    %20 = vector.shape_cast %19 : vector<64x512xf32> to vector<8x8x512xf32>
    %c1_18 = arith.constant 1 : index
    %c0_19 = arith.constant 0 : index
    %c0_20 = arith.constant 0 : index
    %21 = vector.load %arg5[%c1_18, %c0_19, %c0_20] : memref<2x1x512xf32, #tpu.memory_space<vmem>>, vector<1x1x512xf32>
    %22 = vector.shape_cast %21 : vector<1x1x512xf32> to vector<1x512xf32>
    %23 = vector.shape_cast %22 : vector<1x512xf32> to vector<1x1x512xf32>
    %24 = vector.broadcast %23 : vector<1x1x512xf32> to vector<8x8x512xf32>
    %25 = arith.addf %20, %24 : vector<8x8x512xf32>
    %c0_21 = arith.constant 0 : index
    %c0_22 = arith.constant 0 : index
    %c0_23 = arith.constant 0 : index
    %26 = vector.load %arg9[%c0_21, %c0_22, %c0_23] : memref<8x8x512xf32, #tpu.memory_space<vmem>>, vector<8x8x512xf32>
    tpu.vector_store %arg9[%c0_21, %c0_22, %c0_23], %25 {strides = array<i32>} : memref<8x8x512xf32, #tpu.memory_space<vmem>>, vector<8x8x512xf32>,
    %c0_24 = arith.constant 0 : index
    %c0_25 = arith.constant 0 : index
    %c0_26 = arith.constant 0 : index
    %27 = vector.load %arg4[%c0_24, %c0_25, %c0_26] : memref<2x128x512xf32, #tpu.memory_space<vmem>>, vector<1x128x512xf32>
    %28 = vector.shape_cast %27 : vector<1x128x512xf32> to vector<128x512xf32>
    %c1_27 = arith.constant 1 : index
    %c0_28 = arith.constant 0 : index
    %c0_29 = arith.constant 0 : index
    %29 = vector.load %arg4[%c1_27, %c0_28, %c0_29] : memref<2x128x512xf32, #tpu.memory_space<vmem>>, vector<1x128x512xf32>
    %30 = vector.shape_cast %29 : vector<1x128x512xf32> to vector<128x512xf32>
    %c0_30 = arith.constant 0 : index
    %c0_31 = arith.constant 0 : index
    %31 = vector.load %arg6[%c0_30, %c0_31] : memref<8x1xi32, #tpu.memory_space<vmem>>, vector<8x1xi32>
    %c0_32 = arith.constant 0 : index
    %c0_33 = arith.constant 0 : index
    %32 = vector.load %arg10[%c0_32, %c0_33] : memref<8x128xf32, #tpu.memory_space<vmem>>, vector<8x128xf32>
    %c0_34 = arith.constant 0 : index
    %c0_35 = arith.constant 0 : index
    %33 = vector.load %arg11[%c0_34, %c0_35] : memref<8x128xf32, #tpu.memory_space<vmem>>, vector<8x128xf32>
    %c0_36 = arith.constant 0 : index
    %c0_37 = arith.constant 0 : index
    %34 = vector.load %arg12[%c0_36, %c0_37] : memref<8x128xf32, #tpu.memory_space<vmem>>, vector<8x128xf32>
    %c0_38 = arith.constant 0 : index
    %c0_39 = arith.constant 0 : index
    %35 = vector.load %arg13[%c0_38, %c0_39] : memref<8x128xf32, #tpu.memory_space<vmem>>, vector<8x128xf32>
    %c0_40 = arith.constant 0 : index
    %c0_41 = arith.constant 0 : index
    %36 = vector.load %arg7[%c0_40, %c0_41] : memref<8x256xf32, #tpu.memory_space<vmem>>, vector<8x128xf32>
    %c0_42 = arith.constant 0 : index
    %c128 = arith.constant 128 : index
    %37 = vector.load %arg7[%c0_42, %c128] : memref<8x256xf32, #tpu.memory_space<vmem>>, vector<8x128xf32>
    %c0_i32_43 = arith.constant 0 : i32
    %c8_i32 = arith.constant 8 : i32
    %38 = arith.muli %arg0, %c8_i32 : i32
    %39 = arith.addi %38, %c0_i32_43 : i32
    %c1_i32 = arith.constant 1 : i32
    %40 = arith.subi %c1_i32, %arg0 : i32
    %c8_i32_44 = arith.constant 8 : i32
    %41 = arith.muli %40, %c8_i32_44 : i32
    %c7_i32 = arith.constant 7 : i32
    %42 = arith.subi %c7_i32, %c0_i32_43 : i32
    %43 = arith.addi %41, %42 : i32
    %44 = vector.broadcast %39 : i32 to vector<8x1xi32>
    %45 = arith.cmpi slt, %44, %31 : vector<8x1xi32>
    %46 = vector.broadcast %43 : i32 to vector<8x1xi32>
    %47 = arith.cmpi slt, %46, %31 : vector<8x1xi32>
    %48 = arith.extui %45 : vector<8x1xi1> to vector<8x1xi32>
    %49 = arith.sitofp %48 : vector<8x1xi32> to vector<8x1xf32>
    %50 = arith.extui %47 : vector<8x1xi1> to vector<8x1xi32>
    %51 = arith.sitofp %50 : vector<8x1xi32> to vector<8x1xf32>
    %52 = arith.index_cast %c0_i32_43 : i32 to index
    %c0_45 = arith.constant 0 : index
    %c0_46 = arith.constant 0 : index
    %53 = vector.load %arg8[%52, %c0_45, %c0_46] : memref<8x8x512xf32, #tpu.memory_space<vmem>>, vector<1x8x512xf32>
    %54 = vector.shape_cast %53 : vector<1x8x512xf32> to vector<8x512xf32>
    %cst_47 = arith.constant dense<0.000000e+00> : vector<8x512xf32>
    %55 = tpu.matmul %32, %28, %cst_47 {dimension_numbers = #tpu.dot_dimension_numbers<[1], [0], [0], [1], [0, 0, 1, 1], [], []>} : vector<8x128xf32>, vector<128x512xf32>, vector<8x512xf32> -> vector<8x512xf32>
    %56 = arith.addf %54, %55 : vector<8x512xf32>
    %57 = vector.extract_strided_slice %56 {offsets = [0, 0], sizes = [8, 128], strides = [1, 1]} : vector<8x512xf32> to vector<8x128xf32>
    %58 = arith.negf %57 : vector<8x128xf32>
    %59 = math.exp %58 : vector<8x128xf32>
    %cst_48 = arith.constant 1.000000e+00 : f32
    %60 = vector.broadcast %cst_48 : f32 to vector<8x128xf32>
    %61 = arith.addf %60, %59 : vector<8x128xf32>
    %62 = arith.divf %60, %61 : vector<8x128xf32>
    %63 = vector.extract_strided_slice %56 {offsets = [0, 128], sizes = [8, 128], strides = [1, 1]} : vector<8x512xf32> to vector<8x128xf32>
    %64 = arith.negf %63 : vector<8x128xf32>
    %65 = math.exp %64 : vector<8x128xf32>
    %cst_49 = arith.constant 1.000000e+00 : f32
    %66 = vector.broadcast %cst_49 : f32 to vector<8x128xf32>
    %67 = arith.addf %66, %65 : vector<8x128xf32>
    %68 = arith.divf %66, %67 : vector<8x128xf32>
    %69 = vector.extract_strided_slice %56 {offsets = [0, 256], sizes = [8, 128], strides = [1, 1]} : vector<8x512xf32> to vector<8x128xf32>
    %70 = math.tanh %69 : vector<8x128xf32>
    %71 = vector.extract_strided_slice %56 {offsets = [0, 384], sizes = [8, 128], strides = [1, 1]} : vector<8x512xf32> to vector<8x128xf32>
    %72 = arith.negf %71 : vector<8x128xf32>
    %73 = math.exp %72 : vector<8x128xf32>
    %cst_50 = arith.constant 1.000000e+00 : f32
    %74 = vector.broadcast %cst_50 : f32 to vector<8x128xf32>
    %75 = arith.addf %74, %73 : vector<8x128xf32>
    %76 = arith.divf %74, %75 : vector<8x128xf32>
    %77 = arith.mulf %68, %33 : vector<8x128xf32>
    %78 = arith.mulf %62, %70 : vector<8x128xf32>
    %79 = arith.addf %77, %78 : vector<8x128xf32>
    %80 = math.tanh %79 : vector<8x128xf32>
    %81 = arith.mulf %76, %80 : vector<8x128xf32>
    %82 = arith.subf %81, %32 : vector<8x128xf32>
    %83 = vector.broadcast %49 : vector<8x1xf32> to vector<8x128xf32>
    %84 = arith.mulf %83, %82 : vector<8x128xf32>
    %85 = arith.addf %32, %84 : vector<8x128xf32>
    %86 = arith.subf %79, %33 : vector<8x128xf32>
    %87 = vector.broadcast %49 : vector<8x1xf32> to vector<8x128xf32>
    %88 = arith.mulf %87, %86 : vector<8x128xf32>
    %89 = arith.addf %33, %88 : vector<8x128xf32>
    %c7_i32_51 = arith.constant 7 : i32
    %90 = arith.subi %c7_i32_51, %c0_i32_43 : i32
    %91 = arith.index_cast %90 : i32 to index
    %c0_52 = arith.constant 0 : index
    %c0_53 = arith.constant 0 : index
    %92 = vector.load %arg9[%91, %c0_52, %c0_53] : memref<8x8x512xf32, #tpu.memory_space<vmem>>, vector<1x8x512xf32>
    %93 = vector.shape_cast %92 : vector<1x8x512xf32> to vector<8x512xf32>
    %cst_54 = arith.constant dense<0.000000e+00> : vector<8x512xf32>
    %94 = tpu.matmul %34, %30, %cst_54 {dimension_numbers = #tpu.dot_dimension_numbers<[1], [0], [0], [1], [0, 0, 1, 1], [], []>} : vector<8x128xf32>, vector<128x512xf32>, vector<8x512xf32> -> vector<8x512xf32>
    %95 = arith.addf %93, %94 : vector<8x512xf32>
    %96 = vector.extract_strided_slice %95 {offsets = [0, 0], sizes = [8, 128], strides = [1, 1]} : vector<8x512xf32> to vector<8x128xf32>
    %97 = arith.negf %96 : vector<8x128xf32>
    %98 = math.exp %97 : vector<8x128xf32>
    %cst_55 = arith.constant 1.000000e+00 : f32
    %99 = vector.broadcast %cst_55 : f32 to vector<8x128xf32>
    %100 = arith.addf %99, %98 : vector<8x128xf32>
    %101 = arith.divf %99, %100 : vector<8x128xf32>
    %102 = vector.extract_strided_slice %95 {offsets = [0, 128], sizes = [8, 128], strides = [1, 1]} : vector<8x512xf32> to vector<8x128xf32>
    %103 = arith.negf %102 : vector<8x128xf32>
    %104 = math.exp %103 : vector<8x128xf32>
    %cst_56 = arith.constant 1.000000e+00 : f32
    %105 = vector.broadcast %cst_56 : f32 to vector<8x128xf32>
    %106 = arith.addf %105, %104 : vector<8x128xf32>
    %107 = arith.divf %105, %106 : vector<8x128xf32>
    %108 = vector.extract_strided_slice %95 {offsets = [0, 256], sizes = [8, 128], strides = [1, 1]} : vector<8x512xf32> to vector<8x128xf32>
    %109 = math.tanh %108 : vector<8x128xf32>
    %110 = vector.extract_strided_slice %95 {offsets = [0, 384], sizes = [8, 128], strides = [1, 1]} : vector<8x512xf32> to vector<8x128xf32>
    %111 = arith.negf %110 : vector<8x128xf32>
    %112 = math.exp %111 : vector<8x128xf32>
    %cst_57 = arith.constant 1.000000e+00 : f32
    %113 = vector.broadcast %cst_57 : f32 to vector<8x128xf32>
    %114 = arith.addf %113, %112 : vector<8x128xf32>
    %115 = arith.divf %113, %114 : vector<8x128xf32>
    %116 = arith.mulf %107, %35 : vector<8x128xf32>
    %117 = arith.mulf %101, %109 : vector<8x128xf32>
    %118 = arith.addf %116, %117 : vector<8x128xf32>
    %119 = math.tanh %118 : vector<8x128xf32>
    %120 = arith.mulf %115, %119 : vector<8x128xf32>
    %121 = arith.subf %120, %34 : vector<8x128xf32>
    %122 = vector.broadcast %51 : vector<8x1xf32> to vector<8x128xf32>
    %123 = arith.mulf %122, %121 : vector<8x128xf32>
    %124 = arith.addf %34, %123 : vector<8x128xf32>
    %125 = arith.subf %118, %35 : vector<8x128xf32>
    %126 = vector.broadcast %51 : vector<8x1xf32> to vector<8x128xf32>
    %127 = arith.mulf %126, %125 : vector<8x128xf32>
    %128 = arith.addf %35, %127 : vector<8x128xf32>
    %c13_i32 = arith.constant 13 : i32
    %129 = arith.cmpi slt, %39, %c13_i32 : i32
    %cst_58 = arith.constant 0.000000e+00 : f32
    %cst_59 = arith.constant 0xFF800000 : f32
    %130 = arith.select %129, %cst_58, %cst_59 : f32
    %c13_i32_60 = arith.constant 13 : i32
    %131 = arith.cmpi slt, %43, %c13_i32_60 : i32
    %cst_61 = arith.constant 0.000000e+00 : f32
    %cst_62 = arith.constant 0xFF800000 : f32
    %132 = arith.select %131, %cst_61, %cst_62 : f32
    %133 = vector.shape_cast %45 : vector<8x1xi1> to vector<8x1xi1>
    %134 = vector.broadcast %133 : vector<8x1xi1> to vector<8x128xi1>
    %135 = vector.broadcast %130 : f32 to vector<8x128xf32>
    %136 = arith.select %134, %81, %135 : vector<8x128xi1>, vector<8x128xf32>
    %137 = arith.maximumf %36, %136 : vector<8x128xf32>
    %138 = vector.shape_cast %47 : vector<8x1xi1> to vector<8x1xi1>
    %139 = vector.broadcast %138 : vector<8x1xi1> to vector<8x128xi1>
    %140 = vector.broadcast %132 : f32 to vector<8x128xf32>
    %141 = arith.select %139, %120, %140 : vector<8x128xi1>, vector<8x128xf32>
    %142 = arith.maximumf %37, %141 : vector<8x128xf32>
    %c1_i32_63 = arith.constant 1 : i32
    %c8_i32_64 = arith.constant 8 : i32
    %143 = arith.muli %arg0, %c8_i32_64 : i32
    %144 = arith.addi %143, %c1_i32_63 : i32
    %c1_i32_65 = arith.constant 1 : i32
    %145 = arith.subi %c1_i32_65, %arg0 : i32
    %c8_i32_66 = arith.constant 8 : i32
    %146 = arith.muli %145, %c8_i32_66 : i32
    %c7_i32_67 = arith.constant 7 : i32
    %147 = arith.subi %c7_i32_67, %c1_i32_63 : i32
    %148 = arith.addi %146, %147 : i32
    %149 = vector.broadcast %144 : i32 to vector<8x1xi32>
    %150 = arith.cmpi slt, %149, %31 : vector<8x1xi32>
    %151 = vector.broadcast %148 : i32 to vector<8x1xi32>
    %152 = arith.cmpi slt, %151, %31 : vector<8x1xi32>
    %153 = arith.extui %150 : vector<8x1xi1> to vector<8x1xi32>
    %154 = arith.sitofp %153 : vector<8x1xi32> to vector<8x1xf32>
    %155 = arith.extui %152 : vector<8x1xi1> to vector<8x1xi32>
    %156 = arith.sitofp %155 : vector<8x1xi32> to vector<8x1xf32>
    %157 = arith.index_cast %c1_i32_63 : i32 to index
    %c0_68 = arith.constant 0 : index
    %c0_69 = arith.constant 0 : index
    %158 = vector.load %arg8[%157, %c0_68, %c0_69] : memref<8x8x512xf32, #tpu.memory_space<vmem>>, vector<1x8x512xf32>
    %159 = vector.shape_cast %158 : vector<1x8x512xf32> to vector<8x512xf32>
    %cst_70 = arith.constant dense<0.000000e+00> : vector<8x512xf32>
    %160 = tpu.matmul %85, %28, %cst_70 {dimension_numbers = #tpu.dot_dimension_numbers<[1], [0], [0], [1], [0, 0, 1, 1], [], []>} : vector<8x128xf32>, vector<128x512xf32>, vector<8x512xf32> -> vector<8x512xf32>
    %161 = arith.addf %159, %160 : vector<8x512xf32>
    %162 = vector.extract_strided_slice %161 {offsets = [0, 0], sizes = [8, 128], strides = [1, 1]} : vector<8x512xf32> to vector<8x128xf32>
    %163 = arith.negf %162 : vector<8x128xf32>
    %164 = math.exp %163 : vector<8x128xf32>
    %cst_71 = arith.constant 1.000000e+00 : f32
    %165 = vector.broadcast %cst_71 : f32 to vector<8x128xf32>
    %166 = arith.addf %165, %164 : vector<8x128xf32>
    %167 = arith.divf %165, %166 : vector<8x128xf32>
    %168 = vector.extract_strided_slice %161 {offsets = [0, 128], sizes = [8, 128], strides = [1, 1]} : vector<8x512xf32> to vector<8x128xf32>
    %169 = arith.negf %168 : vector<8x128xf32>
    %170 = math.exp %169 : vector<8x128xf32>
    %cst_72 = arith.constant 1.000000e+00 : f32
    %171 = vector.broadcast %cst_72 : f32 to vector<8x128xf32>
    %172 = arith.addf %171, %170 : vector<8x128xf32>
    %173 = arith.divf %171, %172 : vector<8x128xf32>
    %174 = vector.extract_strided_slice %161 {offsets = [0, 256], sizes = [8, 128], strides = [1, 1]} : vector<8x512xf32> to vector<8x128xf32>
    %175 = math.tanh %174 : vector<8x128xf32>
    %176 = vector.extract_strided_slice %161 {offsets = [0, 384], sizes = [8, 128], strides = [1, 1]} : vector<8x512xf32> to vector<8x128xf32>
    %177 = arith.negf %176 : vector<8x128xf32>
    %178 = math.exp %177 : vector<8x128xf32>
    %cst_73 = arith.constant 1.000000e+00 : f32
    %179 = vector.broadcast %cst_73 : f32 to vector<8x128xf32>
    %180 = arith.addf %179, %178 : vector<8x128xf32>
    %181 = arith.divf %179, %180 : vector<8x128xf32>
    %182 = arith.mulf %173, %89 : vector<8x128xf32>
    %183 = arith.mulf %167, %175 : vector<8x128xf32>
    %184 = arith.addf %182, %183 : vector<8x128xf32>
    %185 = math.tanh %184 : vector<8x128xf32>
    %186 = arith.mulf %181, %185 : vector<8x128xf32>
    %187 = arith.subf %186, %85 : vector<8x128xf32>
    %188 = vector.broadcast %154 : vector<8x1xf32> to vector<8x128xf32>
    %189 = arith.mulf %188, %187 : vector<8x128xf32>
    %190 = arith.addf %85, %189 : vector<8x128xf32>
    %191 = arith.subf %184, %89 : vector<8x128xf32>
    %192 = vector.broadcast %154 : vector<8x1xf32> to vector<8x128xf32>
    %193 = arith.mulf %192, %191 : vector<8x128xf32>
    %194 = arith.addf %89, %193 : vector<8x128xf32>
    %c7_i32_74 = arith.constant 7 : i32
    %195 = arith.subi %c7_i32_74, %c1_i32_63 : i32
    %196 = arith.index_cast %195 : i32 to index
    %c0_75 = arith.constant 0 : index
    %c0_76 = arith.constant 0 : index
    %197 = vector.load %arg9[%196, %c0_75, %c0_76] : memref<8x8x512xf32, #tpu.memory_space<vmem>>, vector<1x8x512xf32>
    %198 = vector.shape_cast %197 : vector<1x8x512xf32> to vector<8x512xf32>
    %cst_77 = arith.constant dense<0.000000e+00> : vector<8x512xf32>
    %199 = tpu.matmul %124, %30, %cst_77 {dimension_numbers = #tpu.dot_dimension_numbers<[1], [0], [0], [1], [0, 0, 1, 1], [], []>} : vector<8x128xf32>, vector<128x512xf32>, vector<8x512xf32> -> vector<8x512xf32>
    %200 = arith.addf %198, %199 : vector<8x512xf32>
    %201 = vector.extract_strided_slice %200 {offsets = [0, 0], sizes = [8, 128], strides = [1, 1]} : vector<8x512xf32> to vector<8x128xf32>
    %202 = arith.negf %201 : vector<8x128xf32>
    %203 = math.exp %202 : vector<8x128xf32>
    %cst_78 = arith.constant 1.000000e+00 : f32
    %204 = vector.broadcast %cst_78 : f32 to vector<8x128xf32>
    %205 = arith.addf %204, %203 : vector<8x128xf32>
    %206 = arith.divf %204, %205 : vector<8x128xf32>
    %207 = vector.extract_strided_slice %200 {offsets = [0, 128], sizes = [8, 128], strides = [1, 1]} : vector<8x512xf32> to vector<8x128xf32>
    %208 = arith.negf %207 : vector<8x128xf32>
    %209 = math.exp %208 : vector<8x128xf32>
    %cst_79 = arith.constant 1.000000e+00 : f32
    %210 = vector.broadcast %cst_79 : f32 to vector<8x128xf32>
    %211 = arith.addf %210, %209 : vector<8x128xf32>
    %212 = arith.divf %210, %211 : vector<8x128xf32>
    %213 = vector.extract_strided_slice %200 {offsets = [0, 256], sizes = [8, 128], strides = [1, 1]} : vector<8x512xf32> to vector<8x128xf32>
    %214 = math.tanh %213 : vector<8x128xf32>
    %215 = vector.extract_strided_slice %200 {offsets = [0, 384], sizes = [8, 128], strides = [1, 1]} : vector<8x512xf32> to vector<8x128xf32>
    %216 = arith.negf %215 : vector<8x128xf32>
    %217 = math.exp %216 : vector<8x128xf32>
    %cst_80 = arith.constant 1.000000e+00 : f32
    %218 = vector.broadcast %cst_80 : f32 to vector<8x128xf32>
    %219 = arith.addf %218, %217 : vector<8x128xf32>
    %220 = arith.divf %218, %219 : vector<8x128xf32>
    %221 = arith.mulf %212, %128 : vector<8x128xf32>
    %222 = arith.mulf %206, %214 : vector<8x128xf32>
    %223 = arith.addf %221, %222 : vector<8x128xf32>
    %224 = math.tanh %223 : vector<8x128xf32>
    %225 = arith.mulf %220, %224 : vector<8x128xf32>
    %226 = arith.subf %225, %124 : vector<8x128xf32>
    %227 = vector.broadcast %156 : vector<8x1xf32> to vector<8x128xf32>
    %228 = arith.mulf %227, %226 : vector<8x128xf32>
    %229 = arith.addf %124, %228 : vector<8x128xf32>
    %230 = arith.subf %223, %128 : vector<8x128xf32>
    %231 = vector.broadcast %156 : vector<8x1xf32> to vector<8x128xf32>
    %232 = arith.mulf %231, %230 : vector<8x128xf32>
    %233 = arith.addf %128, %232 : vector<8x128xf32>
    %c13_i32_81 = arith.constant 13 : i32
    %234 = arith.cmpi slt, %144, %c13_i32_81 : i32
    %cst_82 = arith.constant 0.000000e+00 : f32
    %cst_83 = arith.constant 0xFF800000 : f32
    %235 = arith.select %234, %cst_82, %cst_83 : f32
    %c13_i32_84 = arith.constant 13 : i32
    %236 = arith.cmpi slt, %148, %c13_i32_84 : i32
    %cst_85 = arith.constant 0.000000e+00 : f32
    %cst_86 = arith.constant 0xFF800000 : f32
    %237 = arith.select %236, %cst_85, %cst_86 : f32
    %238 = vector.shape_cast %150 : vector<8x1xi1> to vector<8x1xi1>
    %239 = vector.broadcast %238 : vector<8x1xi1> to vector<8x128xi1>
    %240 = vector.broadcast %235 : f32 to vector<8x128xf32>
    %241 = arith.select %239, %186, %240 : vector<8x128xi1>, vector<8x128xf32>
    %242 = arith.maximumf %137, %241 : vector<8x128xf32>
    %243 = vector.shape_cast %152 : vector<8x1xi1> to vector<8x1xi1>
    %244 = vector.broadcast %243 : vector<8x1xi1> to vector<8x128xi1>
    %245 = vector.broadcast %237 : f32 to vector<8x128xf32>
    %246 = arith.select %244, %225, %245 : vector<8x128xi1>, vector<8x128xf32>
    %247 = arith.maximumf %142, %246 : vector<8x128xf32>
    %c2_i32 = arith.constant 2 : i32
    %c8_i32_87 = arith.constant 8 : i32
    %248 = arith.muli %arg0, %c8_i32_87 : i32
    %249 = arith.addi %248, %c2_i32 : i32
    %c1_i32_88 = arith.constant 1 : i32
    %250 = arith.subi %c1_i32_88, %arg0 : i32
    %c8_i32_89 = arith.constant 8 : i32
    %251 = arith.muli %250, %c8_i32_89 : i32
    %c7_i32_90 = arith.constant 7 : i32
    %252 = arith.subi %c7_i32_90, %c2_i32 : i32
    %253 = arith.addi %251, %252 : i32
    %254 = vector.broadcast %249 : i32 to vector<8x1xi32>
    %255 = arith.cmpi slt, %254, %31 : vector<8x1xi32>
    %256 = vector.broadcast %253 : i32 to vector<8x1xi32>
    %257 = arith.cmpi slt, %256, %31 : vector<8x1xi32>
    %258 = arith.extui %255 : vector<8x1xi1> to vector<8x1xi32>
    %259 = arith.sitofp %258 : vector<8x1xi32> to vector<8x1xf32>
    %260 = arith.extui %257 : vector<8x1xi1> to vector<8x1xi32>
    %261 = arith.sitofp %260 : vector<8x1xi32> to vector<8x1xf32>
    %262 = arith.index_cast %c2_i32 : i32 to index
    %c0_91 = arith.constant 0 : index
    %c0_92 = arith.constant 0 : index
    %263 = vector.load %arg8[%262, %c0_91, %c0_92] : memref<8x8x512xf32, #tpu.memory_space<vmem>>, vector<1x8x512xf32>
    %264 = vector.shape_cast %263 : vector<1x8x512xf32> to vector<8x512xf32>
    %cst_93 = arith.constant dense<0.000000e+00> : vector<8x512xf32>
    %265 = tpu.matmul %190, %28, %cst_93 {dimension_numbers = #tpu.dot_dimension_numbers<[1], [0], [0], [1], [0, 0, 1, 1], [], []>} : vector<8x128xf32>, vector<128x512xf32>, vector<8x512xf32> -> vector<8x512xf32>
    %266 = arith.addf %264, %265 : vector<8x512xf32>
    %267 = vector.extract_strided_slice %266 {offsets = [0, 0], sizes = [8, 128], strides = [1, 1]} : vector<8x512xf32> to vector<8x128xf32>
    %268 = arith.negf %267 : vector<8x128xf32>
    %269 = math.exp %268 : vector<8x128xf32>
    %cst_94 = arith.constant 1.000000e+00 : f32
    %270 = vector.broadcast %cst_94 : f32 to vector<8x128xf32>
    %271 = arith.addf %270, %269 : vector<8x128xf32>
    %272 = arith.divf %270, %271 : vector<8x128xf32>
    %273 = vector.extract_strided_slice %266 {offsets = [0, 128], sizes = [8, 128], strides = [1, 1]} : vector<8x512xf32> to vector<8x128xf32>
    %274 = arith.negf %273 : vector<8x128xf32>
    %275 = math.exp %274 : vector<8x128xf32>
    %cst_95 = arith.constant 1.000000e+00 : f32
    %276 = vector.broadcast %cst_95 : f32 to vector<8x128xf32>
    %277 = arith.addf %276, %275 : vector<8x128xf32>
    %278 = arith.divf %276, %277 : vector<8x128xf32>
    %279 = vector.extract_strided_slice %266 {offsets = [0, 256], sizes = [8, 128], strides = [1, 1]} : vector<8x512xf32> to vector<8x128xf32>
    %280 = math.tanh %279 : vector<8x128xf32>
    %281 = vector.extract_strided_slice %266 {offsets = [0, 384], sizes = [8, 128], strides = [1, 1]} : vector<8x512xf32> to vector<8x128xf32>
    %282 = arith.negf %281 : vector<8x128xf32>
    %283 = math.exp %282 : vector<8x128xf32>
    %cst_96 = arith.constant 1.000000e+00 : f32
    %284 = vector.broadcast %cst_96 : f32 to vector<8x128xf32>
    %285 = arith.addf %284, %283 : vector<8x128xf32>
    %286 = arith.divf %284, %285 : vector<8x128xf32>
    %287 = arith.mulf %278, %194 : vector<8x128xf32>
    %288 = arith.mulf %272, %280 : vector<8x128xf32>
    %289 = arith.addf %287, %288 : vector<8x128xf32>
    %290 = math.tanh %289 : vector<8x128xf32>
    %291 = arith.mulf %286, %290 : vector<8x128xf32>
    %292 = arith.subf %291, %190 : vector<8x128xf32>
    %293 = vector.broadcast %259 : vector<8x1xf32> to vector<8x128xf32>
    %294 = arith.mulf %293, %292 : vector<8x128xf32>
    %295 = arith.addf %190, %294 : vector<8x128xf32>
    %296 = arith.subf %289, %194 : vector<8x128xf32>
    %297 = vector.broadcast %259 : vector<8x1xf32> to vector<8x128xf32>
    %298 = arith.mulf %297, %296 : vector<8x128xf32>
    %299 = arith.addf %194, %298 : vector<8x128xf32>
    %c7_i32_97 = arith.constant 7 : i32
    %300 = arith.subi %c7_i32_97, %c2_i32 : i32
    %301 = arith.index_cast %300 : i32 to index
    %c0_98 = arith.constant 0 : index
    %c0_99 = arith.constant 0 : index
    %302 = vector.load %arg9[%301, %c0_98, %c0_99] : memref<8x8x512xf32, #tpu.memory_space<vmem>>, vector<1x8x512xf32>
    %303 = vector.shape_cast %302 : vector<1x8x512xf32> to vector<8x512xf32>
    %cst_100 = arith.constant dense<0.000000e+00> : vector<8x512xf32>
    %304 = tpu.matmul %229, %30, %cst_100 {dimension_numbers = #tpu.dot_dimension_numbers<[1], [0], [0], [1], [0, 0, 1, 1], [], []>} : vector<8x128xf32>, vector<128x512xf32>, vector<8x512xf32> -> vector<8x512xf32>
    %305 = arith.addf %303, %304 : vector<8x512xf32>
    %306 = vector.extract_strided_slice %305 {offsets = [0, 0], sizes = [8, 128], strides = [1, 1]} : vector<8x512xf32> to vector<8x128xf32>
    %307 = arith.negf %306 : vector<8x128xf32>
    %308 = math.exp %307 : vector<8x128xf32>
    %cst_101 = arith.constant 1.000000e+00 : f32
    %309 = vector.broadcast %cst_101 : f32 to vector<8x128xf32>
    %310 = arith.addf %309, %308 : vector<8x128xf32>
    %311 = arith.divf %309, %310 : vector<8x128xf32>
    %312 = vector.extract_strided_slice %305 {offsets = [0, 128], sizes = [8, 128], strides = [1, 1]} : vector<8x512xf32> to vector<8x128xf32>
    %313 = arith.negf %312 : vector<8x128xf32>
    %314 = math.exp %313 : vector<8x128xf32>
    %cst_102 = arith.constant 1.000000e+00 : f32
    %315 = vector.broadcast %cst_102 : f32 to vector<8x128xf32>
    %316 = arith.addf %315, %314 : vector<8x128xf32>
    %317 = arith.divf %315, %316 : vector<8x128xf32>
    %318 = vector.extract_strided_slice %305 {offsets = [0, 256], sizes = [8, 128], strides = [1, 1]} : vector<8x512xf32> to vector<8x128xf32>
    %319 = math.tanh %318 : vector<8x128xf32>
    %320 = vector.extract_strided_slice %305 {offsets = [0, 384], sizes = [8, 128], strides = [1, 1]} : vector<8x512xf32> to vector<8x128xf32>
    %321 = arith.negf %320 : vector<8x128xf32>
    %322 = math.exp %321 : vector<8x128xf32>
    %cst_103 = arith.constant 1.000000e+00 : f32
    %323 = vector.broadcast %cst_103 : f32 to vector<8x128xf32>
    %324 = arith.addf %323, %322 : vector<8x128xf32>
    %325 = arith.divf %323, %324 : vector<8x128xf32>
    %326 = arith.mulf %317, %233 : vector<8x128xf32>
    %327 = arith.mulf %311, %319 : vector<8x128xf32>
    %328 = arith.addf %326, %327 : vector<8x128xf32>
    %329 = math.tanh %328 : vector<8x128xf32>
    %330 = arith.mulf %325, %329 : vector<8x128xf32>
    %331 = arith.subf %330, %229 : vector<8x128xf32>
    %332 = vector.broadcast %261 : vector<8x1xf32> to vector<8x128xf32>
    %333 = arith.mulf %332, %331 : vector<8x128xf32>
    %334 = arith.addf %229, %333 : vector<8x128xf32>
    %335 = arith.subf %328, %233 : vector<8x128xf32>
    %336 = vector.broadcast %261 : vector<8x1xf32> to vector<8x128xf32>
    %337 = arith.mulf %336, %335 : vector<8x128xf32>
    %338 = arith.addf %233, %337 : vector<8x128xf32>
    %c13_i32_104 = arith.constant 13 : i32
    %339 = arith.cmpi slt, %249, %c13_i32_104 : i32
    %cst_105 = arith.constant 0.000000e+00 : f32
    %cst_106 = arith.constant 0xFF800000 : f32
    %340 = arith.select %339, %cst_105, %cst_106 : f32
    %c13_i32_107 = arith.constant 13 : i32
    %341 = arith.cmpi slt, %253, %c13_i32_107 : i32
    %cst_108 = arith.constant 0.000000e+00 : f32
    %cst_109 = arith.constant 0xFF800000 : f32
    %342 = arith.select %341, %cst_108, %cst_109 : f32
    %343 = vector.shape_cast %255 : vector<8x1xi1> to vector<8x1xi1>
    %344 = vector.broadcast %343 : vector<8x1xi1> to vector<8x128xi1>
    %345 = vector.broadcast %340 : f32 to vector<8x128xf32>
    %346 = arith.select %344, %291, %345 : vector<8x128xi1>, vector<8x128xf32>
    %347 = arith.maximumf %242, %346 : vector<8x128xf32>
    %348 = vector.shape_cast %257 : vector<8x1xi1> to vector<8x1xi1>
    %349 = vector.broadcast %348 : vector<8x1xi1> to vector<8x128xi1>
    %350 = vector.broadcast %342 : f32 to vector<8x128xf32>
    %351 = arith.select %349, %330, %350 : vector<8x128xi1>, vector<8x128xf32>
    %352 = arith.maximumf %247, %351 : vector<8x128xf32>
    %c3_i32 = arith.constant 3 : i32
    %c8_i32_110 = arith.constant 8 : i32
    %353 = arith.muli %arg0, %c8_i32_110 : i32
    %354 = arith.addi %353, %c3_i32 : i32
    %c1_i32_111 = arith.constant 1 : i32
    %355 = arith.subi %c1_i32_111, %arg0 : i32
    %c8_i32_112 = arith.constant 8 : i32
    %356 = arith.muli %355, %c8_i32_112 : i32
    %c7_i32_113 = arith.constant 7 : i32
    %357 = arith.subi %c7_i32_113, %c3_i32 : i32
    %358 = arith.addi %356, %357 : i32
    %359 = vector.broadcast %354 : i32 to vector<8x1xi32>
    %360 = arith.cmpi slt, %359, %31 : vector<8x1xi32>
    %361 = vector.broadcast %358 : i32 to vector<8x1xi32>
    %362 = arith.cmpi slt, %361, %31 : vector<8x1xi32>
    %363 = arith.extui %360 : vector<8x1xi1> to vector<8x1xi32>
    %364 = arith.sitofp %363 : vector<8x1xi32> to vector<8x1xf32>
    %365 = arith.extui %362 : vector<8x1xi1> to vector<8x1xi32>
    %366 = arith.sitofp %365 : vector<8x1xi32> to vector<8x1xf32>
    %367 = arith.index_cast %c3_i32 : i32 to index
    %c0_114 = arith.constant 0 : index
    %c0_115 = arith.constant 0 : index
    %368 = vector.load %arg8[%367, %c0_114, %c0_115] : memref<8x8x512xf32, #tpu.memory_space<vmem>>, vector<1x8x512xf32>
    %369 = vector.shape_cast %368 : vector<1x8x512xf32> to vector<8x512xf32>
    %cst_116 = arith.constant dense<0.000000e+00> : vector<8x512xf32>
    %370 = tpu.matmul %295, %28, %cst_116 {dimension_numbers = #tpu.dot_dimension_numbers<[1], [0], [0], [1], [0, 0, 1, 1], [], []>} : vector<8x128xf32>, vector<128x512xf32>, vector<8x512xf32> -> vector<8x512xf32>
    %371 = arith.addf %369, %370 : vector<8x512xf32>
    %372 = vector.extract_strided_slice %371 {offsets = [0, 0], sizes = [8, 128], strides = [1, 1]} : vector<8x512xf32> to vector<8x128xf32>
    %373 = arith.negf %372 : vector<8x128xf32>
    %374 = math.exp %373 : vector<8x128xf32>
    %cst_117 = arith.constant 1.000000e+00 : f32
    %375 = vector.broadcast %cst_117 : f32 to vector<8x128xf32>
    %376 = arith.addf %375, %374 : vector<8x128xf32>
    %377 = arith.divf %375, %376 : vector<8x128xf32>
    %378 = vector.extract_strided_slice %371 {offsets = [0, 128], sizes = [8, 128], strides = [1, 1]} : vector<8x512xf32> to vector<8x128xf32>
    %379 = arith.negf %378 : vector<8x128xf32>
    %380 = math.exp %379 : vector<8x128xf32>
    %cst_118 = arith.constant 1.000000e+00 : f32
    %381 = vector.broadcast %cst_118 : f32 to vector<8x128xf32>
    %382 = arith.addf %381, %380 : vector<8x128xf32>
    %383 = arith.divf %381, %382 : vector<8x128xf32>
    %384 = vector.extract_strided_slice %371 {offsets = [0, 256], sizes = [8, 128], strides = [1, 1]} : vector<8x512xf32> to vector<8x128xf32>
    %385 = math.tanh %384 : vector<8x128xf32>
    %386 = vector.extract_strided_slice %371 {offsets = [0, 384], sizes = [8, 128], strides = [1, 1]} : vector<8x512xf32> to vector<8x128xf32>
    %387 = arith.negf %386 : vector<8x128xf32>
    %388 = math.exp %387 : vector<8x128xf32>
    %cst_119 = arith.constant 1.000000e+00 : f32
    %389 = vector.broadcast %cst_119 : f32 to vector<8x128xf32>
    %390 = arith.addf %389, %388 : vector<8x128xf32>
    %391 = arith.divf %389, %390 : vector<8x128xf32>
    %392 = arith.mulf %383, %299 : vector<8x128xf32>
    %393 = arith.mulf %377, %385 : vector<8x128xf32>
    %394 = arith.addf %392, %393 : vector<8x128xf32>
    %395 = math.tanh %394 : vector<8x128xf32>
    %396 = arith.mulf %391, %395 : vector<8x128xf32>
    %397 = arith.subf %396, %295 : vector<8x128xf32>
    %398 = vector.broadcast %364 : vector<8x1xf32> to vector<8x128xf32>
    %399 = arith.mulf %398, %397 : vector<8x128xf32>
    %400 = arith.addf %295, %399 : vector<8x128xf32>
    %401 = arith.subf %394, %299 : vector<8x128xf32>
    %402 = vector.broadcast %364 : vector<8x1xf32> to vector<8x128xf32>
    %403 = arith.mulf %402, %401 : vector<8x128xf32>
    %404 = arith.addf %299, %403 : vector<8x128xf32>
    %c7_i32_120 = arith.constant 7 : i32
    %405 = arith.subi %c7_i32_120, %c3_i32 : i32
    %406 = arith.index_cast %405 : i32 to index
    %c0_121 = arith.constant 0 : index
    %c0_122 = arith.constant 0 : index
    %407 = vector.load %arg9[%406, %c0_121, %c0_122] : memref<8x8x512xf32, #tpu.memory_space<vmem>>, vector<1x8x512xf32>
    %408 = vector.shape_cast %407 : vector<1x8x512xf32> to vector<8x512xf32>
    %cst_123 = arith.constant dense<0.000000e+00> : vector<8x512xf32>
    %409 = tpu.matmul %334, %30, %cst_123 {dimension_numbers = #tpu.dot_dimension_numbers<[1], [0], [0], [1], [0, 0, 1, 1], [], []>} : vector<8x128xf32>, vector<128x512xf32>, vector<8x512xf32> -> vector<8x512xf32>
    %410 = arith.addf %408, %409 : vector<8x512xf32>
    %411 = vector.extract_strided_slice %410 {offsets = [0, 0], sizes = [8, 128], strides = [1, 1]} : vector<8x512xf32> to vector<8x128xf32>
    %412 = arith.negf %411 : vector<8x128xf32>
    %413 = math.exp %412 : vector<8x128xf32>
    %cst_124 = arith.constant 1.000000e+00 : f32
    %414 = vector.broadcast %cst_124 : f32 to vector<8x128xf32>
    %415 = arith.addf %414, %413 : vector<8x128xf32>
    %416 = arith.divf %414, %415 : vector<8x128xf32>
    %417 = vector.extract_strided_slice %410 {offsets = [0, 128], sizes = [8, 128], strides = [1, 1]} : vector<8x512xf32> to vector<8x128xf32>
    %418 = arith.negf %417 : vector<8x128xf32>
    %419 = math.exp %418 : vector<8x128xf32>
    %cst_125 = arith.constant 1.000000e+00 : f32
    %420 = vector.broadcast %cst_125 : f32 to vector<8x128xf32>
    %421 = arith.addf %420, %419 : vector<8x128xf32>
    %422 = arith.divf %420, %421 : vector<8x128xf32>
    %423 = vector.extract_strided_slice %410 {offsets = [0, 256], sizes = [8, 128], strides = [1, 1]} : vector<8x512xf32> to vector<8x128xf32>
    %424 = math.tanh %423 : vector<8x128xf32>
    %425 = vector.extract_strided_slice %410 {offsets = [0, 384], sizes = [8, 128], strides = [1, 1]} : vector<8x512xf32> to vector<8x128xf32>
    %426 = arith.negf %425 : vector<8x128xf32>
    %427 = math.exp %426 : vector<8x128xf32>
    %cst_126 = arith.constant 1.000000e+00 : f32
    %428 = vector.broadcast %cst_126 : f32 to vector<8x128xf32>
    %429 = arith.addf %428, %427 : vector<8x128xf32>
    %430 = arith.divf %428, %429 : vector<8x128xf32>
    %431 = arith.mulf %422, %338 : vector<8x128xf32>
    %432 = arith.mulf %416, %424 : vector<8x128xf32>
    %433 = arith.addf %431, %432 : vector<8x128xf32>
    %434 = math.tanh %433 : vector<8x128xf32>
    %435 = arith.mulf %430, %434 : vector<8x128xf32>
    %436 = arith.subf %435, %334 : vector<8x128xf32>
    %437 = vector.broadcast %366 : vector<8x1xf32> to vector<8x128xf32>
    %438 = arith.mulf %437, %436 : vector<8x128xf32>
    %439 = arith.addf %334, %438 : vector<8x128xf32>
    %440 = arith.subf %433, %338 : vector<8x128xf32>
    %441 = vector.broadcast %366 : vector<8x1xf32> to vector<8x128xf32>
    %442 = arith.mulf %441, %440 : vector<8x128xf32>
    %443 = arith.addf %338, %442 : vector<8x128xf32>
    %c13_i32_127 = arith.constant 13 : i32
    %444 = arith.cmpi slt, %354, %c13_i32_127 : i32
    %cst_128 = arith.constant 0.000000e+00 : f32
    %cst_129 = arith.constant 0xFF800000 : f32
    %445 = arith.select %444, %cst_128, %cst_129 : f32
    %c13_i32_130 = arith.constant 13 : i32
    %446 = arith.cmpi slt, %358, %c13_i32_130 : i32
    %cst_131 = arith.constant 0.000000e+00 : f32
    %cst_132 = arith.constant 0xFF800000 : f32
    %447 = arith.select %446, %cst_131, %cst_132 : f32
    %448 = vector.shape_cast %360 : vector<8x1xi1> to vector<8x1xi1>
    %449 = vector.broadcast %448 : vector<8x1xi1> to vector<8x128xi1>
    %450 = vector.broadcast %445 : f32 to vector<8x128xf32>
    %451 = arith.select %449, %396, %450 : vector<8x128xi1>, vector<8x128xf32>
    %452 = arith.maximumf %347, %451 : vector<8x128xf32>
    %453 = vector.shape_cast %362 : vector<8x1xi1> to vector<8x1xi1>
    %454 = vector.broadcast %453 : vector<8x1xi1> to vector<8x128xi1>
    %455 = vector.broadcast %447 : f32 to vector<8x128xf32>
    %456 = arith.select %454, %435, %455 : vector<8x128xi1>, vector<8x128xf32>
    %457 = arith.maximumf %352, %456 : vector<8x128xf32>
    %c4_i32 = arith.constant 4 : i32
    %c8_i32_133 = arith.constant 8 : i32
    %458 = arith.muli %arg0, %c8_i32_133 : i32
    %459 = arith.addi %458, %c4_i32 : i32
    %c1_i32_134 = arith.constant 1 : i32
    %460 = arith.subi %c1_i32_134, %arg0 : i32
    %c8_i32_135 = arith.constant 8 : i32
    %461 = arith.muli %460, %c8_i32_135 : i32
    %c7_i32_136 = arith.constant 7 : i32
    %462 = arith.subi %c7_i32_136, %c4_i32 : i32
    %463 = arith.addi %461, %462 : i32
    %464 = vector.broadcast %459 : i32 to vector<8x1xi32>
    %465 = arith.cmpi slt, %464, %31 : vector<8x1xi32>
    %466 = vector.broadcast %463 : i32 to vector<8x1xi32>
    %467 = arith.cmpi slt, %466, %31 : vector<8x1xi32>
    %468 = arith.extui %465 : vector<8x1xi1> to vector<8x1xi32>
    %469 = arith.sitofp %468 : vector<8x1xi32> to vector<8x1xf32>
    %470 = arith.extui %467 : vector<8x1xi1> to vector<8x1xi32>
    %471 = arith.sitofp %470 : vector<8x1xi32> to vector<8x1xf32>
    %472 = arith.index_cast %c4_i32 : i32 to index
    %c0_137 = arith.constant 0 : index
    %c0_138 = arith.constant 0 : index
    %473 = vector.load %arg8[%472, %c0_137, %c0_138] : memref<8x8x512xf32, #tpu.memory_space<vmem>>, vector<1x8x512xf32>
    %474 = vector.shape_cast %473 : vector<1x8x512xf32> to vector<8x512xf32>
    %cst_139 = arith.constant dense<0.000000e+00> : vector<8x512xf32>
    %475 = tpu.matmul %400, %28, %cst_139 {dimension_numbers = #tpu.dot_dimension_numbers<[1], [0], [0], [1], [0, 0, 1, 1], [], []>} : vector<8x128xf32>, vector<128x512xf32>, vector<8x512xf32> -> vector<8x512xf32>
    %476 = arith.addf %474, %475 : vector<8x512xf32>
    %477 = vector.extract_strided_slice %476 {offsets = [0, 0], sizes = [8, 128], strides = [1, 1]} : vector<8x512xf32> to vector<8x128xf32>
    %478 = arith.negf %477 : vector<8x128xf32>
    %479 = math.exp %478 : vector<8x128xf32>
    %cst_140 = arith.constant 1.000000e+00 : f32
    %480 = vector.broadcast %cst_140 : f32 to vector<8x128xf32>
    %481 = arith.addf %480, %479 : vector<8x128xf32>
    %482 = arith.divf %480, %481 : vector<8x128xf32>
    %483 = vector.extract_strided_slice %476 {offsets = [0, 128], sizes = [8, 128], strides = [1, 1]} : vector<8x512xf32> to vector<8x128xf32>
    %484 = arith.negf %483 : vector<8x128xf32>
    %485 = math.exp %484 : vector<8x128xf32>
    %cst_141 = arith.constant 1.000000e+00 : f32
    %486 = vector.broadcast %cst_141 : f32 to vector<8x128xf32>
    %487 = arith.addf %486, %485 : vector<8x128xf32>
    %488 = arith.divf %486, %487 : vector<8x128xf32>
    %489 = vector.extract_strided_slice %476 {offsets = [0, 256], sizes = [8, 128], strides = [1, 1]} : vector<8x512xf32> to vector<8x128xf32>
    %490 = math.tanh %489 : vector<8x128xf32>
    %491 = vector.extract_strided_slice %476 {offsets = [0, 384], sizes = [8, 128], strides = [1, 1]} : vector<8x512xf32> to vector<8x128xf32>
    %492 = arith.negf %491 : vector<8x128xf32>
    %493 = math.exp %492 : vector<8x128xf32>
    %cst_142 = arith.constant 1.000000e+00 : f32
    %494 = vector.broadcast %cst_142 : f32 to vector<8x128xf32>
    %495 = arith.addf %494, %493 : vector<8x128xf32>
    %496 = arith.divf %494, %495 : vector<8x128xf32>
    %497 = arith.mulf %488, %404 : vector<8x128xf32>
    %498 = arith.mulf %482, %490 : vector<8x128xf32>
    %499 = arith.addf %497, %498 : vector<8x128xf32>
    %500 = math.tanh %499 : vector<8x128xf32>
    %501 = arith.mulf %496, %500 : vector<8x128xf32>
    %502 = arith.subf %501, %400 : vector<8x128xf32>
    %503 = vector.broadcast %469 : vector<8x1xf32> to vector<8x128xf32>
    %504 = arith.mulf %503, %502 : vector<8x128xf32>
    %505 = arith.addf %400, %504 : vector<8x128xf32>
    %506 = arith.subf %499, %404 : vector<8x128xf32>
    %507 = vector.broadcast %469 : vector<8x1xf32> to vector<8x128xf32>
    %508 = arith.mulf %507, %506 : vector<8x128xf32>
    %509 = arith.addf %404, %508 : vector<8x128xf32>
    %c7_i32_143 = arith.constant 7 : i32
    %510 = arith.subi %c7_i32_143, %c4_i32 : i32
    %511 = arith.index_cast %510 : i32 to index
    %c0_144 = arith.constant 0 : index
    %c0_145 = arith.constant 0 : index
    %512 = vector.load %arg9[%511, %c0_144, %c0_145] : memref<8x8x512xf32, #tpu.memory_space<vmem>>, vector<1x8x512xf32>
    %513 = vector.shape_cast %512 : vector<1x8x512xf32> to vector<8x512xf32>
    %cst_146 = arith.constant dense<0.000000e+00> : vector<8x512xf32>
    %514 = tpu.matmul %439, %30, %cst_146 {dimension_numbers = #tpu.dot_dimension_numbers<[1], [0], [0], [1], [0, 0, 1, 1], [], []>} : vector<8x128xf32>, vector<128x512xf32>, vector<8x512xf32> -> vector<8x512xf32>
    %515 = arith.addf %513, %514 : vector<8x512xf32>
    %516 = vector.extract_strided_slice %515 {offsets = [0, 0], sizes = [8, 128], strides = [1, 1]} : vector<8x512xf32> to vector<8x128xf32>
    %517 = arith.negf %516 : vector<8x128xf32>
    %518 = math.exp %517 : vector<8x128xf32>
    %cst_147 = arith.constant 1.000000e+00 : f32
    %519 = vector.broadcast %cst_147 : f32 to vector<8x128xf32>
    %520 = arith.addf %519, %518 : vector<8x128xf32>
    %521 = arith.divf %519, %520 : vector<8x128xf32>
    %522 = vector.extract_strided_slice %515 {offsets = [0, 128], sizes = [8, 128], strides = [1, 1]} : vector<8x512xf32> to vector<8x128xf32>
    %523 = arith.negf %522 : vector<8x128xf32>
    %524 = math.exp %523 : vector<8x128xf32>
    %cst_148 = arith.constant 1.000000e+00 : f32
    %525 = vector.broadcast %cst_148 : f32 to vector<8x128xf32>
    %526 = arith.addf %525, %524 : vector<8x128xf32>
    %527 = arith.divf %525, %526 : vector<8x128xf32>
    %528 = vector.extract_strided_slice %515 {offsets = [0, 256], sizes = [8, 128], strides = [1, 1]} : vector<8x512xf32> to vector<8x128xf32>
    %529 = math.tanh %528 : vector<8x128xf32>
    %530 = vector.extract_strided_slice %515 {offsets = [0, 384], sizes = [8, 128], strides = [1, 1]} : vector<8x512xf32> to vector<8x128xf32>
    %531 = arith.negf %530 : vector<8x128xf32>
    %532 = math.exp %531 : vector<8x128xf32>
    %cst_149 = arith.constant 1.000000e+00 : f32
    %533 = vector.broadcast %cst_149 : f32 to vector<8x128xf32>
    %534 = arith.addf %533, %532 : vector<8x128xf32>
    %535 = arith.divf %533, %534 : vector<8x128xf32>
    %536 = arith.mulf %527, %443 : vector<8x128xf32>
    %537 = arith.mulf %521, %529 : vector<8x128xf32>
    %538 = arith.addf %536, %537 : vector<8x128xf32>
    %539 = math.tanh %538 : vector<8x128xf32>
    %540 = arith.mulf %535, %539 : vector<8x128xf32>
    %541 = arith.subf %540, %439 : vector<8x128xf32>
    %542 = vector.broadcast %471 : vector<8x1xf32> to vector<8x128xf32>
    %543 = arith.mulf %542, %541 : vector<8x128xf32>
    %544 = arith.addf %439, %543 : vector<8x128xf32>
    %545 = arith.subf %538, %443 : vector<8x128xf32>
    %546 = vector.broadcast %471 : vector<8x1xf32> to vector<8x128xf32>
    %547 = arith.mulf %546, %545 : vector<8x128xf32>
    %548 = arith.addf %443, %547 : vector<8x128xf32>
    %c13_i32_150 = arith.constant 13 : i32
    %549 = arith.cmpi slt, %459, %c13_i32_150 : i32
    %cst_151 = arith.constant 0.000000e+00 : f32
    %cst_152 = arith.constant 0xFF800000 : f32
    %550 = arith.select %549, %cst_151, %cst_152 : f32
    %c13_i32_153 = arith.constant 13 : i32
    %551 = arith.cmpi slt, %463, %c13_i32_153 : i32
    %cst_154 = arith.constant 0.000000e+00 : f32
    %cst_155 = arith.constant 0xFF800000 : f32
    %552 = arith.select %551, %cst_154, %cst_155 : f32
    %553 = vector.shape_cast %465 : vector<8x1xi1> to vector<8x1xi1>
    %554 = vector.broadcast %553 : vector<8x1xi1> to vector<8x128xi1>
    %555 = vector.broadcast %550 : f32 to vector<8x128xf32>
    %556 = arith.select %554, %501, %555 : vector<8x128xi1>, vector<8x128xf32>
    %557 = arith.maximumf %452, %556 : vector<8x128xf32>
    %558 = vector.shape_cast %467 : vector<8x1xi1> to vector<8x1xi1>
    %559 = vector.broadcast %558 : vector<8x1xi1> to vector<8x128xi1>
    %560 = vector.broadcast %552 : f32 to vector<8x128xf32>
    %561 = arith.select %559, %540, %560 : vector<8x128xi1>, vector<8x128xf32>
    %562 = arith.maximumf %457, %561 : vector<8x128xf32>
    %c5_i32 = arith.constant 5 : i32
    %c8_i32_156 = arith.constant 8 : i32
    %563 = arith.muli %arg0, %c8_i32_156 : i32
    %564 = arith.addi %563, %c5_i32 : i32
    %c1_i32_157 = arith.constant 1 : i32
    %565 = arith.subi %c1_i32_157, %arg0 : i32
    %c8_i32_158 = arith.constant 8 : i32
    %566 = arith.muli %565, %c8_i32_158 : i32
    %c7_i32_159 = arith.constant 7 : i32
    %567 = arith.subi %c7_i32_159, %c5_i32 : i32
    %568 = arith.addi %566, %567 : i32
    %569 = vector.broadcast %564 : i32 to vector<8x1xi32>
    %570 = arith.cmpi slt, %569, %31 : vector<8x1xi32>
    %571 = vector.broadcast %568 : i32 to vector<8x1xi32>
    %572 = arith.cmpi slt, %571, %31 : vector<8x1xi32>
    %573 = arith.extui %570 : vector<8x1xi1> to vector<8x1xi32>
    %574 = arith.sitofp %573 : vector<8x1xi32> to vector<8x1xf32>
    %575 = arith.extui %572 : vector<8x1xi1> to vector<8x1xi32>
    %576 = arith.sitofp %575 : vector<8x1xi32> to vector<8x1xf32>
    %577 = arith.index_cast %c5_i32 : i32 to index
    %c0_160 = arith.constant 0 : index
    %c0_161 = arith.constant 0 : index
    %578 = vector.load %arg8[%577, %c0_160, %c0_161] : memref<8x8x512xf32, #tpu.memory_space<vmem>>, vector<1x8x512xf32>
    %579 = vector.shape_cast %578 : vector<1x8x512xf32> to vector<8x512xf32>
    %cst_162 = arith.constant dense<0.000000e+00> : vector<8x512xf32>
    %580 = tpu.matmul %505, %28, %cst_162 {dimension_numbers = #tpu.dot_dimension_numbers<[1], [0], [0], [1], [0, 0, 1, 1], [], []>} : vector<8x128xf32>, vector<128x512xf32>, vector<8x512xf32> -> vector<8x512xf32>
    %581 = arith.addf %579, %580 : vector<8x512xf32>
    %582 = vector.extract_strided_slice %581 {offsets = [0, 0], sizes = [8, 128], strides = [1, 1]} : vector<8x512xf32> to vector<8x128xf32>
    %583 = arith.negf %582 : vector<8x128xf32>
    %584 = math.exp %583 : vector<8x128xf32>
    %cst_163 = arith.constant 1.000000e+00 : f32
    %585 = vector.broadcast %cst_163 : f32 to vector<8x128xf32>
    %586 = arith.addf %585, %584 : vector<8x128xf32>
    %587 = arith.divf %585, %586 : vector<8x128xf32>
    %588 = vector.extract_strided_slice %581 {offsets = [0, 128], sizes = [8, 128], strides = [1, 1]} : vector<8x512xf32> to vector<8x128xf32>
    %589 = arith.negf %588 : vector<8x128xf32>
    %590 = math.exp %589 : vector<8x128xf32>
    %cst_164 = arith.constant 1.000000e+00 : f32
    %591 = vector.broadcast %cst_164 : f32 to vector<8x128xf32>
    %592 = arith.addf %591, %590 : vector<8x128xf32>
    %593 = arith.divf %591, %592 : vector<8x128xf32>
    %594 = vector.extract_strided_slice %581 {offsets = [0, 256], sizes = [8, 128], strides = [1, 1]} : vector<8x512xf32> to vector<8x128xf32>
    %595 = math.tanh %594 : vector<8x128xf32>
    %596 = vector.extract_strided_slice %581 {offsets = [0, 384], sizes = [8, 128], strides = [1, 1]} : vector<8x512xf32> to vector<8x128xf32>
    %597 = arith.negf %596 : vector<8x128xf32>
    %598 = math.exp %597 : vector<8x128xf32>
    %cst_165 = arith.constant 1.000000e+00 : f32
    %599 = vector.broadcast %cst_165 : f32 to vector<8x128xf32>
    %600 = arith.addf %599, %598 : vector<8x128xf32>
    %601 = arith.divf %599, %600 : vector<8x128xf32>
    %602 = arith.mulf %593, %509 : vector<8x128xf32>
    %603 = arith.mulf %587, %595 : vector<8x128xf32>
    %604 = arith.addf %602, %603 : vector<8x128xf32>
    %605 = math.tanh %604 : vector<8x128xf32>
    %606 = arith.mulf %601, %605 : vector<8x128xf32>
    %607 = arith.subf %606, %505 : vector<8x128xf32>
    %608 = vector.broadcast %574 : vector<8x1xf32> to vector<8x128xf32>
    %609 = arith.mulf %608, %607 : vector<8x128xf32>
    %610 = arith.addf %505, %609 : vector<8x128xf32>
    %611 = arith.subf %604, %509 : vector<8x128xf32>
    %612 = vector.broadcast %574 : vector<8x1xf32> to vector<8x128xf32>
    %613 = arith.mulf %612, %611 : vector<8x128xf32>
    %614 = arith.addf %509, %613 : vector<8x128xf32>
    %c7_i32_166 = arith.constant 7 : i32
    %615 = arith.subi %c7_i32_166, %c5_i32 : i32
    %616 = arith.index_cast %615 : i32 to index
    %c0_167 = arith.constant 0 : index
    %c0_168 = arith.constant 0 : index
    %617 = vector.load %arg9[%616, %c0_167, %c0_168] : memref<8x8x512xf32, #tpu.memory_space<vmem>>, vector<1x8x512xf32>
    %618 = vector.shape_cast %617 : vector<1x8x512xf32> to vector<8x512xf32>
    %cst_169 = arith.constant dense<0.000000e+00> : vector<8x512xf32>
    %619 = tpu.matmul %544, %30, %cst_169 {dimension_numbers = #tpu.dot_dimension_numbers<[1], [0], [0], [1], [0, 0, 1, 1], [], []>} : vector<8x128xf32>, vector<128x512xf32>, vector<8x512xf32> -> vector<8x512xf32>
    %620 = arith.addf %618, %619 : vector<8x512xf32>
    %621 = vector.extract_strided_slice %620 {offsets = [0, 0], sizes = [8, 128], strides = [1, 1]} : vector<8x512xf32> to vector<8x128xf32>
    %622 = arith.negf %621 : vector<8x128xf32>
    %623 = math.exp %622 : vector<8x128xf32>
    %cst_170 = arith.constant 1.000000e+00 : f32
    %624 = vector.broadcast %cst_170 : f32 to vector<8x128xf32>
    %625 = arith.addf %624, %623 : vector<8x128xf32>
    %626 = arith.divf %624, %625 : vector<8x128xf32>
    %627 = vector.extract_strided_slice %620 {offsets = [0, 128], sizes = [8, 128], strides = [1, 1]} : vector<8x512xf32> to vector<8x128xf32>
    %628 = arith.negf %627 : vector<8x128xf32>
    %629 = math.exp %628 : vector<8x128xf32>
    %cst_171 = arith.constant 1.000000e+00 : f32
    %630 = vector.broadcast %cst_171 : f32 to vector<8x128xf32>
    %631 = arith.addf %630, %629 : vector<8x128xf32>
    %632 = arith.divf %630, %631 : vector<8x128xf32>
    %633 = vector.extract_strided_slice %620 {offsets = [0, 256], sizes = [8, 128], strides = [1, 1]} : vector<8x512xf32> to vector<8x128xf32>
    %634 = math.tanh %633 : vector<8x128xf32>
    %635 = vector.extract_strided_slice %620 {offsets = [0, 384], sizes = [8, 128], strides = [1, 1]} : vector<8x512xf32> to vector<8x128xf32>
    %636 = arith.negf %635 : vector<8x128xf32>
    %637 = math.exp %636 : vector<8x128xf32>
    %cst_172 = arith.constant 1.000000e+00 : f32
    %638 = vector.broadcast %cst_172 : f32 to vector<8x128xf32>
    %639 = arith.addf %638, %637 : vector<8x128xf32>
    %640 = arith.divf %638, %639 : vector<8x128xf32>
    %641 = arith.mulf %632, %548 : vector<8x128xf32>
    %642 = arith.mulf %626, %634 : vector<8x128xf32>
    %643 = arith.addf %641, %642 : vector<8x128xf32>
    %644 = math.tanh %643 : vector<8x128xf32>
    %645 = arith.mulf %640, %644 : vector<8x128xf32>
    %646 = arith.subf %645, %544 : vector<8x128xf32>
    %647 = vector.broadcast %576 : vector<8x1xf32> to vector<8x128xf32>
    %648 = arith.mulf %647, %646 : vector<8x128xf32>
    %649 = arith.addf %544, %648 : vector<8x128xf32>
    %650 = arith.subf %643, %548 : vector<8x128xf32>
    %651 = vector.broadcast %576 : vector<8x1xf32> to vector<8x128xf32>
    %652 = arith.mulf %651, %650 : vector<8x128xf32>
    %653 = arith.addf %548, %652 : vector<8x128xf32>
    %c13_i32_173 = arith.constant 13 : i32
    %654 = arith.cmpi slt, %564, %c13_i32_173 : i32
    %cst_174 = arith.constant 0.000000e+00 : f32
    %cst_175 = arith.constant 0xFF800000 : f32
    %655 = arith.select %654, %cst_174, %cst_175 : f32
    %c13_i32_176 = arith.constant 13 : i32
    %656 = arith.cmpi slt, %568, %c13_i32_176 : i32
    %cst_177 = arith.constant 0.000000e+00 : f32
    %cst_178 = arith.constant 0xFF800000 : f32
    %657 = arith.select %656, %cst_177, %cst_178 : f32
    %658 = vector.shape_cast %570 : vector<8x1xi1> to vector<8x1xi1>
    %659 = vector.broadcast %658 : vector<8x1xi1> to vector<8x128xi1>
    %660 = vector.broadcast %655 : f32 to vector<8x128xf32>
    %661 = arith.select %659, %606, %660 : vector<8x128xi1>, vector<8x128xf32>
    %662 = arith.maximumf %557, %661 : vector<8x128xf32>
    %663 = vector.shape_cast %572 : vector<8x1xi1> to vector<8x1xi1>
    %664 = vector.broadcast %663 : vector<8x1xi1> to vector<8x128xi1>
    %665 = vector.broadcast %657 : f32 to vector<8x128xf32>
    %666 = arith.select %664, %645, %665 : vector<8x128xi1>, vector<8x128xf32>
    %667 = arith.maximumf %562, %666 : vector<8x128xf32>
    %c6_i32 = arith.constant 6 : i32
    %c8_i32_179 = arith.constant 8 : i32
    %668 = arith.muli %arg0, %c8_i32_179 : i32
    %669 = arith.addi %668, %c6_i32 : i32
    %c1_i32_180 = arith.constant 1 : i32
    %670 = arith.subi %c1_i32_180, %arg0 : i32
    %c8_i32_181 = arith.constant 8 : i32
    %671 = arith.muli %670, %c8_i32_181 : i32
    %c7_i32_182 = arith.constant 7 : i32
    %672 = arith.subi %c7_i32_182, %c6_i32 : i32
    %673 = arith.addi %671, %672 : i32
    %674 = vector.broadcast %669 : i32 to vector<8x1xi32>
    %675 = arith.cmpi slt, %674, %31 : vector<8x1xi32>
    %676 = vector.broadcast %673 : i32 to vector<8x1xi32>
    %677 = arith.cmpi slt, %676, %31 : vector<8x1xi32>
    %678 = arith.extui %675 : vector<8x1xi1> to vector<8x1xi32>
    %679 = arith.sitofp %678 : vector<8x1xi32> to vector<8x1xf32>
    %680 = arith.extui %677 : vector<8x1xi1> to vector<8x1xi32>
    %681 = arith.sitofp %680 : vector<8x1xi32> to vector<8x1xf32>
    %682 = arith.index_cast %c6_i32 : i32 to index
    %c0_183 = arith.constant 0 : index
    %c0_184 = arith.constant 0 : index
    %683 = vector.load %arg8[%682, %c0_183, %c0_184] : memref<8x8x512xf32, #tpu.memory_space<vmem>>, vector<1x8x512xf32>
    %684 = vector.shape_cast %683 : vector<1x8x512xf32> to vector<8x512xf32>
    %cst_185 = arith.constant dense<0.000000e+00> : vector<8x512xf32>
    %685 = tpu.matmul %610, %28, %cst_185 {dimension_numbers = #tpu.dot_dimension_numbers<[1], [0], [0], [1], [0, 0, 1, 1], [], []>} : vector<8x128xf32>, vector<128x512xf32>, vector<8x512xf32> -> vector<8x512xf32>
    %686 = arith.addf %684, %685 : vector<8x512xf32>
    %687 = vector.extract_strided_slice %686 {offsets = [0, 0], sizes = [8, 128], strides = [1, 1]} : vector<8x512xf32> to vector<8x128xf32>
    %688 = arith.negf %687 : vector<8x128xf32>
    %689 = math.exp %688 : vector<8x128xf32>
    %cst_186 = arith.constant 1.000000e+00 : f32
    %690 = vector.broadcast %cst_186 : f32 to vector<8x128xf32>
    %691 = arith.addf %690, %689 : vector<8x128xf32>
    %692 = arith.divf %690, %691 : vector<8x128xf32>
    %693 = vector.extract_strided_slice %686 {offsets = [0, 128], sizes = [8, 128], strides = [1, 1]} : vector<8x512xf32> to vector<8x128xf32>
    %694 = arith.negf %693 : vector<8x128xf32>
    %695 = math.exp %694 : vector<8x128xf32>
    %cst_187 = arith.constant 1.000000e+00 : f32
    %696 = vector.broadcast %cst_187 : f32 to vector<8x128xf32>
    %697 = arith.addf %696, %695 : vector<8x128xf32>
    %698 = arith.divf %696, %697 : vector<8x128xf32>
    %699 = vector.extract_strided_slice %686 {offsets = [0, 256], sizes = [8, 128], strides = [1, 1]} : vector<8x512xf32> to vector<8x128xf32>
    %700 = math.tanh %699 : vector<8x128xf32>
    %701 = vector.extract_strided_slice %686 {offsets = [0, 384], sizes = [8, 128], strides = [1, 1]} : vector<8x512xf32> to vector<8x128xf32>
    %702 = arith.negf %701 : vector<8x128xf32>
    %703 = math.exp %702 : vector<8x128xf32>
    %cst_188 = arith.constant 1.000000e+00 : f32
    %704 = vector.broadcast %cst_188 : f32 to vector<8x128xf32>
    %705 = arith.addf %704, %703 : vector<8x128xf32>
    %706 = arith.divf %704, %705 : vector<8x128xf32>
    %707 = arith.mulf %698, %614 : vector<8x128xf32>
    %708 = arith.mulf %692, %700 : vector<8x128xf32>
    %709 = arith.addf %707, %708 : vector<8x128xf32>
    %710 = math.tanh %709 : vector<8x128xf32>
    %711 = arith.mulf %706, %710 : vector<8x128xf32>
    %712 = arith.subf %711, %610 : vector<8x128xf32>
    %713 = vector.broadcast %679 : vector<8x1xf32> to vector<8x128xf32>
    %714 = arith.mulf %713, %712 : vector<8x128xf32>
    %715 = arith.addf %610, %714 : vector<8x128xf32>
    %716 = arith.subf %709, %614 : vector<8x128xf32>
    %717 = vector.broadcast %679 : vector<8x1xf32> to vector<8x128xf32>
    %718 = arith.mulf %717, %716 : vector<8x128xf32>
    %719 = arith.addf %614, %718 : vector<8x128xf32>
    %c7_i32_189 = arith.constant 7 : i32
    %720 = arith.subi %c7_i32_189, %c6_i32 : i32
    %721 = arith.index_cast %720 : i32 to index
    %c0_190 = arith.constant 0 : index
    %c0_191 = arith.constant 0 : index
    %722 = vector.load %arg9[%721, %c0_190, %c0_191] : memref<8x8x512xf32, #tpu.memory_space<vmem>>, vector<1x8x512xf32>
    %723 = vector.shape_cast %722 : vector<1x8x512xf32> to vector<8x512xf32>
    %cst_192 = arith.constant dense<0.000000e+00> : vector<8x512xf32>
    %724 = tpu.matmul %649, %30, %cst_192 {dimension_numbers = #tpu.dot_dimension_numbers<[1], [0], [0], [1], [0, 0, 1, 1], [], []>} : vector<8x128xf32>, vector<128x512xf32>, vector<8x512xf32> -> vector<8x512xf32>
    %725 = arith.addf %723, %724 : vector<8x512xf32>
    %726 = vector.extract_strided_slice %725 {offsets = [0, 0], sizes = [8, 128], strides = [1, 1]} : vector<8x512xf32> to vector<8x128xf32>
    %727 = arith.negf %726 : vector<8x128xf32>
    %728 = math.exp %727 : vector<8x128xf32>
    %cst_193 = arith.constant 1.000000e+00 : f32
    %729 = vector.broadcast %cst_193 : f32 to vector<8x128xf32>
    %730 = arith.addf %729, %728 : vector<8x128xf32>
    %731 = arith.divf %729, %730 : vector<8x128xf32>
    %732 = vector.extract_strided_slice %725 {offsets = [0, 128], sizes = [8, 128], strides = [1, 1]} : vector<8x512xf32> to vector<8x128xf32>
    %733 = arith.negf %732 : vector<8x128xf32>
    %734 = math.exp %733 : vector<8x128xf32>
    %cst_194 = arith.constant 1.000000e+00 : f32
    %735 = vector.broadcast %cst_194 : f32 to vector<8x128xf32>
    %736 = arith.addf %735, %734 : vector<8x128xf32>
    %737 = arith.divf %735, %736 : vector<8x128xf32>
    %738 = vector.extract_strided_slice %725 {offsets = [0, 256], sizes = [8, 128], strides = [1, 1]} : vector<8x512xf32> to vector<8x128xf32>
    %739 = math.tanh %738 : vector<8x128xf32>
    %740 = vector.extract_strided_slice %725 {offsets = [0, 384], sizes = [8, 128], strides = [1, 1]} : vector<8x512xf32> to vector<8x128xf32>
    %741 = arith.negf %740 : vector<8x128xf32>
    %742 = math.exp %741 : vector<8x128xf32>
    %cst_195 = arith.constant 1.000000e+00 : f32
    %743 = vector.broadcast %cst_195 : f32 to vector<8x128xf32>
    %744 = arith.addf %743, %742 : vector<8x128xf32>
    %745 = arith.divf %743, %744 : vector<8x128xf32>
    %746 = arith.mulf %737, %653 : vector<8x128xf32>
    %747 = arith.mulf %731, %739 : vector<8x128xf32>
    %748 = arith.addf %746, %747 : vector<8x128xf32>
    %749 = math.tanh %748 : vector<8x128xf32>
    %750 = arith.mulf %745, %749 : vector<8x128xf32>
    %751 = arith.subf %750, %649 : vector<8x128xf32>
    %752 = vector.broadcast %681 : vector<8x1xf32> to vector<8x128xf32>
    %753 = arith.mulf %752, %751 : vector<8x128xf32>
    %754 = arith.addf %649, %753 : vector<8x128xf32>
    %755 = arith.subf %748, %653 : vector<8x128xf32>
    %756 = vector.broadcast %681 : vector<8x1xf32> to vector<8x128xf32>
    %757 = arith.mulf %756, %755 : vector<8x128xf32>
    %758 = arith.addf %653, %757 : vector<8x128xf32>
    %c13_i32_196 = arith.constant 13 : i32
    %759 = arith.cmpi slt, %669, %c13_i32_196 : i32
    %cst_197 = arith.constant 0.000000e+00 : f32
    %cst_198 = arith.constant 0xFF800000 : f32
    %760 = arith.select %759, %cst_197, %cst_198 : f32
    %c13_i32_199 = arith.constant 13 : i32
    %761 = arith.cmpi slt, %673, %c13_i32_199 : i32
    %cst_200 = arith.constant 0.000000e+00 : f32
    %cst_201 = arith.constant 0xFF800000 : f32
    %762 = arith.select %761, %cst_200, %cst_201 : f32
    %763 = vector.shape_cast %675 : vector<8x1xi1> to vector<8x1xi1>
    %764 = vector.broadcast %763 : vector<8x1xi1> to vector<8x128xi1>
    %765 = vector.broadcast %760 : f32 to vector<8x128xf32>
    %766 = arith.select %764, %711, %765 : vector<8x128xi1>, vector<8x128xf32>
    %767 = arith.maximumf %662, %766 : vector<8x128xf32>
    %768 = vector.shape_cast %677 : vector<8x1xi1> to vector<8x1xi1>
    %769 = vector.broadcast %768 : vector<8x1xi1> to vector<8x128xi1>
    %770 = vector.broadcast %762 : f32 to vector<8x128xf32>
    %771 = arith.select %769, %750, %770 : vector<8x128xi1>, vector<8x128xf32>
    %772 = arith.maximumf %667, %771 : vector<8x128xf32>
    %c7_i32_202 = arith.constant 7 : i32
    %c8_i32_203 = arith.constant 8 : i32
    %773 = arith.muli %arg0, %c8_i32_203 : i32
    %774 = arith.addi %773, %c7_i32_202 : i32
    %c1_i32_204 = arith.constant 1 : i32
    %775 = arith.subi %c1_i32_204, %arg0 : i32
    %c8_i32_205 = arith.constant 8 : i32
    %776 = arith.muli %775, %c8_i32_205 : i32
    %c7_i32_206 = arith.constant 7 : i32
    %777 = arith.subi %c7_i32_206, %c7_i32_202 : i32
    %778 = arith.addi %776, %777 : i32
    %779 = vector.broadcast %774 : i32 to vector<8x1xi32>
    %780 = arith.cmpi slt, %779, %31 : vector<8x1xi32>
    %781 = vector.broadcast %778 : i32 to vector<8x1xi32>
    %782 = arith.cmpi slt, %781, %31 : vector<8x1xi32>
    %783 = arith.extui %780 : vector<8x1xi1> to vector<8x1xi32>
    %784 = arith.sitofp %783 : vector<8x1xi32> to vector<8x1xf32>
    %785 = arith.extui %782 : vector<8x1xi1> to vector<8x1xi32>
    %786 = arith.sitofp %785 : vector<8x1xi32> to vector<8x1xf32>
    %787 = arith.index_cast %c7_i32_202 : i32 to index
    %c0_207 = arith.constant 0 : index
    %c0_208 = arith.constant 0 : index
    %788 = vector.load %arg8[%787, %c0_207, %c0_208] : memref<8x8x512xf32, #tpu.memory_space<vmem>>, vector<1x8x512xf32>
    %789 = vector.shape_cast %788 : vector<1x8x512xf32> to vector<8x512xf32>
    %cst_209 = arith.constant dense<0.000000e+00> : vector<8x512xf32>
    %790 = tpu.matmul %715, %28, %cst_209 {dimension_numbers = #tpu.dot_dimension_numbers<[1], [0], [0], [1], [0, 0, 1, 1], [], []>} : vector<8x128xf32>, vector<128x512xf32>, vector<8x512xf32> -> vector<8x512xf32>
    %791 = arith.addf %789, %790 : vector<8x512xf32>
    %792 = vector.extract_strided_slice %791 {offsets = [0, 0], sizes = [8, 128], strides = [1, 1]} : vector<8x512xf32> to vector<8x128xf32>
    %793 = arith.negf %792 : vector<8x128xf32>
    %794 = math.exp %793 : vector<8x128xf32>
    %cst_210 = arith.constant 1.000000e+00 : f32
    %795 = vector.broadcast %cst_210 : f32 to vector<8x128xf32>
    %796 = arith.addf %795, %794 : vector<8x128xf32>
    %797 = arith.divf %795, %796 : vector<8x128xf32>
    %798 = vector.extract_strided_slice %791 {offsets = [0, 128], sizes = [8, 128], strides = [1, 1]} : vector<8x512xf32> to vector<8x128xf32>
    %799 = arith.negf %798 : vector<8x128xf32>
    %800 = math.exp %799 : vector<8x128xf32>
    %cst_211 = arith.constant 1.000000e+00 : f32
    %801 = vector.broadcast %cst_211 : f32 to vector<8x128xf32>
    %802 = arith.addf %801, %800 : vector<8x128xf32>
    %803 = arith.divf %801, %802 : vector<8x128xf32>
    %804 = vector.extract_strided_slice %791 {offsets = [0, 256], sizes = [8, 128], strides = [1, 1]} : vector<8x512xf32> to vector<8x128xf32>
    %805 = math.tanh %804 : vector<8x128xf32>
    %806 = vector.extract_strided_slice %791 {offsets = [0, 384], sizes = [8, 128], strides = [1, 1]} : vector<8x512xf32> to vector<8x128xf32>
    %807 = arith.negf %806 : vector<8x128xf32>
    %808 = math.exp %807 : vector<8x128xf32>
    %cst_212 = arith.constant 1.000000e+00 : f32
    %809 = vector.broadcast %cst_212 : f32 to vector<8x128xf32>
    %810 = arith.addf %809, %808 : vector<8x128xf32>
    %811 = arith.divf %809, %810 : vector<8x128xf32>
    %812 = arith.mulf %803, %719 : vector<8x128xf32>
    %813 = arith.mulf %797, %805 : vector<8x128xf32>
    %814 = arith.addf %812, %813 : vector<8x128xf32>
    %815 = math.tanh %814 : vector<8x128xf32>
    %816 = arith.mulf %811, %815 : vector<8x128xf32>
    %817 = arith.subf %816, %715 : vector<8x128xf32>
    %818 = vector.broadcast %784 : vector<8x1xf32> to vector<8x128xf32>
    %819 = arith.mulf %818, %817 : vector<8x128xf32>
    %820 = arith.addf %715, %819 : vector<8x128xf32>
    %821 = arith.subf %814, %719 : vector<8x128xf32>
    %822 = vector.broadcast %784 : vector<8x1xf32> to vector<8x128xf32>
    %823 = arith.mulf %822, %821 : vector<8x128xf32>
    %824 = arith.addf %719, %823 : vector<8x128xf32>
    %c7_i32_213 = arith.constant 7 : i32
    %825 = arith.subi %c7_i32_213, %c7_i32_202 : i32
    %826 = arith.index_cast %825 : i32 to index
    %c0_214 = arith.constant 0 : index
    %c0_215 = arith.constant 0 : index
    %827 = vector.load %arg9[%826, %c0_214, %c0_215] : memref<8x8x512xf32, #tpu.memory_space<vmem>>, vector<1x8x512xf32>
    %828 = vector.shape_cast %827 : vector<1x8x512xf32> to vector<8x512xf32>
    %cst_216 = arith.constant dense<0.000000e+00> : vector<8x512xf32>
    %829 = tpu.matmul %754, %30, %cst_216 {dimension_numbers = #tpu.dot_dimension_numbers<[1], [0], [0], [1], [0, 0, 1, 1], [], []>} : vector<8x128xf32>, vector<128x512xf32>, vector<8x512xf32> -> vector<8x512xf32>
    %830 = arith.addf %828, %829 : vector<8x512xf32>
    %831 = vector.extract_strided_slice %830 {offsets = [0, 0], sizes = [8, 128], strides = [1, 1]} : vector<8x512xf32> to vector<8x128xf32>
    %832 = arith.negf %831 : vector<8x128xf32>
    %833 = math.exp %832 : vector<8x128xf32>
    %cst_217 = arith.constant 1.000000e+00 : f32
    %834 = vector.broadcast %cst_217 : f32 to vector<8x128xf32>
    %835 = arith.addf %834, %833 : vector<8x128xf32>
    %836 = arith.divf %834, %835 : vector<8x128xf32>
    %837 = vector.extract_strided_slice %830 {offsets = [0, 128], sizes = [8, 128], strides = [1, 1]} : vector<8x512xf32> to vector<8x128xf32>
    %838 = arith.negf %837 : vector<8x128xf32>
    %839 = math.exp %838 : vector<8x128xf32>
    %cst_218 = arith.constant 1.000000e+00 : f32
    %840 = vector.broadcast %cst_218 : f32 to vector<8x128xf32>
    %841 = arith.addf %840, %839 : vector<8x128xf32>
    %842 = arith.divf %840, %841 : vector<8x128xf32>
    %843 = vector.extract_strided_slice %830 {offsets = [0, 256], sizes = [8, 128], strides = [1, 1]} : vector<8x512xf32> to vector<8x128xf32>
    %844 = math.tanh %843 : vector<8x128xf32>
    %845 = vector.extract_strided_slice %830 {offsets = [0, 384], sizes = [8, 128], strides = [1, 1]} : vector<8x512xf32> to vector<8x128xf32>
    %846 = arith.negf %845 : vector<8x128xf32>
    %847 = math.exp %846 : vector<8x128xf32>
    %cst_219 = arith.constant 1.000000e+00 : f32
    %848 = vector.broadcast %cst_219 : f32 to vector<8x128xf32>
    %849 = arith.addf %848, %847 : vector<8x128xf32>
    %850 = arith.divf %848, %849 : vector<8x128xf32>
    %851 = arith.mulf %842, %758 : vector<8x128xf32>
    %852 = arith.mulf %836, %844 : vector<8x128xf32>
    %853 = arith.addf %851, %852 : vector<8x128xf32>
    %854 = math.tanh %853 : vector<8x128xf32>
    %855 = arith.mulf %850, %854 : vector<8x128xf32>
    %856 = arith.subf %855, %754 : vector<8x128xf32>
    %857 = vector.broadcast %786 : vector<8x1xf32> to vector<8x128xf32>
    %858 = arith.mulf %857, %856 : vector<8x128xf32>
    %859 = arith.addf %754, %858 : vector<8x128xf32>
    %860 = arith.subf %853, %758 : vector<8x128xf32>
    %861 = vector.broadcast %786 : vector<8x1xf32> to vector<8x128xf32>
    %862 = arith.mulf %861, %860 : vector<8x128xf32>
    %863 = arith.addf %758, %862 : vector<8x128xf32>
    %c13_i32_220 = arith.constant 13 : i32
    %864 = arith.cmpi slt, %774, %c13_i32_220 : i32
    %cst_221 = arith.constant 0.000000e+00 : f32
    %cst_222 = arith.constant 0xFF800000 : f32
    %865 = arith.select %864, %cst_221, %cst_222 : f32
    %c13_i32_223 = arith.constant 13 : i32
    %866 = arith.cmpi slt, %778, %c13_i32_223 : i32
    %cst_224 = arith.constant 0.000000e+00 : f32
    %cst_225 = arith.constant 0xFF800000 : f32
    %867 = arith.select %866, %cst_224, %cst_225 : f32
    %868 = vector.shape_cast %780 : vector<8x1xi1> to vector<8x1xi1>
    %869 = vector.broadcast %868 : vector<8x1xi1> to vector<8x128xi1>
    %870 = vector.broadcast %865 : f32 to vector<8x128xf32>
    %871 = arith.select %869, %816, %870 : vector<8x128xi1>, vector<8x128xf32>
    %872 = arith.maximumf %767, %871 : vector<8x128xf32>
    %873 = vector.shape_cast %782 : vector<8x1xi1> to vector<8x1xi1>
    %874 = vector.broadcast %873 : vector<8x1xi1> to vector<8x128xi1>
    %875 = vector.broadcast %867 : f32 to vector<8x128xf32>
    %876 = arith.select %874, %855, %875 : vector<8x128xi1>, vector<8x128xf32>
    %877 = arith.maximumf %772, %876 : vector<8x128xf32>
    %c8_i32_226 = arith.constant 8 : i32
    %c0_227 = arith.constant 0 : index
    %c0_228 = arith.constant 0 : index
    %878 = vector.load %arg10[%c0_227, %c0_228] : memref<8x128xf32, #tpu.memory_space<vmem>>, vector<8x128xf32>
    tpu.vector_store %arg10[%c0_227, %c0_228], %820 {strides = array<i32>} : memref<8x128xf32, #tpu.memory_space<vmem>>, vector<8x128xf32>,
    %c0_229 = arith.constant 0 : index
    %c0_230 = arith.constant 0 : index
    %879 = vector.load %arg11[%c0_229, %c0_230] : memref<8x128xf32, #tpu.memory_space<vmem>>, vector<8x128xf32>
    tpu.vector_store %arg11[%c0_229, %c0_230], %824 {strides = array<i32>} : memref<8x128xf32, #tpu.memory_space<vmem>>, vector<8x128xf32>,
    %c0_231 = arith.constant 0 : index
    %c0_232 = arith.constant 0 : index
    %880 = vector.load %arg12[%c0_231, %c0_232] : memref<8x128xf32, #tpu.memory_space<vmem>>, vector<8x128xf32>
    tpu.vector_store %arg12[%c0_231, %c0_232], %859 {strides = array<i32>} : memref<8x128xf32, #tpu.memory_space<vmem>>, vector<8x128xf32>,
    %c0_233 = arith.constant 0 : index
    %c0_234 = arith.constant 0 : index
    %881 = vector.load %arg13[%c0_233, %c0_234] : memref<8x128xf32, #tpu.memory_space<vmem>>, vector<8x128xf32>
    tpu.vector_store %arg13[%c0_233, %c0_234], %863 {strides = array<i32>} : memref<8x128xf32, #tpu.memory_space<vmem>>, vector<8x128xf32>,
    %c0_235 = arith.constant 0 : index
    %c0_236 = arith.constant 0 : index
    %882 = vector.load %arg7[%c0_235, %c0_236] : memref<8x256xf32, #tpu.memory_space<vmem>>, vector<8x128xf32>
    tpu.vector_store %arg7[%c0_235, %c0_236], %872 {strides = array<i32>} : memref<8x256xf32, #tpu.memory_space<vmem>>, vector<8x128xf32>,
    %c0_237 = arith.constant 0 : index
    %c128_238 = arith.constant 128 : index
    %883 = vector.load %arg7[%c0_237, %c128_238] : memref<8x256xf32, #tpu.memory_space<vmem>>, vector<8x128xf32>
    tpu.vector_store %arg7[%c0_237, %c128_238], %877 {strides = array<i32>} : memref<8x256xf32, #tpu.memory_space<vmem>>, vector<8x128xf32>,
    return
  }
  func.func @transform_0(%arg0: i32) -> (i32, i32, i32) {
    %c0_i32 = arith.constant 0 : i32
    %c0_i32_0 = arith.constant 0 : i32
    %c0_i32_1 = arith.constant 0 : i32
    return %arg0, %c0_i32, %c0_i32_0 : i32, i32, i32
  }
  func.func @transform_1(%arg0: i32) -> (i32, i32, i32) {
    %c1_i32 = arith.constant 1 : i32
    %0 = arith.subi %c1_i32, %arg0 : i32
    %c0_i32 = arith.constant 0 : i32
    %c0_i32_0 = arith.constant 0 : i32
    %c0_i32_1 = arith.constant 0 : i32
    return %0, %c0_i32, %c0_i32_0 : i32, i32, i32
  }
  func.func @transform_2(%arg0: i32) -> (i32, i32, i32) {
    %c0_i32 = arith.constant 0 : i32
    %c0_i32_0 = arith.constant 0 : i32
    %c0_i32_1 = arith.constant 0 : i32
    %c0_i32_2 = arith.constant 0 : i32
    return %c0_i32, %c0_i32_0, %c0_i32_1 : i32, i32, i32
  }
  func.func @transform_3(%arg0: i32) -> (i32, i32, i32) {
    %c0_i32 = arith.constant 0 : i32
    %c0_i32_0 = arith.constant 0 : i32
    %c0_i32_1 = arith.constant 0 : i32
    %c0_i32_2 = arith.constant 0 : i32
    return %c0_i32, %c0_i32_0, %c0_i32_1 : i32, i32, i32
  }
  func.func @transform_4(%arg0: i32) -> (i32, i32, i32) {
    %c0_i32 = arith.constant 0 : i32
    %c0_i32_0 = arith.constant 0 : i32
    %c0_i32_1 = arith.constant 0 : i32
    %c0_i32_2 = arith.constant 0 : i32
    return %c0_i32, %c0_i32_0, %c0_i32_1 : i32, i32, i32
  }
  func.func @transform_5(%arg0: i32) -> (i32, i32) {
    %c0_i32 = arith.constant 0 : i32
    %c0_i32_0 = arith.constant 0 : i32
    %c0_i32_1 = arith.constant 0 : i32
    return %c0_i32, %c0_i32_0 : i32, i32
  }
  func.func @transform_6(%arg0: i32) -> (i32, i32) {
    %c0_i32 = arith.constant 0 : i32
    %c0_i32_0 = arith.constant 0 : i32
    %c0_i32_1 = arith.constant 0 : i32
    return %c0_i32, %c0_i32_0 : i32, i32
  }
}

</mosaic_0001>

<llo_original>
// kernel: tpu_custom_call.1
$region0: #{tpu_custom_call.1}
  #allocation0 [shape = 'u32[]', space=smem, size = 0x4, offset = 0x4, fixed_abs, tag = 'smem constant byte address 0x4 - core index']
  #allocation1 [shape = 'u32[144,128]{1,0:T(1,128)}', space=vmem, size = 0x12000, scoped, tag = 'internal scratch']
  #allocation2 [shape = 'f32[8,8,512]{2,1,0:T(8,128)}', space=vmem, size = 0x20000, scoped, tag = 'scratch operand']
  #allocation3 [shape = 'f32[8,8,512]{2,1,0:T(8,128)}', space=vmem, size = 0x20000, scoped, tag = 'scratch operand']
  #allocation4 [shape = 'f32[8,128]{1,0:T(8,128)}', space=vmem, size = 0x1000, scoped, tag = 'scratch operand']
  #allocation5 [shape = 'f32[8,128]{1,0:T(8,128)}', space=vmem, size = 0x1000, scoped, tag = 'scratch operand']
  #allocation6 [shape = 'f32[8,128]{1,0:T(8,128)}', space=vmem, size = 0x1000, scoped, tag = 'scratch operand']
  #allocation7 [shape = 'f32[8,128]{1,0:T(8,128)}', space=vmem, size = 0x1000, scoped, tag = 'scratch operand']
  %s0 = inlined_call_operand.hbm [shape: f32[16,8,128], index: 0, kind: input, shape index: {}]
  %s1 = inlined_call_operand.hbm [shape: f32[16,8,128], index: 1, kind: input, shape index: {}]
  %s2 = inlined_call_operand.hbm [shape: f32[2,128,512], index: 2, kind: input, shape index: {}]
  %s3 = inlined_call_operand.hbm [shape: f32[2,128,512], index: 3, kind: input, shape index: {}]
  %s4 = inlined_call_operand.vmem [shape: f32[2,1,512], index: 4, kind: input, shape index: {}]
  %s5 = inlined_call_operand.vmem [shape: s32[8,1], index: 5, kind: input, shape index: {}]
  %s6 = inlined_call_operand.hbm [shape: f32[8,256], index: 6, kind: output, shape index: {}]
  %s7 = sld [smem:[#allocation0]]
  $region77: #{tpu_custom_call.1} parent=0
    _
  %s9 = ssub.s32 1, %s7
  %s10 = scalar_select 0, %s9, %s7
  $region1: #{tpu_custom_call.1} parent=0
    #allocation8 [shape = 'u8[65536]{0}', space=vmem, size = 0x10000, scoped, tag = 'input window, operand 0']
    #allocation9 [shape = 's32[2]{0}', space=sflag, size = 0x8, scoped, tag = 'scoped memory for tpu_custom_call.1']
    #allocation10 [shape = 's32[2]{0}', space=sflag, size = 0x8, scoped, tag = 'scoped memory for tpu_custom_call.1']
    #allocation11 [shape = 'u8[65536]{0}', space=vmem, size = 0x10000, scoped, tag = 'input window, operand 1']
    #allocation12 [shape = 's32[2]{0}', space=sflag, size = 0x8, scoped, tag = 'scoped memory for tpu_custom_call.1']
    #allocation13 [shape = 'u8[524288]{0}', space=vmem, size = 0x80000, scoped, tag = 'input window, operand 2, single buffered']
    #allocation14 [shape = 'u8[524288]{0}', space=vmem, size = 0x80000, scoped, tag = 'input window, operand 3, single buffered']
    #allocation15 [shape = 's32[1]{0}', space=sflag, size = 0x4, scoped, tag = 'scoped memory for tpu_custom_call.1']
    #allocation16 [shape = 'u8[8192]{0}', space=vmem, size = 0x2000, scoped, tag = 'output window, operand 0, single buffered']
    %11 = vsyncpa [#allocation9], 0
    %s12 = scalar_lea.sflag [#allocation9], 1
    %13 = vsyncpa %s12, 0
    %14 = vsyncpa [#allocation12], 0
    %s15 = scalar_lea.sflag [#allocation12], 1
    %16 = vsyncpa %s15, 0
    %17 = vsyncpa [#allocation15], 0
    %18 = vsyncpa [#allocation10], 0
    loop: start=0, step=1, limit=4
    $region2: #{tpu_custom_call.1} parent=1 // loop_pre_header
      _
    $region3: #{tpu_custom_call.1} parent=1 // loop_header
      %s20 = sphi 0, %s24
      %p21 = scmp.ge.s32.totalorder %s20, 4
      %s30 = sphi 0, %s32
      %s33 = sphi 0, %s30
      %s34 = sphi 0, %s33
      %s50 = sphi 0, %s34
      %s58 = sphi 0, %s60
      %s61 = sphi 0, %s58
      %s62 = sphi 0, %s61
      %s78 = sphi 0, %s62
      %s82 = sphi 0, %s82
      %s84 = sphi 0, %s82
      %s85 = sphi 0, %s84
      %s99 = sphi 0, %s85
      %s103 = sphi 0, %s103
      %s105 = sphi 0, %s103
      %s106 = sphi 0, %s105
      %s120 = sphi 0, %s106
      %s124 = sphi 0, %s124
      %s126 = sphi 0, %s124
      %s127 = sphi 0, %s126
      %s141 = sphi 0, %s127
      %s145 = sphi 0, %s145
      %s147 = sphi 0, %s145
      %s148 = sphi 0, %s147
      %s162 = sphi 0, %s148
      %s166 = sphi 0, %s166
      %s168 = sphi 0, %s166
      %s169 = sphi 0, %s168
      %s183 = sphi 0, %s169
    $region4: #{tpu_custom_call.1} parent=1 // loop_header_branch
      %23 = sbr.rel (%p21) target = $region8
    $region5: #{tpu_custom_call.1} parent=1 // loop_body
      %s25 = ssub.s32 %s20, 1
      %s26 = ssub.s32 %s20, 2
      %s27 = sadd.s32 %s20, 1
      %s28 = ssub.s32 %s20, %s27
      %p29 = scmp.eq.s32.totalorder %s28, 0
      %s31 = sadd.s32 %s30, 1
      %s32 = scalar_select %p29, %s30, %s31
      %p35 = pneg %p29
      %p36 = scmp.eq.s32.totalorder %s20, 1
      %p37 = por %p35, %p36
      %p38 = scmp.ne.s32.totalorder %s30, %s33
      %p39 = scmp.eq.s32.totalorder %s20, 0
      %p40 = por %p38, %p39
      %p41 = scmp.ne.s32.totalorder %s30, %s33
      %p42 = scmp.eq.s32.totalorder %s25, 1
      %p43 = por %p41, %p42
      %p44 = scmp.ne.s32.totalorder %s33, %s34
      %p45 = scmp.eq.s32.totalorder %s25, 0
      %p46 = por %p44, %p45
      %p47 = scmp.ne.s32.totalorder %s33, %s34
      %p48 = scmp.eq.s32.totalorder %s26, 1
      %p49 = por %p47, %p48
      %p51 = scmp.ne.s32.totalorder %s34, %s50
      %p52 = scmp.eq.s32.totalorder %s26, 0
      %p53 = por %p51, %p52
      %s54 = ssub.s32 1, %s20
      %s55 = ssub.s32 1, %s27
      %s56 = ssub.s32 %s54, %s55
      %p57 = scmp.eq.s32.totalorder %s56, 0
      %s59 = sadd.s32 %s58, 1
      %s60 = scalar_select %p57, %s58, %s59
      %p63 = pneg %p57
      %p64 = scmp.eq.s32.totalorder %s20, 1
      %p65 = por %p63, %p64
      %p66 = scmp.ne.s32.totalorder %s58, %s61
      %p67 = scmp.eq.s32.totalorder %s20, 0
      %p68 = por %p66, %p67
      %p69 = scmp.ne.s32.totalorder %s58, %s61
      %p70 = scmp.eq.s32.totalorder %s25, 1
      %p71 = por %p69, %p70
      %p72 = scmp.ne.s32.totalorder %s61, %s62
      %p73 = scmp.eq.s32.totalorder %s25, 0
      %p74 = por %p72, %p73
      %p75 = scmp.ne.s32.totalorder %s61, %s62
      %p76 = scmp.eq.s32.totalorder %s26, 1
      %p77 = por %p75, %p76
      %p79 = scmp.ne.s32.totalorder %s62, %s78
      %p80 = scmp.eq.s32.totalorder %s26, 0
      %p81 = por %p79, %p80
      %s83 = sadd.s32 %s82, 1
      %p86 = scmp.eq.s32.totalorder %s20, 1
      %p87 = scmp.ne.s32.totalorder %s82, %s84
      %p88 = scmp.eq.s32.totalorder %s20, 0
      %p89 = por %p87, %p88
      %p90 = scmp.ne.s32.totalorder %s82, %s84
      %p91 = scmp.eq.s32.totalorder %s25, 1
      %p92 = por %p90, %p91
      %p93 = scmp.ne.s32.totalorder %s84, %s85
      %p94 = scmp.eq.s32.totalorder %s25, 0
      %p95 = por %p93, %p94
      %p96 = scmp.ne.s32.totalorder %s84, %s85
      %p97 = scmp.eq.s32.totalorder %s26, 1
      %p98 = por %p96, %p97
      %p100 = scmp.ne.s32.totalorder %s85, %s99
      %p101 = scmp.eq.s32.totalorder %s26, 0
      %p102 = por %p100, %p101
      %s104 = sadd.s32 %s103, 1
      %p107 = scmp.eq.s32.totalorder %s20, 1
      %p108 = scmp.ne.s32.totalorder %s103, %s105
      %p109 = scmp.eq.s32.totalorder %s20, 0
      %p110 = por %p108, %p109
      %p111 = scmp.ne.s32.totalorder %s103, %s105
      %p112 = scmp.eq.s32.totalorder %s25, 1
      %p113 = por %p111, %p112
      %p114 = scmp.ne.s32.totalorder %s105, %s106
      %p115 = scmp.eq.s32.totalorder %s25, 0
      %p116 = por %p114, %p115
      %p117 = scmp.ne.s32.totalorder %s105, %s106
      %p118 = scmp.eq.s32.totalorder %s26, 1
      %p119 = por %p117, %p118
      %p121 = scmp.ne.s32.totalorder %s106, %s120
      %p122 = scmp.eq.s32.totalorder %s26, 0
      %p123 = por %p121, %p122
      %s125 = sadd.s32 %s124, 1
      %p128 = scmp.eq.s32.totalorder %s20, 1
      %p129 = scmp.ne.s32.totalorder %s124, %s126
      %p130 = scmp.eq.s32.totalorder %s20, 0
      %p131 = por %p129, %p130
      %p132 = scmp.ne.s32.totalorder %s124, %s126
      %p133 = scmp.eq.s32.totalorder %s25, 1
      %p134 = por %p132, %p133
      %p135 = scmp.ne.s32.totalorder %s126, %s127
      %p136 = scmp.eq.s32.totalorder %s25, 0
      %p137 = por %p135, %p136
      %p138 = scmp.ne.s32.totalorder %s126, %s127
      %p139 = scmp.eq.s32.totalorder %s26, 1
      %p140 = por %p138, %p139
      %p142 = scmp.ne.s32.totalorder %s127, %s141
      %p143 = scmp.eq.s32.totalorder %s26, 0
      %p144 = por %p142, %p143
      %s146 = sadd.s32 %s145, 1
      %p149 = scmp.eq.s32.totalorder %s20, 1
      %p150 = scmp.ne.s32.totalorder %s145, %s147
      %p151 = scmp.eq.s32.totalorder %s20, 0
      %p152 = por %p150, %p151
      %p153 = scmp.ne.s32.totalorder %s145, %s147
      %p154 = scmp.eq.s32.totalorder %s25, 1
      %p155 = por %p153, %p154
      %p156 = scmp.ne.s32.totalorder %s147, %s148
      %p157 = scmp.eq.s32.totalorder %s25, 0
      %p158 = por %p156, %p157
      %p159 = scmp.ne.s32.totalorder %s147, %s148
      %p160 = scmp.eq.s32.totalorder %s26, 1
      %p161 = por %p159, %p160
      %p163 = scmp.ne.s32.totalorder %s148, %s162
      %p164 = scmp.eq.s32.totalorder %s26, 0
      %p165 = por %p163, %p164
      %s167 = sadd.s32 %s166, 1
      %p170 = scmp.eq.s32.totalorder %s20, 1
      %p171 = scmp.ne.s32.totalorder %s166, %s168
      %p172 = scmp.eq.s32.totalorder %s20, 0
      %p173 = por %p171, %p172
      %p174 = scmp.ne.s32.totalorder %s166, %s168
      %p175 = scmp.eq.s32.totalorder %s25, 1
      %p176 = por %p174, %p175
      %p177 = scmp.ne.s32.totalorder %s168, %s169
      %p178 = scmp.eq.s32.totalorder %s25, 0
      %p179 = por %p177, %p178
      %p180 = scmp.ne.s32.totalorder %s168, %s169
      %p181 = scmp.eq.s32.totalorder %s26, 1
      %p182 = por %p180, %p181
      %p184 = scmp.ne.s32.totalorder %s169, %s183
      %p185 = scmp.eq.s32.totalorder %s26, 0
      %p186 = por %p184, %p185
      %p187 = scmp.le.s32.totalorder 1, %s20
      %p188 = scmp.lt.s32.totalorder %s20, 3
      %p189 = pnand %p187, %p188
      %p190 = pneg %p189
      // Predicated region
      $region9: #{tpu_custom_call.1} parent=5 // pred_check
        _
      $region10: #{tpu_custom_call.1} parent=5 // pred_check_branch
        %192 = sbr.rel (%p189) target = $region12
      $region11: #{tpu_custom_call.1} parent=5 // pred_region
        %s193 = ssub.s32 %s20, 1
        // Predicated region
        $region13: #{tpu_custom_call.1} parent=11 // pred_check
          %p194 = pneg %p95
        $region14: #{tpu_custom_call.1} parent=11 // pred_check_branch
          %196 = sbr.rel (%p194) target = $region16
        $region15: #{tpu_custom_call.1} parent=11 // pred_region
          %s198 = ssub.s32 16384, 16384
          %199 = vsyncadd [#allocation12], %s198
          %s200 = sshll.u32 [#allocation13], 4
          %s201 = int_to_ptr.vmem [resolvable:$true] %s200
          %206 = dma.hbm_to_vmem [thread:$0]  %s2, 16384, %s201, [#allocation12], 512, 512, 32
        $region16: #{tpu_custom_call.1} parent=11 // pred_fallthru
          _
        // Predicated region
        $region17: #{tpu_custom_call.1} parent=11 // pred_check
          %p207 = pneg %p116
        $region18: #{tpu_custom_call.1} parent=11 // pred_check_branch
          %209 = sbr.rel (%p207) target = $region20
        $region19: #{tpu_custom_call.1} parent=11 // pred_region
          %s211 = ssub.s32 16384, 16384
          %212 = vsyncadd [#allocation15], %s211
          %s213 = sshll.u32 [#allocation14], 4
          %s214 = int_to_ptr.vmem [resolvable:$true] %s213
          %219 = dma.hbm_to_vmem [thread:$0]  %s3, 16384, %s214, [#allocation15], 512, 512, 32
        $region20: #{tpu_custom_call.1} parent=11 // pred_fallthru
          _
        // Predicated region
        $region21: #{tpu_custom_call.1} parent=11 // pred_check
          %p220 = pneg %p137
        $region22: #{tpu_custom_call.1} parent=11 // pred_check_branch
          %222 = sbr.rel (%p220) target = $region24
        $region23: #{tpu_custom_call.1} parent=11 // pred_region
          _
        $region24: #{tpu_custom_call.1} parent=11 // pred_fallthru
          _
        // Predicated region
        $region25: #{tpu_custom_call.1} parent=11 // pred_check
          %p223 = pneg %p158
        $region26: #{tpu_custom_call.1} parent=11 // pred_check_branch
          %225 = sbr.rel (%p223) target = $region28
        $region27: #{tpu_custom_call.1} parent=11 // pred_region
          _
        $region28: #{tpu_custom_call.1} parent=11 // pred_fallthru
          _
      $region12: #{tpu_custom_call.1} parent=5 // pred_fallthru
        _
      %p226 = scmp.lt.s32.totalorder %s20, 2
      // Predicated region
      $region29: #{tpu_custom_call.1} parent=5 // pred_check
        %p227 = pneg %p226
      $region30: #{tpu_custom_call.1} parent=5 // pred_check_branch
        %229 = sbr.rel (%p227) target = $region32
      $region31: #{tpu_custom_call.1} parent=5 // pred_region
        // Predicated region
        $region33: #{tpu_custom_call.1} parent=31 // pred_check
          %p230 = pneg %p40
        $region34: #{tpu_custom_call.1} parent=31 // pred_check_branch
          %232 = sbr.rel (%p230) target = $region36
        $region35: #{tpu_custom_call.1} parent=31 // pred_region
          %s233 = sand.u32 %s30, 1
          %s234 = scalar_lea.sflag [#allocation9], %s233
          %s235 = sand.u32 %s30, 1
          %s236 = smul.addr %s235, 64
          %s237 = scalar_lea.vmem [#allocation8], %s236
          %s238 = smul.u32 8, %s20
          %s240 = ssub.s32 1024, 1024
          %241 = vsyncadd %s234, %s240
          %s242 = smul.addr %s238, 128
          %s243 = scalar_lea.hbm %s0, %s242
          %s244 = sshll.u32 %s237, 4
          %s245 = int_to_ptr.vmem [resolvable:$true] %s244
          %250 = dma.hbm_to_vmem [thread:$0]  %s243, 1024, %s245, %s234, 128, 128, 8
        $region36: #{tpu_custom_call.1} parent=31 // pred_fallthru
          _
        // Predicated region
        $region37: #{tpu_custom_call.1} parent=31 // pred_check
          %p251 = pneg %p68
        $region38: #{tpu_custom_call.1} parent=31 // pred_check_branch
          %253 = sbr.rel (%p251) target = $region40
        $region39: #{tpu_custom_call.1} parent=31 // pred_region
          %s254 = sand.u32 %s20, 1
          %s255 = scalar_lea.sflag [#allocation12], %s254
          %s256 = sand.u32 %s58, 1
          %s257 = smul.addr %s256, 64
          %s258 = scalar_lea.vmem [#allocation11], %s257
          %s259 = ssub.s32 1, %s20
          %s260 = smul.u32 8, %s259
          %s262 = ssub.s32 1024, 1024
          %263 = vsyncadd %s255, %s262
          %s264 = smul.addr %s260, 128
          %s265 = scalar_lea.hbm %s1, %s264
          %s266 = sshll.u32 %s258, 4
          %s267 = int_to_ptr.vmem [resolvable:$true] %s266
          %272 = dma.hbm_to_vmem [thread:$0]  %s265, 1024, %s267, %s255, 128, 128, 8
        $region40: #{tpu_custom_call.1} parent=31 // pred_fallthru
          _
      $region32: #{tpu_custom_call.1} parent=5 // pred_fallthru
        _
      %p273 = scmp.le.s32.totalorder 1, %s20
      %p274 = scmp.lt.s32.totalorder %s20, 3
      %p275 = pnand %p273, %p274
      %p276 = pneg %p275
      // Predicated region
      $region41: #{tpu_custom_call.1} parent=5 // pred_check
        _
      $region42: #{tpu_custom_call.1} parent=5 // pred_check_branch
        %278 = sbr.rel (%p275) target = $region44
      $region43: #{tpu_custom_call.1} parent=5 // pred_region
        %s279 = ssub.s32 %s20, 1
        %s280 = sand.u32 %s33, 1
        %s281 = scalar_lea.sflag [#allocation9], %s280
        %s282 = sand.u32 %s33, 1
        %s283 = smul.addr %s282, 64
        %s284 = scalar_lea.vmem [#allocation8], %s283
        // Predicated region
        $region45: #{tpu_custom_call.1} parent=43 // pred_check
          %p285 = pneg %p46
        $region46: #{tpu_custom_call.1} parent=43 // pred_check_branch
          %287 = sbr.rel (%p285) target = $region48
        $region47: #{tpu_custom_call.1} parent=43 // pred_region
          %288 = dma.done %s281, 1024
        $region48: #{tpu_custom_call.1} parent=43 // pred_fallthru
          _
        %s289 = sand.u32 %s25, 1
        %s290 = scalar_lea.sflag [#allocation12], %s289
        %s291 = sand.u32 %s61, 1
        %s292 = smul.addr %s291, 64
        %s293 = scalar_lea.vmem [#allocation11], %s292
        // Predicated region
        $region49: #{tpu_custom_call.1} parent=43 // pred_check
          %p294 = pneg %p74
        $region50: #{tpu_custom_call.1} parent=43 // pred_check_branch
          %296 = sbr.rel (%p294) target = $region52
        $region51: #{tpu_custom_call.1} parent=43 // pred_region
          %297 = dma.done %s290, 1024
        $region52: #{tpu_custom_call.1} parent=43 // pred_fallthru
          _
        // Predicated region
        $region53: #{tpu_custom_call.1} parent=43 // pred_check
          %p298 = pneg %p95
        $region54: #{tpu_custom_call.1} parent=43 // pred_check_branch
          %300 = sbr.rel (%p298) target = $region56
        $region55: #{tpu_custom_call.1} parent=43 // pred_region
          %301 = dma.done [#allocation12], 16384
        $region56: #{tpu_custom_call.1} parent=43 // pred_fallthru
          _
        // Predicated region
        $region57: #{tpu_custom_call.1} parent=43 // pred_check
          %p302 = pneg %p116
        $region58: #{tpu_custom_call.1} parent=43 // pred_check_branch
          %304 = sbr.rel (%p302) target = $region60
        $region59: #{tpu_custom_call.1} parent=43 // pred_region
          %305 = dma.done [#allocation15], 16384
        $region60: #{tpu_custom_call.1} parent=43 // pred_fallthru
          _
        %s306 = sand.u32 %s33, 1
        %s307 = scalar_lea.sflag [#allocation9], %s306
        %s308 = sand.u32 %s33, 1
        %s309 = smul.addr %s308, 64
        %s310 = scalar_lea.vmem [#allocation8], %s309
        %p311 = pneg %p46
        %p312 = pneg %p43
        %s313 = sand.u32 %s25, 1
        %s314 = scalar_lea.sflag [#allocation12], %s313
        %s315 = sand.u32 %s61, 1
        %s316 = smul.addr %s315, 64
        %s317 = scalar_lea.vmem [#allocation11], %s316
        %p318 = pneg %p74
        %p319 = pneg %p71
        %p320 = pneg %p95
        %p321 = pneg %p92
        %p322 = pneg %p116
        %p323 = pneg %p113
        %p324 = pneg %p137
        %p325 = pneg %p134
        %p326 = pneg %p158
        %p327 = pneg %p155
        %p328 = pneg %p179
        %p329 = pneg %p176
        %s330 = smul.u32 8, %s25
        %s331 = ssub.s32 1, %s25
        %s332 = smul.u32 8, %s331
        %p333 = scmp.eq.s32.totalorder %s25, 0
        // Predicated region
        $region61: #{tpu_custom_call.1} parent=43 // pred_check
          %p334 = pneg %p333
        $region62: #{tpu_custom_call.1} parent=43 // pred_check_branch
          %336 = sbr.rel (%p334) target = $region64
        $region63: #{tpu_custom_call.1} parent=43 // pred_region
          %337 = vst [vmem:[#allocation4] sm:$0xff] 0.0
          %338 = vst [vmem:[#allocation5] sm:$0xff] 0.0
          %339 = vst [vmem:[#allocation6] sm:$0xff] 0.0
          %340 = vst [vmem:[#allocation7] sm:$0xff] 0.0
          %341 = vst [vmem:[#allocation16] sm:$0xff] -inf
          %342 = vst [vmem:[#allocation16 + $0x8] sm:$0xff] -inf
        $region64: #{tpu_custom_call.1} parent=43 // pred_fallthru
          _
        %v343 = vld [vmem:[%s284] sm:$0xff]
        %v344 = vld [vmem:[%s284 + $0x8] sm:$0xff]
        %v345 = vld [vmem:[%s284 + $0x10] sm:$0xff]
        %v346 = vld [vmem:[%s284 + $0x18] sm:$0xff]
        %v347 = vld [vmem:[%s284 + $0x20] sm:$0xff]
        %v348 = vld [vmem:[%s284 + $0x28] sm:$0xff]
        %v349 = vld [vmem:[%s284 + $0x30] sm:$0xff]
        %v350 = vld [vmem:[%s284 + $0x38] sm:$0xff]
        %v351 = vld [vmem:[%s293] sm:$0xff]
        %v352 = vld [vmem:[%s293 + $0x8] sm:$0xff]
        %v353 = vld [vmem:[%s293 + $0x10] sm:$0xff]
        %v354 = vld [vmem:[%s293 + $0x18] sm:$0xff]
        %v355 = vld [vmem:[%s293 + $0x20] sm:$0xff]
        %v356 = vld [vmem:[%s293 + $0x28] sm:$0xff]
        %v357 = vld [vmem:[%s293 + $0x30] sm:$0xff]
        %v358 = vld [vmem:[%s293 + $0x38] sm:$0xff]
        %v359 = vld [vmem:[#allocation13] sm:$0xff]
        %v360 = vld [vmem:[#allocation13 + $0x8] sm:$0xff]
        %v361 = vld [vmem:[#allocation13 + $0x10] sm:$0xff]
        %v362 = vld [vmem:[#allocation13 + $0x18] sm:$0xff]
        %v363 = vld [vmem:[#allocation13 + $0x20] sm:$0xff]
        %v364 = vld [vmem:[#allocation13 + $0x28] sm:$0xff]
        %v365 = vld [vmem:[#allocation13 + $0x30] sm:$0xff]
        %v366 = vld [vmem:[#allocation13 + $0x38] sm:$0xff]
        %v367 = vld [vmem:[#allocation13 + $0x40] sm:$0xff]
        %v368 = vld [vmem:[#allocation13 + $0x48] sm:$0xff]
        %v369 = vld [vmem:[#allocation13 + $0x50] sm:$0xff]
        %v370 = vld [vmem:[#allocation13 + $0x58] sm:$0xff]
        %v371 = vld [vmem:[#allocation13 + $0x60] sm:$0xff]
        %v372 = vld [vmem:[#allocation13 + $0x68] sm:$0xff]
        %v373 = vld [vmem:[#allocation13 + $0x70] sm:$0xff]
        %v374 = vld [vmem:[#allocation13 + $0x78] sm:$0xff]
        %v375 = vld [vmem:[#allocation13 + $0x80] sm:$0xff]
        %v376 = vld [vmem:[#allocation13 + $0x88] sm:$0xff]
        %v377 = vld [vmem:[#allocation13 + $0x90] sm:$0xff]
        %v378 = vld [vmem:[#allocation13 + $0x98] sm:$0xff]
        %v379 = vld [vmem:[#allocation13 + $0xa0] sm:$0xff]
        %v380 = vld [vmem:[#allocation13 + $0xa8] sm:$0xff]
        %v381 = vld [vmem:[#allocation13 + $0xb0] sm:$0xff]
        %v382 = vld [vmem:[#allocation13 + $0xb8] sm:$0xff]
        %v383 = vld [vmem:[#allocation13 + $0xc0] sm:$0xff]
        %v384 = vld [vmem:[#allocation13 + $0xc8] sm:$0xff]
        %v385 = vld [vmem:[#allocation13 + $0xd0] sm:$0xff]
        %v386 = vld [vmem:[#allocation13 + $0xd8] sm:$0xff]
        %v387 = vld [vmem:[#allocation13 + $0xe0] sm:$0xff]
        %v388 = vld [vmem:[#allocation13 + $0xe8] sm:$0xff]
        %v389 = vld [vmem:[#allocation13 + $0xf0] sm:$0xff]
        %v390 = vld [vmem:[#allocation13 + $0xf8] sm:$0xff]
        %v391 = vld [vmem:[#allocation13 + $0x100] sm:$0xff]
        %v392 = vld [vmem:[#allocation13 + $0x108] sm:$0xff]
        %v393 = vld [vmem:[#allocation13 + $0x110] sm:$0xff]
        %v394 = vld [vmem:[#allocation13 + $0x118] sm:$0xff]
        %v395 = vld [vmem:[#allocation13 + $0x120] sm:$0xff]
        %v396 = vld [vmem:[#allocation13 + $0x128] sm:$0xff]
        %v397 = vld [vmem:[#allocation13 + $0x130] sm:$0xff]
        %v398 = vld [vmem:[#allocation13 + $0x138] sm:$0xff]
        %v399 = vld [vmem:[#allocation13 + $0x140] sm:$0xff]
        %v400 = vld [vmem:[#allocation13 + $0x148] sm:$0xff]
        %v401 = vld [vmem:[#allocation13 + $0x150] sm:$0xff]
        %v402 = vld [vmem:[#allocation13 + $0x158] sm:$0xff]
        %v403 = vld [vmem:[#allocation13 + $0x160] sm:$0xff]
        %v404 = vld [vmem:[#allocation13 + $0x168] sm:$0xff]
        %v405 = vld [vmem:[#allocation13 + $0x170] sm:$0xff]
        %v406 = vld [vmem:[#allocation13 + $0x178] sm:$0xff]
        %v407 = vld [vmem:[#allocation13 + $0x180] sm:$0xff]
        %v408 = vld [vmem:[#allocation13 + $0x188] sm:$0xff]
        %v409 = vld [vmem:[#allocation13 + $0x190] sm:$0xff]
        %v410 = vld [vmem:[#allocation13 + $0x198] sm:$0xff]
        %v411 = vld [vmem:[#allocation13 + $0x1a0] sm:$0xff]
        %v412 = vld [vmem:[#allocation13 + $0x1a8] sm:$0xff]
        %v413 = vld [vmem:[#allocation13 + $0x1b0] sm:$0xff]
        %v414 = vld [vmem:[#allocation13 + $0x1b8] sm:$0xff]
        %v415 = vld [vmem:[#allocation13 + $0x1c0] sm:$0xff]
        %v416 = vld [vmem:[#allocation13 + $0x1c8] sm:$0xff]
        %v417 = vld [vmem:[#allocation13 + $0x1d0] sm:$0xff]
        %v418 = vld [vmem:[#allocation13 + $0x1d8] sm:$0xff]
        %v419 = vld [vmem:[#allocation13 + $0x1e0] sm:$0xff]
        %v420 = vld [vmem:[#allocation13 + $0x1e8] sm:$0xff]
        %v421 = vld [vmem:[#allocation13 + $0x1f0] sm:$0xff]
        %v422 = vld [vmem:[#allocation13 + $0x1f8] sm:$0xff]
        %423 = vmatprep.subr.mxu0 %v360
        %424 = vmatpush1.msra.mxu0 %v359
        %425 = vmatprep.subr.mxu0 %v364
        %426 = vmatpush1.msra.mxu0 %v363
        %427 = vmatprep.subr.mxu0 %v368
        %428 = vmatpush1.msra.mxu0 %v367
        %429 = vmatprep.subr.mxu0 %v372
        %430 = vmatpush1.msra.mxu0 %v371
        %431 = vmatprep.subr.mxu0 %v376
        %432 = vmatpush1.msra.mxu0 %v375
        %433 = vmatprep.subr.mxu0 %v380
        %434 = vmatpush1.msra.mxu0 %v379
        %435 = vmatprep.subr.mxu0 %v384
        %436 = vmatpush1.msra.mxu0 %v383
        %437 = vmatprep.subr.mxu0 %v388
        %438 = vmatpush1.msra.mxu0 %v387
        %439 = vmatprep.subr.mxu0 %v392
        %440 = vmatpush1.msra.mxu0 %v391
        %441 = vmatprep.subr.mxu0 %v396
        %442 = vmatpush1.msra.mxu0 %v395
        %443 = vmatprep.subr.mxu0 %v400
        %444 = vmatpush1.msra.mxu0 %v399
        %445 = vmatprep.subr.mxu0 %v404
        %446 = vmatpush1.msra.mxu0 %v403
        %447 = vmatprep.subr.mxu0 %v408
        %448 = vmatpush1.msra.mxu0 %v407
        %449 = vmatprep.subr.mxu0 %v412
        %450 = vmatpush1.msra.mxu0 %v411
        %451 = vmatprep.subr.mxu0 %v416
        %452 = vmatpush1.msra.mxu0 %v415
        %453 = vmatprep.subr.mxu0 %v420
        %454 = vmatpush1.msra.mxu0 %v419
        %455 = vmatprep.subr.mxu0 0.0
        %456 = vmatpush1.msra.mxu0 0.0
        %457 = vmatprep.subr.mxu0 0.0
        %458 = vmatpush1.msra.mxu0 0.0
        %459 = vmatprep.subr.mxu0 0.0
        %460 = vmatpush1.msra.mxu0 0.0
        %461 = vmatprep.subr.mxu0 0.0
        %462 = vmatpush1.msra.mxu0 0.0
        %463 = vmatprep.subr.mxu0 0.0
        %464 = vmatpush1.msra.mxu0 0.0
        %465 = vmatprep.subr.mxu0 0.0
        %466 = vmatpush1.msra.mxu0 0.0
        %467 = vmatprep.subr.mxu0 0.0
        %468 = vmatpush1.msra.mxu0 0.0
        %469 = vmatprep.subr.mxu0 0.0
        %470 = vmatpush1.msra.mxu0 0.0
        %471 = vmatprep.subr.mxu0 0.0
        %472 = vmatpush1.msra.mxu0 0.0
        %473 = vmatprep.subr.mxu0 0.0
        %474 = vmatpush1.msra.mxu0 0.0
        %475 = vmatprep.subr.mxu0 0.0
        %476 = vmatpush1.msra.mxu0 0.0
        %477 = vmatprep.subr.mxu0 0.0
        %478 = vmatpush1.msra.mxu0 0.0
        %479 = vmatprep.subr.mxu0 0.0
        %480 = vmatpush1.msra.mxu0 0.0
        %481 = vmatprep.subr.mxu0 0.0
        %482 = vmatpush1.msra.mxu0 0.0
        %483 = vmatprep.subr.mxu0 0.0
        %484 = vmatpush1.msra.mxu0 0.0
        %485 = vmatprep.subr.mxu0 0.0
        %486 = vmatpush1.msra.mxu0 0.0
        %487 = vmatprep.mubr.f32.mxu0 0.0
        %488 = vmatmul.mubr.f32.gmra.mrb[0].mxu0 %v343
        %v489 = vpop.f32.mrb[0].mxu0
        %v490 = vadd.f32 0.0, %v489
        %v491 = vpop.f32.mrb[0].mxu0
        %v492 = vadd.f32 0.0, %v491
        %493 = vmatprep.mubr.f32.mxu0 0.0
        %494 = vmatmul.mubr.f32.gmra.mrb[0].mxu0 %v344
        %v495 = vpop.f32.mrb[0].mxu0
        %v496 = vadd.f32 0.0, %v495
        %v497 = vpop.f32.mrb[0].mxu0
        %v498 = vadd.f32 0.0, %v497
        %499 = vmatprep.mubr.f32.mxu0 0.0
        %500 = vmatmul.mubr.f32.gmra.mrb[0].mxu0 %v345
        %v501 = vpop.f32.mrb[0].mxu0
        %v502 = vadd.f32 0.0, %v501
        %v503 = vpop.f32.mrb[0].mxu0
        %v504 = vadd.f32 0.0, %v503
        %505 = vmatprep.mubr.f32.mxu0 0.0
        %506 = vmatmul.mubr.f32.gmra.mrb[0].mxu0 %v346
        %v507 = vpop.f32.mrb[0].mxu0
        %v508 = vadd.f32 0.0, %v507
        %v509 = vpop.f32.mrb[0].mxu0
        %v510 = vadd.f32 0.0, %v509
        %511 = vmatprep.mubr.f32.mxu0 0.0
        %512 = vmatmul.mubr.f32.gmra.mrb[0].mxu0 %v347
        %v513 = vpop.f32.mrb[0].mxu0
        %v514 = vadd.f32 0.0, %v513
        %v515 = vpop.f32.mrb[0].mxu0
        %v516 = vadd.f32 0.0, %v515
        %517 = vmatprep.mubr.f32.mxu0 0.0
        %518 = vmatmul.mubr.f32.gmra.mrb[0].mxu0 %v348
        %v519 = vpop.f32.mrb[0].mxu0
        %v520 = vadd.f32 0.0, %v519
        %v521 = vpop.f32.mrb[0].mxu0
        %v522 = vadd.f32 0.0, %v521
        %523 = vmatprep.mubr.f32.mxu0 0.0
        %524 = vmatmul.mubr.f32.gmra.mrb[0].mxu0 %v349
        %v525 = vpop.f32.mrb[0].mxu0
        %v526 = vadd.f32 0.0, %v525
        %v527 = vpop.f32.mrb[0].mxu0
        %v528 = vadd.f32 0.0, %v527
        %529 = vmatprep.mubr.f32.mxu0 0.0
        %530 = vmatmul.mubr.f32.gmra.mrb[0].mxu0 %v350
        %v531 = vpop.f32.mrb[0].mxu0
        %v532 = vadd.f32 0.0, %v531
        %v533 = vpop.f32.mrb[0].mxu0
        %v534 = vadd.f32 0.0, %v533
        %535 = vdwg.mxu0
        %536 = vmatprep.subr.mxu0 %v362
        %537 = vmatpush1.msra.mxu0 %v361
        %538 = vmatprep.subr.mxu0 %v366
        %539 = vmatpush1.msra.mxu0 %v365
        %540 = vmatprep.subr.mxu0 %v370
        %541 = vmatpush1.msra.mxu0 %v369
        %542 = vmatprep.subr.mxu0 %v374
        %543 = vmatpush1.msra.mxu0 %v373
        %544 = vmatprep.subr.mxu0 %v378
        %545 = vmatpush1.msra.mxu0 %v377
        %546 = vmatprep.subr.mxu0 %v382
        %547 = vmatpush1.msra.mxu0 %v381
        %548 = vmatprep.subr.mxu0 %v386
        %549 = vmatpush1.msra.mxu0 %v385
        %550 = vmatprep.subr.mxu0 %v390
        %551 = vmatpush1.msra.mxu0 %v389
        %552 = vmatprep.subr.mxu0 %v394
        %553 = vmatpush1.msra.mxu0 %v393
        %554 = vmatprep.subr.mxu0 %v398
        %555 = vmatpush1.msra.mxu0 %v397
        %556 = vmatprep.subr.mxu0 %v402
        %557 = vmatpush1.msra.mxu0 %v401
        %558 = vmatprep.subr.mxu0 %v406
        %559 = vmatpush1.msra.mxu0 %v405
        %560 = vmatprep.subr.mxu0 %v410
        %561 = vmatpush1.msra.mxu0 %v409
        %562 = vmatprep.subr.mxu0 %v414
        %563 = vmatpush1.msra.mxu0 %v413
        %564 = vmatprep.subr.mxu0 %v418
        %565 = vmatpush1.msra.mxu0 %v417
        %566 = vmatprep.subr.mxu0 %v422
        %567 = vmatpush1.msra.mxu0 %v421
        %568 = vmatprep.subr.mxu0 0.0
        %569 = vmatpush1.msra.mxu0 0.0
        %570 = vmatprep.subr.mxu0 0.0
        %571 = vmatpush1.msra.mxu0 0.0
        %572 = vmatprep.subr.mxu0 0.0
        %573 = vmatpush1.msra.mxu0 0.0
        %574 = vmatprep.subr.mxu0 0.0
        %575 = vmatpush1.msra.mxu0 0.0
        %576 = vmatprep.subr.mxu0 0.0
        %577 = vmatpush1.msra.mxu0 0.0
        %578 = vmatprep.subr.mxu0 0.0
        %579 = vmatpush1.msra.mxu0 0.0
        %580 = vmatprep.subr.mxu0 0.0
        %581 = vmatpush1.msra.mxu0 0.0
        %582 = vmatprep.subr.mxu0 0.0
        %583 = vmatpush1.msra.mxu0 0.0
        %584 = vmatprep.subr.mxu0 0.0
        %585 = vmatpush1.msra.mxu0 0.0
        %586 = vmatprep.subr.mxu0 0.0
        %587 = vmatpush1.msra.mxu0 0.0
        %588 = vmatprep.subr.mxu0 0.0
        %589 = vmatpush1.msra.mxu0 0.0
        %590 = vmatprep.subr.mxu0 0.0
        %591 = vmatpush1.msra.mxu0 0.0
        %592 = vmatprep.subr.mxu0 0.0
        %593 = vmatpush1.msra.mxu0 0.0
        %594 = vmatprep.subr.mxu0 0.0
        %595 = vmatpush1.msra.mxu0 0.0
        %596 = vmatprep.subr.mxu0 0.0
        %597 = vmatpush1.msra.mxu0 0.0
        %598 = vmatprep.subr.mxu0 0.0
        %599 = vmatpush1.msra.mxu0 0.0
        %600 = vmatprep.mubr.f32.mxu0 0.0
        %601 = vmatmul.mubr.f32.gmra.mrb[0].mxu0 %v343
        %v602 = vpop.f32.mrb[0].mxu0
        %v603 = vadd.f32 0.0, %v602
        %v604 = vpop.f32.mrb[0].mxu0
        %v605 = vadd.f32 0.0, %v604
        %606 = vmatprep.mubr.f32.mxu0 0.0
        %607 = vmatmul.mubr.f32.gmra.mrb[0].mxu0 %v344
        %v608 = vpop.f32.mrb[0].mxu0
        %v609 = vadd.f32 0.0, %v608
        %v610 = vpop.f32.mrb[0].mxu0
        %v611 = vadd.f32 0.0, %v610
        %612 = vmatprep.mubr.f32.mxu0 0.0
        %613 = vmatmul.mubr.f32.gmra.mrb[0].mxu0 %v345
        %v614 = vpop.f32.mrb[0].mxu0
        %v615 = vadd.f32 0.0, %v614
        %v616 = vpop.f32.mrb[0].mxu0
        %v617 = vadd.f32 0.0, %v616
        %618 = vmatprep.mubr.f32.mxu0 0.0
        %619 = vmatmul.mubr.f32.gmra.mrb[0].mxu0 %v346
        %v620 = vpop.f32.mrb[0].mxu0
        %v621 = vadd.f32 0.0, %v620
        %v622 = vpop.f32.mrb[0].mxu0
        %v623 = vadd.f32 0.0, %v622
        %624 = vmatprep.mubr.f32.mxu0 0.0
        %625 = vmatmul.mubr.f32.gmra.mrb[0].mxu0 %v347
        %v626 = vpop.f32.mrb[0].mxu0
        %v627 = vadd.f32 0.0, %v626
        %v628 = vpop.f32.mrb[0].mxu0
        %v629 = vadd.f32 0.0, %v628
        %630 = vmatprep.mubr.f32.mxu0 0.0
        %631 = vmatmul.mubr.f32.gmra.mrb[0].mxu0 %v348
        %v632 = vpop.f32.mrb[0].mxu0
        %v633 = vadd.f32 0.0, %v632
        %v634 = vpop.f32.mrb[0].mxu0
        %v635 = vadd.f32 0.0, %v634
        %636 = vmatprep.mubr.f32.mxu0 0.0
        %637 = vmatmul.mubr.f32.gmra.mrb[0].mxu0 %v349
        %v638 = vpop.f32.mrb[0].mxu0
        %v639 = vadd.f32 0.0, %v638
        %v640 = vpop.f32.mrb[0].mxu0
        %v641 = vadd.f32 0.0, %v640
        %642 = vmatprep.mubr.f32.mxu0 0.0
        %643 = vmatmul.mubr.f32.gmra.mrb[0].mxu0 %v350
        %v644 = vpop.f32.mrb[0].mxu0
        %v645 = vadd.f32 0.0, %v644
        %v646 = vpop.f32.mrb[0].mxu0
        %v647 = vadd.f32 0.0, %v646
        %648 = vdwg.mxu0
        %v649 = vld [vmem:[%s4] sm:$0xf]
        %v651 = vlaneseq
        %v652 = vshrl.u32 %v651, 7
        %v653 = vsub.s32 0, %v652
        %v654 = vrot.slane %v649, %v653
        %v655 = vlaneseq
        %v656 = vshrl.u32 %v655, 7
        %v657 = vsub.s32 1, %v656
        %v658 = vrot.slane %v649, %v657
        %v659 = vlaneseq
        %v660 = vshrl.u32 %v659, 7
        %v661 = vsub.s32 2, %v660
        %v662 = vrot.slane %v649, %v661
        %v663 = vlaneseq
        %v664 = vshrl.u32 %v663, 7
        %v665 = vsub.s32 3, %v664
        %v666 = vrot.slane %v649, %v665
        %v671 = vadd.f32 %v490, %v654
        %v672 = vadd.f32 %v492, %v658
        %v673 = vadd.f32 %v603, %v662
        %v674 = vadd.f32 %v605, %v666
        %v675 = vadd.f32 %v496, %v654
        %v676 = vadd.f32 %v498, %v658
        %v677 = vadd.f32 %v609, %v662
        %v678 = vadd.f32 %v611, %v666
        %v679 = vadd.f32 %v502, %v654
        %v680 = vadd.f32 %v504, %v658
        %v681 = vadd.f32 %v615, %v662
        %v682 = vadd.f32 %v617, %v666
        %v683 = vadd.f32 %v508, %v654
        %v684 = vadd.f32 %v510, %v658
        %v685 = vadd.f32 %v621, %v662
        %v686 = vadd.f32 %v623, %v666
        %v687 = vadd.f32 %v514, %v654
        %v688 = vadd.f32 %v516, %v658
        %v689 = vadd.f32 %v627, %v662
        %v690 = vadd.f32 %v629, %v666
        %v691 = vadd.f32 %v520, %v654
        %v692 = vadd.f32 %v522, %v658
        %v693 = vadd.f32 %v633, %v662
        %v694 = vadd.f32 %v635, %v666
        %v695 = vadd.f32 %v526, %v654
        %v696 = vadd.f32 %v528, %v658
        %v697 = vadd.f32 %v639, %v662
        %v698 = vadd.f32 %v641, %v666
        %v699 = vadd.f32 %v532, %v654
        %v700 = vadd.f32 %v534, %v658
        %v701 = vadd.f32 %v645, %v662
        %v702 = vadd.f32 %v647, %v666
        %703 = vst [vmem:[#allocation2] sm:$0xff] %v671
        %704 = vst [vmem:[#allocation2 + $0x8] sm:$0xff] %v672
        %705 = vst [vmem:[#allocation2 + $0x10] sm:$0xff] %v673
        %706 = vst [vmem:[#allocation2 + $0x18] sm:$0xff] %v674
        %707 = vst [vmem:[#allocation2 + $0x20] sm:$0xff] %v675
        %708 = vst [vmem:[#allocation2 + $0x28] sm:$0xff] %v676
        %709 = vst [vmem:[#allocation2 + $0x30] sm:$0xff] %v677
        %710 = vst [vmem:[#allocation2 + $0x38] sm:$0xff] %v678
        %711 = vst [vmem:[#allocation2 + $0x40] sm:$0xff] %v679
        %712 = vst [vmem:[#allocation2 + $0x48] sm:$0xff] %v680
        %713 = vst [vmem:[#allocation2 + $0x50] sm:$0xff] %v681
        %714 = vst [vmem:[#allocation2 + $0x58] sm:$0xff] %v682
        %715 = vst [vmem:[#allocation2 + $0x60] sm:$0xff] %v683
        %716 = vst [vmem:[#allocation2 + $0x68] sm:$0xff] %v684
        %717 = vst [vmem:[#allocation2 + $0x70] sm:$0xff] %v685
        %718 = vst [vmem:[#allocation2 + $0x78] sm:$0xff] %v686
        %719 = vst [vmem:[#allocation2 + $0x80] sm:$0xff] %v687
        %720 = vst [vmem:[#allocation2 + $0x88] sm:$0xff] %v688
        %721 = vst [vmem:[#allocation2 + $0x90] sm:$0xff] %v689
        %722 = vst [vmem:[#allocation2 + $0x98] sm:$0xff] %v690
        %723 = vst [vmem:[#allocation2 + $0xa0] sm:$0xff] %v691
        %724 = vst [vmem:[#allocation2 + $0xa8] sm:$0xff] %v692
        %725 = vst [vmem:[#allocation2 + $0xb0] sm:$0xff] %v693
        %726 = vst [vmem:[#allocation2 + $0xb8] sm:$0xff] %v694
        %727 = vst [vmem:[#allocation2 + $0xc0] sm:$0xff] %v695
        %728 = vst [vmem:[#allocation2 + $0xc8] sm:$0xff] %v696
        %729 = vst [vmem:[#allocation2 + $0xd0] sm:$0xff] %v697
        %730 = vst [vmem:[#allocation2 + $0xd8] sm:$0xff] %v698
        %731 = vst [vmem:[#allocation2 + $0xe0] sm:$0xff] %v699
        %732 = vst [vmem:[#allocation2 + $0xe8] sm:$0xff] %v700
        %733 = vst [vmem:[#allocation2 + $0xf0] sm:$0xff] %v701
        %734 = vst [vmem:[#allocation2 + $0xf8] sm:$0xff] %v702
        %s735 = scalar_lea.vmem [#allocation13], 512
        %v736 = vld [vmem:[%s735] sm:$0xff]
        %v737 = vld [vmem:[%s735 + $0x8] sm:$0xff]
        %v738 = vld [vmem:[%s735 + $0x10] sm:$0xff]
        %v739 = vld [vmem:[%s735 + $0x18] sm:$0xff]
        %v740 = vld [vmem:[%s735 + $0x20] sm:$0xff]
        %v741 = vld [vmem:[%s735 + $0x28] sm:$0xff]
        %v742 = vld [vmem:[%s735 + $0x30] sm:$0xff]
        %v743 = vld [vmem:[%s735 + $0x38] sm:$0xff]
        %v744 = vld [vmem:[%s735 + $0x40] sm:$0xff]
        %v745 = vld [vmem:[%s735 + $0x48] sm:$0xff]
        %v746 = vld [vmem:[%s735 + $0x50] sm:$0xff]
        %v747 = vld [vmem:[%s735 + $0x58] sm:$0xff]
        %v748 = vld [vmem:[%s735 + $0x60] sm:$0xff]
        %v749 = vld [vmem:[%s735 + $0x68] sm:$0xff]
        %v750 = vld [vmem:[%s735 + $0x70] sm:$0xff]
        %v751 = vld [vmem:[%s735 + $0x78] sm:$0xff]
        %v752 = vld [vmem:[%s735 + $0x80] sm:$0xff]
        %v753 = vld [vmem:[%s735 + $0x88] sm:$0xff]
        %v754 = vld [vmem:[%s735 + $0x90] sm:$0xff]
        %v755 = vld [vmem:[%s735 + $0x98] sm:$0xff]
        %v756 = vld [vmem:[%s735 + $0xa0] sm:$0xff]
        %v757 = vld [vmem:[%s735 + $0xa8] sm:$0xff]
        %v758 = vld [vmem:[%s735 + $0xb0] sm:$0xff]
        %v759 = vld [vmem:[%s735 + $0xb8] sm:$0xff]
        %v760 = vld [vmem:[%s735 + $0xc0] sm:$0xff]
        %v761 = vld [vmem:[%s735 + $0xc8] sm:$0xff]
        %v762 = vld [vmem:[%s735 + $0xd0] sm:$0xff]
        %v763 = vld [vmem:[%s735 + $0xd8] sm:$0xff]
        %v764 = vld [vmem:[%s735 + $0xe0] sm:$0xff]
        %v765 = vld [vmem:[%s735 + $0xe8] sm:$0xff]
        %v766 = vld [vmem:[%s735 + $0xf0] sm:$0xff]
        %v767 = vld [vmem:[%s735 + $0xf8] sm:$0xff]
        %v768 = vld [vmem:[%s735 + $0x100] sm:$0xff]
        %v769 = vld [vmem:[%s735 + $0x108] sm:$0xff]
        %v770 = vld [vmem:[%s735 + $0x110] sm:$0xff]
        %v771 = vld [vmem:[%s735 + $0x118] sm:$0xff]
        %v772 = vld [vmem:[%s735 + $0x120] sm:$0xff]
        %v773 = vld [vmem:[%s735 + $0x128] sm:$0xff]
        %v774 = vld [vmem:[%s735 + $0x130] sm:$0xff]
        %v775 = vld [vmem:[%s735 + $0x138] sm:$0xff]
        %v776 = vld [vmem:[%s735 + $0x140] sm:$0xff]
        %v777 = vld [vmem:[%s735 + $0x148] sm:$0xff]
        %v778 = vld [vmem:[%s735 + $0x150] sm:$0xff]
        %v779 = vld [vmem:[%s735 + $0x158] sm:$0xff]
        %v780 = vld [vmem:[%s735 + $0x160] sm:$0xff]
        %v781 = vld [vmem:[%s735 + $0x168] sm:$0xff]
        %v782 = vld [vmem:[%s735 + $0x170] sm:$0xff]
        %v783 = vld [vmem:[%s735 + $0x178] sm:$0xff]
        %v784 = vld [vmem:[%s735 + $0x180] sm:$0xff]
        %v785 = vld [vmem:[%s735 + $0x188] sm:$0xff]
        %v786 = vld [vmem:[%s735 + $0x190] sm:$0xff]
        %v787 = vld [vmem:[%s735 + $0x198] sm:$0xff]
        %v788 = vld [vmem:[%s735 + $0x1a0] sm:$0xff]
        %v789 = vld [vmem:[%s735 + $0x1a8] sm:$0xff]
        %v790 = vld [vmem:[%s735 + $0x1b0] sm:$0xff]
        %v791 = vld [vmem:[%s735 + $0x1b8] sm:$0xff]
        %v792 = vld [vmem:[%s735 + $0x1c0] sm:$0xff]
        %v793 = vld [vmem:[%s735 + $0x1c8] sm:$0xff]
        %v794 = vld [vmem:[%s735 + $0x1d0] sm:$0xff]
        %v795 = vld [vmem:[%s735 + $0x1d8] sm:$0xff]
        %v796 = vld [vmem:[%s735 + $0x1e0] sm:$0xff]
        %v797 = vld [vmem:[%s735 + $0x1e8] sm:$0xff]
        %v798 = vld [vmem:[%s735 + $0x1f0] sm:$0xff]
        %v799 = vld [vmem:[%s735 + $0x1f8] sm:$0xff]
        %800 = vmatprep.subr.mxu0 %v737
        %801 = vmatpush1.msra.mxu0 %v736
        %802 = vmatprep.subr.mxu0 %v741
        %803 = vmatpush1.msra.mxu0 %v740
        %804 = vmatprep.subr.mxu0 %v745
        %805 = vmatpush1.msra.mxu0 %v744
        %806 = vmatprep.subr.mxu0 %v749
        %807 = vmatpush1.msra.mxu0 %v748
        %808 = vmatprep.subr.mxu0 %v753
        %809 = vmatpush1.msra.mxu0 %v752
        %810 = vmatprep.subr.mxu0 %v757
        %811 = vmatpush1.msra.mxu0 %v756
        %812 = vmatprep.subr.mxu0 %v761
        %813 = vmatpush1.msra.mxu0 %v760
        %814 = vmatprep.subr.mxu0 %v765
        %815 = vmatpush1.msra.mxu0 %v764
        %816 = vmatprep.subr.mxu0 %v769
        %817 = vmatpush1.msra.mxu0 %v768
        %818 = vmatprep.subr.mxu0 %v773
        %819 = vmatpush1.msra.mxu0 %v772
        %820 = vmatprep.subr.mxu0 %v777
        %821 = vmatpush1.msra.mxu0 %v776
        %822 = vmatprep.subr.mxu0 %v781
        %823 = vmatpush1.msra.mxu0 %v780
        %824 = vmatprep.subr.mxu0 %v785
        %825 = vmatpush1.msra.mxu0 %v784
        %826 = vmatprep.subr.mxu0 %v789
        %827 = vmatpush1.msra.mxu0 %v788
        %828 = vmatprep.subr.mxu0 %v793
        %829 = vmatpush1.msra.mxu0 %v792
        %830 = vmatprep.subr.mxu0 %v797
        %831 = vmatpush1.msra.mxu0 %v796
        %832 = vmatprep.subr.mxu0 0.0
        %833 = vmatpush1.msra.mxu0 0.0
        %834 = vmatprep.subr.mxu0 0.0
        %835 = vmatpush1.msra.mxu0 0.0
        %836 = vmatprep.subr.mxu0 0.0
        %837 = vmatpush1.msra.mxu0 0.0
        %838 = vmatprep.subr.mxu0 0.0
        %839 = vmatpush1.msra.mxu0 0.0
        %840 = vmatprep.subr.mxu0 0.0
        %841 = vmatpush1.msra.mxu0 0.0
        %842 = vmatprep.subr.mxu0 0.0
        %843 = vmatpush1.msra.mxu0 0.0
        %844 = vmatprep.subr.mxu0 0.0
        %845 = vmatpush1.msra.mxu0 0.0
        %846 = vmatprep.subr.mxu0 0.0
        %847 = vmatpush1.msra.mxu0 0.0
        %848 = vmatprep.subr.mxu0 0.0
        %849 = vmatpush1.msra.mxu0 0.0
        %850 = vmatprep.subr.mxu0 0.0
        %851 = vmatpush1.msra.mxu0 0.0
        %852 = vmatprep.subr.mxu0 0.0
        %853 = vmatpush1.msra.mxu0 0.0
        %854 = vmatprep.subr.mxu0 0.0
        %855 = vmatpush1.msra.mxu0 0.0
        %856 = vmatprep.subr.mxu0 0.0
        %857 = vmatpush1.msra.mxu0 0.0
        %858 = vmatprep.subr.mxu0 0.0
        %859 = vmatpush1.msra.mxu0 0.0
        %860 = vmatprep.subr.mxu0 0.0
        %861 = vmatpush1.msra.mxu0 0.0
        %862 = vmatprep.subr.mxu0 0.0
        %863 = vmatpush1.msra.mxu0 0.0
        %864 = vmatprep.mubr.f32.mxu0 0.0
        %865 = vmatmul.mubr.f32.gmra.mrb[0].mxu0 %v351
        %v866 = vpop.f32.mrb[0].mxu0
        %v867 = vadd.f32 0.0, %v866
        %v868 = vpop.f32.mrb[0].mxu0
        %v869 = vadd.f32 0.0, %v868
        %870 = vmatprep.mubr.f32.mxu0 0.0
        %871 = vmatmul.mubr.f32.gmra.mrb[0].mxu0 %v352
        %v872 = vpop.f32.mrb[0].mxu0
        %v873 = vadd.f32 0.0, %v872
        %v874 = vpop.f32.mrb[0].mxu0
        %v875 = vadd.f32 0.0, %v874
        %876 = vmatprep.mubr.f32.mxu0 0.0
        %877 = vmatmul.mubr.f32.gmra.mrb[0].mxu0 %v353
        %v878 = vpop.f32.mrb[0].mxu0
        %v879 = vadd.f32 0.0, %v878
        %v880 = vpop.f32.mrb[0].mxu0
        %v881 = vadd.f32 0.0, %v880
        %882 = vmatprep.mubr.f32.mxu0 0.0
        %883 = vmatmul.mubr.f32.gmra.mrb[0].mxu0 %v354
        %v884 = vpop.f32.mrb[0].mxu0
        %v885 = vadd.f32 0.0, %v884
        %v886 = vpop.f32.mrb[0].mxu0
        %v887 = vadd.f32 0.0, %v886
        %888 = vmatprep.mubr.f32.mxu0 0.0
        %889 = vmatmul.mubr.f32.gmra.mrb[0].mxu0 %v355
        %v890 = vpop.f32.mrb[0].mxu0
        %v891 = vadd.f32 0.0, %v890
        %v892 = vpop.f32.mrb[0].mxu0
        %v893 = vadd.f32 0.0, %v892
        %894 = vmatprep.mubr.f32.mxu0 0.0
        %895 = vmatmul.mubr.f32.gmra.mrb[0].mxu0 %v356
        %v896 = vpop.f32.mrb[0].mxu0
        %v897 = vadd.f32 0.0, %v896
        %v898 = vpop.f32.mrb[0].mxu0
        %v899 = vadd.f32 0.0, %v898
        %900 = vmatprep.mubr.f32.mxu0 0.0
        %901 = vmatmul.mubr.f32.gmra.mrb[0].mxu0 %v357
        %v902 = vpop.f32.mrb[0].mxu0
        %v903 = vadd.f32 0.0, %v902
        %v904 = vpop.f32.mrb[0].mxu0
        %v905 = vadd.f32 0.0, %v904
        %906 = vmatprep.mubr.f32.mxu0 0.0
        %907 = vmatmul.mubr.f32.gmra.mrb[0].mxu0 %v358
        %v908 = vpop.f32.mrb[0].mxu0
        %v909 = vadd.f32 0.0, %v908
        %v910 = vpop.f32.mrb[0].mxu0
        %v911 = vadd.f32 0.0, %v910
        %912 = vdwg.mxu0
        %913 = vmatprep.subr.mxu0 %v739
        %914 = vmatpush1.msra.mxu0 %v738
        %915 = vmatprep.subr.mxu0 %v743
        %916 = vmatpush1.msra.mxu0 %v742
        %917 = vmatprep.subr.mxu0 %v747
        %918 = vmatpush1.msra.mxu0 %v746
        %919 = vmatprep.subr.mxu0 %v751
        %920 = vmatpush1.msra.mxu0 %v750
        %921 = vmatprep.subr.mxu0 %v755
        %922 = vmatpush1.msra.mxu0 %v754
        %923 = vmatprep.subr.mxu0 %v759
        %924 = vmatpush1.msra.mxu0 %v758
        %925 = vmatprep.subr.mxu0 %v763
        %926 = vmatpush1.msra.mxu0 %v762
        %927 = vmatprep.subr.mxu0 %v767
        %928 = vmatpush1.msra.mxu0 %v766
        %929 = vmatprep.subr.mxu0 %v771
        %930 = vmatpush1.msra.mxu0 %v770
        %931 = vmatprep.subr.mxu0 %v775
        %932 = vmatpush1.msra.mxu0 %v774
        %933 = vmatprep.subr.mxu0 %v779
        %934 = vmatpush1.msra.mxu0 %v778
        %935 = vmatprep.subr.mxu0 %v783
        %936 = vmatpush1.msra.mxu0 %v782
        %937 = vmatprep.subr.mxu0 %v787
        %938 = vmatpush1.msra.mxu0 %v786
        %939 = vmatprep.subr.mxu0 %v791
        %940 = vmatpush1.msra.mxu0 %v790
        %941 = vmatprep.subr.mxu0 %v795
        %942 = vmatpush1.msra.mxu0 %v794
        %943 = vmatprep.subr.mxu0 %v799
        %944 = vmatpush1.msra.mxu0 %v798
        %945 = vmatprep.subr.mxu0 0.0
        %946 = vmatpush1.msra.mxu0 0.0
        %947 = vmatprep.subr.mxu0 0.0
        %948 = vmatpush1.msra.mxu0 0.0
        %949 = vmatprep.subr.mxu0 0.0
        %950 = vmatpush1.msra.mxu0 0.0
        %951 = vmatprep.subr.mxu0 0.0
        %952 = vmatpush1.msra.mxu0 0.0
        %953 = vmatprep.subr.mxu0 0.0
        %954 = vmatpush1.msra.mxu0 0.0
        %955 = vmatprep.subr.mxu0 0.0
        %956 = vmatpush1.msra.mxu0 0.0
        %957 = vmatprep.subr.mxu0 0.0
        %958 = vmatpush1.msra.mxu0 0.0
        %959 = vmatprep.subr.mxu0 0.0
        %960 = vmatpush1.msra.mxu0 0.0
        %961 = vmatprep.subr.mxu0 0.0
        %962 = vmatpush1.msra.mxu0 0.0
        %963 = vmatprep.subr.mxu0 0.0
        %964 = vmatpush1.msra.mxu0 0.0
        %965 = vmatprep.subr.mxu0 0.0
        %966 = vmatpush1.msra.mxu0 0.0
        %967 = vmatprep.subr.mxu0 0.0
        %968 = vmatpush1.msra.mxu0 0.0
        %969 = vmatprep.subr.mxu0 0.0
        %970 = vmatpush1.msra.mxu0 0.0
        %971 = vmatprep.subr.mxu0 0.0
        %972 = vmatpush1.msra.mxu0 0.0
        %973 = vmatprep.subr.mxu0 0.0
        %974 = vmatpush1.msra.mxu0 0.0
        %975 = vmatprep.subr.mxu0 0.0
        %976 = vmatpush1.msra.mxu0 0.0
        %977 = vmatprep.mubr.f32.mxu0 0.0
        %978 = vmatmul.mubr.f32.gmra.mrb[0].mxu0 %v351
        %v979 = vpop.f32.mrb[0].mxu0
        %v980 = vadd.f32 0.0, %v979
        %v981 = vpop.f32.mrb[0].mxu0
        %v982 = vadd.f32 0.0, %v981
        %983 = vmatprep.mubr.f32.mxu0 0.0
        %984 = vmatmul.mubr.f32.gmra.mrb[0].mxu0 %v352
        %v985 = vpop.f32.mrb[0].mxu0
        %v986 = vadd.f32 0.0, %v985
        %v987 = vpop.f32.mrb[0].mxu0
        %v988 = vadd.f32 0.0, %v987
        %989 = vmatprep.mubr.f32.mxu0 0.0
        %990 = vmatmul.mubr.f32.gmra.mrb[0].mxu0 %v353
        %v991 = vpop.f32.mrb[0].mxu0
        %v992 = vadd.f32 0.0, %v991
        %v993 = vpop.f32.mrb[0].mxu0
        %v994 = vadd.f32 0.0, %v993
        %995 = vmatprep.mubr.f32.mxu0 0.0
        %996 = vmatmul.mubr.f32.gmra.mrb[0].mxu0 %v354
        %v997 = vpop.f32.mrb[0].mxu0
        %v998 = vadd.f32 0.0, %v997
        %v999 = vpop.f32.mrb[0].mxu0
        %v1000 = vadd.f32 0.0, %v999
        %1001 = vmatprep.mubr.f32.mxu0 0.0
        %1002 = vmatmul.mubr.f32.gmra.mrb[0].mxu0 %v355
        %v1003 = vpop.f32.mrb[0].mxu0
        %v1004 = vadd.f32 0.0, %v1003
        %v1005 = vpop.f32.mrb[0].mxu0
        %v1006 = vadd.f32 0.0, %v1005
        %1007 = vmatprep.mubr.f32.mxu0 0.0
        %1008 = vmatmul.mubr.f32.gmra.mrb[0].mxu0 %v356
        %v1009 = vpop.f32.mrb[0].mxu0
        %v1010 = vadd.f32 0.0, %v1009
        %v1011 = vpop.f32.mrb[0].mxu0
        %v1012 = vadd.f32 0.0, %v1011
        %1013 = vmatprep.mubr.f32.mxu0 0.0
        %1014 = vmatmul.mubr.f32.gmra.mrb[0].mxu0 %v357
        %v1015 = vpop.f32.mrb[0].mxu0
        %v1016 = vadd.f32 0.0, %v1015
        %v1017 = vpop.f32.mrb[0].mxu0
        %v1018 = vadd.f32 0.0, %v1017
        %1019 = vmatprep.mubr.f32.mxu0 0.0
        %1020 = vmatmul.mubr.f32.gmra.mrb[0].mxu0 %v358
        %v1021 = vpop.f32.mrb[0].mxu0
        %v1022 = vadd.f32 0.0, %v1021
        %v1023 = vpop.f32.mrb[0].mxu0
        %v1024 = vadd.f32 0.0, %v1023
        %1025 = vdwg.mxu0
        %s1026 = scalar_lea.vmem %s4, 4
        %v1027 = vld [vmem:[%s1026] sm:$0xf]
        %v1029 = vlaneseq
        %v1030 = vshrl.u32 %v1029, 7
        %v1031 = vsub.s32 0, %v1030
        %v1032 = vrot.slane %v1027, %v1031
        %v1033 = vlaneseq
        %v1034 = vshrl.u32 %v1033, 7
        %v1035 = vsub.s32 1, %v1034
        %v1036 = vrot.slane %v1027, %v1035
        %v1037 = vlaneseq
        %v1038 = vshrl.u32 %v1037, 7
        %v1039 = vsub.s32 2, %v1038
        %v1040 = vrot.slane %v1027, %v1039
        %v1041 = vlaneseq
        %v1042 = vshrl.u32 %v1041, 7
        %v1043 = vsub.s32 3, %v1042
        %v1044 = vrot.slane %v1027, %v1043
        %v1049 = vadd.f32 %v867, %v1032
        %v1050 = vadd.f32 %v869, %v1036
        %v1051 = vadd.f32 %v980, %v1040
        %v1052 = vadd.f32 %v982, %v1044
        %v1053 = vadd.f32 %v873, %v1032
        %v1054 = vadd.f32 %v875, %v1036
        %v1055 = vadd.f32 %v986, %v1040
        %v1056 = vadd.f32 %v988, %v1044
        %v1057 = vadd.f32 %v879, %v1032
        %v1058 = vadd.f32 %v881, %v1036
        %v1059 = vadd.f32 %v992, %v1040
        %v1060 = vadd.f32 %v994, %v1044
        %v1061 = vadd.f32 %v885, %v1032
        %v1062 = vadd.f32 %v887, %v1036
        %v1063 = vadd.f32 %v998, %v1040
        %v1064 = vadd.f32 %v1000, %v1044
        %v1065 = vadd.f32 %v891, %v1032
        %v1066 = vadd.f32 %v893, %v1036
        %v1067 = vadd.f32 %v1004, %v1040
        %v1068 = vadd.f32 %v1006, %v1044
        %v1069 = vadd.f32 %v897, %v1032
        %v1070 = vadd.f32 %v899, %v1036
        %v1071 = vadd.f32 %v1010, %v1040
        %v1072 = vadd.f32 %v1012, %v1044
        %v1073 = vadd.f32 %v903, %v1032
        %v1074 = vadd.f32 %v905, %v1036
        %v1075 = vadd.f32 %v1016, %v1040
        %v1076 = vadd.f32 %v1018, %v1044
        %v1077 = vadd.f32 %v909, %v1032
        %v1078 = vadd.f32 %v911, %v1036
        %v1079 = vadd.f32 %v1022, %v1040
        %v1080 = vadd.f32 %v1024, %v1044
        %1081 = vst [vmem:[#allocation3] sm:$0xff] %v1049
        %1082 = vst [vmem:[#allocation3 + $0x8] sm:$0xff] %v1050
        %1083 = vst [vmem:[#allocation3 + $0x10] sm:$0xff] %v1051
        %1084 = vst [vmem:[#allocation3 + $0x18] sm:$0xff] %v1052
        %1085 = vst [vmem:[#allocation3 + $0x20] sm:$0xff] %v1053
        %1086 = vst [vmem:[#allocation3 + $0x28] sm:$0xff] %v1054
        %1087 = vst [vmem:[#allocation3 + $0x30] sm:$0xff] %v1055
        %1088 = vst [vmem:[#allocation3 + $0x38] sm:$0xff] %v1056
        %1089 = vst [vmem:[#allocation3 + $0x40] sm:$0xff] %v1057
        %1090 = vst [vmem:[#allocation3 + $0x48] sm:$0xff] %v1058
        %1091 = vst [vmem:[#allocation3 + $0x50] sm:$0xff] %v1059
        %1092 = vst [vmem:[#allocation3 + $0x58] sm:$0xff] %v1060
        %1093 = vst [vmem:[#allocation3 + $0x60] sm:$0xff] %v1061
        %1094 = vst [vmem:[#allocation3 + $0x68] sm:$0xff] %v1062
        %1095 = vst [vmem:[#allocation3 + $0x70] sm:$0xff] %v1063
        %1096 = vst [vmem:[#allocation3 + $0x78] sm:$0xff] %v1064
        %1097 = vst [vmem:[#allocation3 + $0x80] sm:$0xff] %v1065
        %1098 = vst [vmem:[#allocation3 + $0x88] sm:$0xff] %v1066
        %1099 = vst [vmem:[#allocation3 + $0x90] sm:$0xff] %v1067
        %1100 = vst [vmem:[#allocation3 + $0x98] sm:$0xff] %v1068
        %1101 = vst [vmem:[#allocation3 + $0xa0] sm:$0xff] %v1069
        %1102 = vst [vmem:[#allocation3 + $0xa8] sm:$0xff] %v1070
        %1103 = vst [vmem:[#allocation3 + $0xb0] sm:$0xff] %v1071
        %1104 = vst [vmem:[#allocation3 + $0xb8] sm:$0xff] %v1072
        %1105 = vst [vmem:[#allocation3 + $0xc0] sm:$0xff] %v1073
        %1106 = vst [vmem:[#allocation3 + $0xc8] sm:$0xff] %v1074
        %1107 = vst [vmem:[#allocation3 + $0xd0] sm:$0xff] %v1075
        %1108 = vst [vmem:[#allocation3 + $0xd8] sm:$0xff] %v1076
        %1109 = vst [vmem:[#allocation3 + $0xe0] sm:$0xff] %v1077
        %1110 = vst [vmem:[#allocation3 + $0xe8] sm:$0xff] %v1078
        %1111 = vst [vmem:[#allocation3 + $0xf0] sm:$0xff] %v1079
        %1112 = vst [vmem:[#allocation3 + $0xf8] sm:$0xff] %v1080
        %v1113 = vld [vmem:[#allocation14] sm:$0xff]
        %v1114 = vld [vmem:[#allocation14 + $0x8] sm:$0xff]
        %v1115 = vld [vmem:[#allocation14 + $0x10] sm:$0xff]
        %v1116 = vld [vmem:[#allocation14 + $0x18] sm:$0xff]
        %v1117 = vld [vmem:[#allocation14 + $0x20] sm:$0xff]
        %v1118 = vld [vmem:[#allocation14 + $0x28] sm:$0xff]
        %v1119 = vld [vmem:[#allocation14 + $0x30] sm:$0xff]
        %v1120 = vld [vmem:[#allocation14 + $0x38] sm:$0xff]
        %v1121 = vld [vmem:[#allocation14 + $0x40] sm:$0xff]
        %v1122 = vld [vmem:[#allocation14 + $0x48] sm:$0xff]
        %v1123 = vld [vmem:[#allocation14 + $0x50] sm:$0xff]
        %v1124 = vld [vmem:[#allocation14 + $0x58] sm:$0xff]
        %v1125 = vld [vmem:[#allocation14 + $0x60] sm:$0xff]
        %v1126 = vld [vmem:[#allocation14 + $0x68] sm:$0xff]
        %v1127 = vld [vmem:[#allocation14 + $0x70] sm:$0xff]
        %v1128 = vld [vmem:[#allocation14 + $0x78] sm:$0xff]
        %v1129 = vld [vmem:[#allocation14 + $0x80] sm:$0xff]
        %v1130 = vld [vmem:[#allocation14 + $0x88] sm:$0xff]
        %v1131 = vld [vmem:[#allocation14 + $0x90] sm:$0xff]
        %v1132 = vld [vmem:[#allocation14 + $0x98] sm:$0xff]
        %v1133 = vld [vmem:[#allocation14 + $0xa0] sm:$0xff]
        %v1134 = vld [vmem:[#allocation14 + $0xa8] sm:$0xff]
        %v1135 = vld [vmem:[#allocation14 + $0xb0] sm:$0xff]
        %v1136 = vld [vmem:[#allocation14 + $0xb8] sm:$0xff]
        %v1137 = vld [vmem:[#allocation14 + $0xc0] sm:$0xff]
        %v1138 = vld [vmem:[#allocation14 + $0xc8] sm:$0xff]
        %v1139 = vld [vmem:[#allocation14 + $0xd0] sm:$0xff]
        %v1140 = vld [vmem:[#allocation14 + $0xd8] sm:$0xff]
        %v1141 = vld [vmem:[#allocation14 + $0xe0] sm:$0xff]
        %v1142 = vld [vmem:[#allocation14 + $0xe8] sm:$0xff]
        %v1143 = vld [vmem:[#allocation14 + $0xf0] sm:$0xff]
        %v1144 = vld [vmem:[#allocation14 + $0xf8] sm:$0xff]
        %v1145 = vld [vmem:[#allocation14 + $0x100] sm:$0xff]
        %v1146 = vld [vmem:[#allocation14 + $0x108] sm:$0xff]
        %v1147 = vld [vmem:[#allocation14 + $0x110] sm:$0xff]
        %v1148 = vld [vmem:[#allocation14 + $0x118] sm:$0xff]
        %v1149 = vld [vmem:[#allocation14 + $0x120] sm:$0xff]
        %v1150 = vld [vmem:[#allocation14 + $0x128] sm:$0xff]
        %v1151 = vld [vmem:[#allocation14 + $0x130] sm:$0xff]
        %v1152 = vld [vmem:[#allocation14 + $0x138] sm:$0xff]
        %v1153 = vld [vmem:[#allocation14 + $0x140] sm:$0xff]
        %v1154 = vld [vmem:[#allocation14 + $0x148] sm:$0xff]
        %v1155 = vld [vmem:[#allocation14 + $0x150] sm:$0xff]
        %v1156 = vld [vmem:[#allocation14 + $0x158] sm:$0xff]
        %v1157 = vld [vmem:[#allocation14 + $0x160] sm:$0xff]
        %v1158 = vld [vmem:[#allocation14 + $0x168] sm:$0xff]
        %v1159 = vld [vmem:[#allocation14 + $0x170] sm:$0xff]
        %v1160 = vld [vmem:[#allocation14 + $0x178] sm:$0xff]
        %v1161 = vld [vmem:[#allocation14 + $0x180] sm:$0xff]
        %v1162 = vld [vmem:[#allocation14 + $0x188] sm:$0xff]
        %v1163 = vld [vmem:[#allocation14 + $0x190] sm:$0xff]
        %v1164 = vld [vmem:[#allocation14 + $0x198] sm:$0xff]
        %v1165 = vld [vmem:[#allocation14 + $0x1a0] sm:$0xff]
        %v1166 = vld [vmem:[#allocation14 + $0x1a8] sm:$0xff]
        %v1167 = vld [vmem:[#allocation14 + $0x1b0] sm:$0xff]
        %v1168 = vld [vmem:[#allocation14 + $0x1b8] sm:$0xff]
        %v1169 = vld [vmem:[#allocation14 + $0x1c0] sm:$0xff]
        %v1170 = vld [vmem:[#allocation14 + $0x1c8] sm:$0xff]
        %v1171 = vld [vmem:[#allocation14 + $0x1d0] sm:$0xff]
        %v1172 = vld [vmem:[#allocation14 + $0x1d8] sm:$0xff]
        %v1173 = vld [vmem:[#allocation14 + $0x1e0] sm:$0xff]
        %v1174 = vld [vmem:[#allocation14 + $0x1e8] sm:$0xff]
        %v1175 = vld [vmem:[#allocation14 + $0x1f0] sm:$0xff]
        %v1176 = vld [vmem:[#allocation14 + $0x1f8] sm:$0xff]
        %s1177 = scalar_lea.vmem [#allocation14], 512
        %v1178 = vld [vmem:[%s1177] sm:$0xff]
        %v1179 = vld [vmem:[%s1177 + $0x8] sm:$0xff]
        %v1180 = vld [vmem:[%s1177 + $0x10] sm:$0xff]
        %v1181 = vld [vmem:[%s1177 + $0x18] sm:$0xff]
        %v1182 = vld [vmem:[%s1177 + $0x20] sm:$0xff]
        %v1183 = vld [vmem:[%s1177 + $0x28] sm:$0xff]
        %v1184 = vld [vmem:[%s1177 + $0x30] sm:$0xff]
        %v1185 = vld [vmem:[%s1177 + $0x38] sm:$0xff]
        %v1186 = vld [vmem:[%s1177 + $0x40] sm:$0xff]
        %v1187 = vld [vmem:[%s1177 + $0x48] sm:$0xff]
        %v1188 = vld [vmem:[%s1177 + $0x50] sm:$0xff]
        %v1189 = vld [vmem:[%s1177 + $0x58] sm:$0xff]
        %v1190 = vld [vmem:[%s1177 + $0x60] sm:$0xff]
        %v1191 = vld [vmem:[%s1177 + $0x68] sm:$0xff]
        %v1192 = vld [vmem:[%s1177 + $0x70] sm:$0xff]
        %v1193 = vld [vmem:[%s1177 + $0x78] sm:$0xff]
        %v1194 = vld [vmem:[%s1177 + $0x80] sm:$0xff]
        %v1195 = vld [vmem:[%s1177 + $0x88] sm:$0xff]
        %v1196 = vld [vmem:[%s1177 + $0x90] sm:$0xff]
        %v1197 = vld [vmem:[%s1177 + $0x98] sm:$0xff]
        %v1198 = vld [vmem:[%s1177 + $0xa0] sm:$0xff]
        %v1199 = vld [vmem:[%s1177 + $0xa8] sm:$0xff]
        %v1200 = vld [vmem:[%s1177 + $0xb0] sm:$0xff]
        %v1201 = vld [vmem:[%s1177 + $0xb8] sm:$0xff]
        %v1202 = vld [vmem:[%s1177 + $0xc0] sm:$0xff]
        %v1203 = vld [vmem:[%s1177 + $0xc8] sm:$0xff]
        %v1204 = vld [vmem:[%s1177 + $0xd0] sm:$0xff]
        %v1205 = vld [vmem:[%s1177 + $0xd8] sm:$0xff]
        %v1206 = vld [vmem:[%s1177 + $0xe0] sm:$0xff]
        %v1207 = vld [vmem:[%s1177 + $0xe8] sm:$0xff]
        %v1208 = vld [vmem:[%s1177 + $0xf0] sm:$0xff]
        %v1209 = vld [vmem:[%s1177 + $0xf8] sm:$0xff]
        %v1210 = vld [vmem:[%s1177 + $0x100] sm:$0xff]
        %v1211 = vld [vmem:[%s1177 + $0x108] sm:$0xff]
        %v1212 = vld [vmem:[%s1177 + $0x110] sm:$0xff]
        %v1213 = vld [vmem:[%s1177 + $0x118] sm:$0xff]
        %v1214 = vld [vmem:[%s1177 + $0x120] sm:$0xff]
        %v1215 = vld [vmem:[%s1177 + $0x128] sm:$0xff]
        %v1216 = vld [vmem:[%s1177 + $0x130] sm:$0xff]
        %v1217 = vld [vmem:[%s1177 + $0x138] sm:$0xff]
        %v1218 = vld [vmem:[%s1177 + $0x140] sm:$0xff]
        %v1219 = vld [vmem:[%s1177 + $0x148] sm:$0xff]
        %v1220 = vld [vmem:[%s1177 + $0x150] sm:$0xff]
        %v1221 = vld [vmem:[%s1177 + $0x158] sm:$0xff]
        %v1222 = vld [vmem:[%s1177 + $0x160] sm:$0xff]
        %v1223 = vld [vmem:[%s1177 + $0x168] sm:$0xff]
        %v1224 = vld [vmem:[%s1177 + $0x170] sm:$0xff]
        %v1225 = vld [vmem:[%s1177 + $0x178] sm:$0xff]
        %v1226 = vld [vmem:[%s1177 + $0x180] sm:$0xff]
        %v1227 = vld [vmem:[%s1177 + $0x188] sm:$0xff]
        %v1228 = vld [vmem:[%s1177 + $0x190] sm:$0xff]
        %v1229 = vld [vmem:[%s1177 + $0x198] sm:$0xff]
        %v1230 = vld [vmem:[%s1177 + $0x1a0] sm:$0xff]
        %v1231 = vld [vmem:[%s1177 + $0x1a8] sm:$0xff]
        %v1232 = vld [vmem:[%s1177 + $0x1b0] sm:$0xff]
        %v1233 = vld [vmem:[%s1177 + $0x1b8] sm:$0xff]
        %v1234 = vld [vmem:[%s1177 + $0x1c0] sm:$0xff]
        %v1235 = vld [vmem:[%s1177 + $0x1c8] sm:$0xff]
        %v1236 = vld [vmem:[%s1177 + $0x1d0] sm:$0xff]
        %v1237 = vld [vmem:[%s1177 + $0x1d8] sm:$0xff]
        %v1238 = vld [vmem:[%s1177 + $0x1e0] sm:$0xff]
        %v1239 = vld [vmem:[%s1177 + $0x1e8] sm:$0xff]
        %v1240 = vld [vmem:[%s1177 + $0x1f0] sm:$0xff]
        %v1241 = vld [vmem:[%s1177 + $0x1f8] sm:$0xff]
        %v1242 = vld [vmem:[%s5] sm:$0xff]
        %v1243 = vld [vmem:[#allocation4] sm:$0xff]
        %v1244 = vld [vmem:[#allocation5] sm:$0xff]
        %v1245 = vld [vmem:[#allocation6] sm:$0xff]
        %v1246 = vld [vmem:[#allocation7] sm:$0xff]
        %v1247 = vld [vmem:[#allocation16] sm:$0xff]
        %v1248 = vld [vmem:[#allocation16 + $0x8] sm:$0xff]
        %s1249 = smul.u32 %s25, 8
        %s1250 = ssub.s32 1, %s25
        %s1251 = smul.u32 %s1250, 8
        %s1252 = sadd.s32 %s1251, 7
        %v1253 = vstv %s1249
        %vm1254 = vcmp.lt.s32.totalorder %v1253, %v1242
        %v1255 = vstv %s1252
        %vm1256 = vcmp.lt.s32.totalorder %v1255, %v1242
        %v1257 = vsel %vm1254, 1, 0
        %v1258 = vcvt.s32.f32 %v1257
        %v1259 = vsel %vm1256, 1, 0
        %v1260 = vcvt.s32.f32 %v1259
        %v1261 = vld [vmem:[#allocation2] sm:$0xff]
        %v1262 = vld [vmem:[#allocation2 + $0x8] sm:$0xff]
        %v1263 = vld [vmem:[#allocation2 + $0x10] sm:$0xff]
        %v1264 = vld [vmem:[#allocation2 + $0x18] sm:$0xff]
        %1265 = vmatprep.subr.mxu0 %v1114
        %1266 = vmatpush1.msra.mxu0 %v1113
        %1267 = vmatprep.subr.mxu0 %v1118
        %1268 = vmatpush1.msra.mxu0 %v1117
        %1269 = vmatprep.subr.mxu0 %v1122
        %1270 = vmatpush1.msra.mxu0 %v1121
        %1271 = vmatprep.subr.mxu0 %v1126
        %1272 = vmatpush1.msra.mxu0 %v1125
        %1273 = vmatprep.subr.mxu0 %v1130
        %1274 = vmatpush1.msra.mxu0 %v1129
        %1275 = vmatprep.subr.mxu0 %v1134
        %1276 = vmatpush1.msra.mxu0 %v1133
        %1277 = vmatprep.subr.mxu0 %v1138
        %1278 = vmatpush1.msra.mxu0 %v1137
        %1279 = vmatprep.subr.mxu0 %v1142
        %1280 = vmatpush1.msra.mxu0 %v1141
        %1281 = vmatprep.subr.mxu0 %v1146
        %1282 = vmatpush1.msra.mxu0 %v1145
        %1283 = vmatprep.subr.mxu0 %v1150
        %1284 = vmatpush1.msra.mxu0 %v1149
        %1285 = vmatprep.subr.mxu0 %v1154
        %1286 = vmatpush1.msra.mxu0 %v1153
        %1287 = vmatprep.subr.mxu0 %v1158
        %1288 = vmatpush1.msra.mxu0 %v1157
        %1289 = vmatprep.subr.mxu0 %v1162
        %1290 = vmatpush1.msra.mxu0 %v1161
        %1291 = vmatprep.subr.mxu0 %v1166
        %1292 = vmatpush1.msra.mxu0 %v1165
        %1293 = vmatprep.subr.mxu0 %v1170
        %1294 = vmatpush1.msra.mxu0 %v1169
        %1295 = vmatprep.subr.mxu0 %v1174
        %1296 = vmatpush1.msra.mxu0 %v1173
        %1297 = vmatprep.subr.mxu0 0.0
        %1298 = vmatpush1.msra.mxu0 0.0
        %1299 = vmatprep.subr.mxu0 0.0
        %1300 = vmatpush1.msra.mxu0 0.0
        %1301 = vmatprep.subr.mxu0 0.0
        %1302 = vmatpush1.msra.mxu0 0.0
        %1303 = vmatprep.subr.mxu0 0.0
        %1304 = vmatpush1.msra.mxu0 0.0
        %1305 = vmatprep.subr.mxu0 0.0
        %1306 = vmatpush1.msra.mxu0 0.0
        %1307 = vmatprep.subr.mxu0 0.0
        %1308 = vmatpush1.msra.mxu0 0.0
        %1309 = vmatprep.subr.mxu0 0.0
        %1310 = vmatpush1.msra.mxu0 0.0
        %1311 = vmatprep.subr.mxu0 0.0
        %1312 = vmatpush1.msra.mxu0 0.0
        %1313 = vmatprep.subr.mxu0 0.0
        %1314 = vmatpush1.msra.mxu0 0.0
        %1315 = vmatprep.subr.mxu0 0.0
        %1316 = vmatpush1.msra.mxu0 0.0
        %1317 = vmatprep.subr.mxu0 0.0
        %1318 = vmatpush1.msra.mxu0 0.0
        %1319 = vmatprep.subr.mxu0 0.0
        %1320 = vmatpush1.msra.mxu0 0.0
        %1321 = vmatprep.subr.mxu0 0.0
        %1322 = vmatpush1.msra.mxu0 0.0
        %1323 = vmatprep.subr.mxu0 0.0
        %1324 = vmatpush1.msra.mxu0 0.0
        %1325 = vmatprep.subr.mxu0 0.0
        %1326 = vmatpush1.msra.mxu0 0.0
        %1327 = vmatprep.subr.mxu0 0.0
        %1328 = vmatpush1.msra.mxu0 0.0
        %1329 = vmatprep.mubr.f32.mxu0 0.0
        %1330 = vmatmul.mubr.f32.gmra.mrb[0].mxu0 %v1243
        %v1331 = vpop.f32.mrb[0].mxu0
        %v1332 = vadd.f32 0.0, %v1331
        %v1333 = vpop.f32.mrb[0].mxu0
        %v1334 = vadd.f32 0.0, %v1333
        %1335 = vdwg.mxu0
        %1336 = vmatprep.subr.mxu0 %v1116
        %1337 = vmatpush1.msra.mxu0 %v1115
        %1338 = vmatprep.subr.mxu0 %v1120
        %1339 = vmatpush1.msra.mxu0 %v1119
        %1340 = vmatprep.subr.mxu0 %v1124
        %1341 = vmatpush1.msra.mxu0 %v1123
        %1342 = vmatprep.subr.mxu0 %v1128
        %1343 = vmatpush1.msra.mxu0 %v1127
        %1344 = vmatprep.subr.mxu0 %v1132
        %1345 = vmatpush1.msra.mxu0 %v1131
        %1346 = vmatprep.subr.mxu0 %v1136
        %1347 = vmatpush1.msra.mxu0 %v1135
        %1348 = vmatprep.subr.mxu0 %v1140
        %1349 = vmatpush1.msra.mxu0 %v1139
        %1350 = vmatprep.subr.mxu0 %v1144
        %1351 = vmatpush1.msra.mxu0 %v1143
        %1352 = vmatprep.subr.mxu0 %v1148
        %1353 = vmatpush1.msra.mxu0 %v1147
        %1354 = vmatprep.subr.mxu0 %v1152
        %1355 = vmatpush1.msra.mxu0 %v1151
        %1356 = vmatprep.subr.mxu0 %v1156
        %1357 = vmatpush1.msra.mxu0 %v1155
        %1358 = vmatprep.subr.mxu0 %v1160
        %1359 = vmatpush1.msra.mxu0 %v1159
        %1360 = vmatprep.subr.mxu0 %v1164
        %1361 = vmatpush1.msra.mxu0 %v1163
        %1362 = vmatprep.subr.mxu0 %v1168
        %1363 = vmatpush1.msra.mxu0 %v1167
        %1364 = vmatprep.subr.mxu0 %v1172
        %1365 = vmatpush1.msra.mxu0 %v1171
        %1366 = vmatprep.subr.mxu0 %v1176
        %1367 = vmatpush1.msra.mxu0 %v1175
        %1368 = vmatprep.subr.mxu0 0.0
        %1369 = vmatpush1.msra.mxu0 0.0
        %1370 = vmatprep.subr.mxu0 0.0
        %1371 = vmatpush1.msra.mxu0 0.0
        %1372 = vmatprep.subr.mxu0 0.0
        %1373 = vmatpush1.msra.mxu0 0.0
        %1374 = vmatprep.subr.mxu0 0.0
        %1375 = vmatpush1.msra.mxu0 0.0
        %1376 = vmatprep.subr.mxu0 0.0
        %1377 = vmatpush1.msra.mxu0 0.0
        %1378 = vmatprep.subr.mxu0 0.0
        %1379 = vmatpush1.msra.mxu0 0.0
        %1380 = vmatprep.subr.mxu0 0.0
        %1381 = vmatpush1.msra.mxu0 0.0
        %1382 = vmatprep.subr.mxu0 0.0
        %1383 = vmatpush1.msra.mxu0 0.0
        %1384 = vmatprep.subr.mxu0 0.0
        %1385 = vmatpush1.msra.mxu0 0.0
        %1386 = vmatprep.subr.mxu0 0.0
        %1387 = vmatpush1.msra.mxu0 0.0
        %1388 = vmatprep.subr.mxu0 0.0
        %1389 = vmatpush1.msra.mxu0 0.0
        %1390 = vmatprep.subr.mxu0 0.0
        %1391 = vmatpush1.msra.mxu0 0.0
        %1392 = vmatprep.subr.mxu0 0.0
        %1393 = vmatpush1.msra.mxu0 0.0
        %1394 = vmatprep.subr.mxu0 0.0
        %1395 = vmatpush1.msra.mxu0 0.0
        %1396 = vmatprep.subr.mxu0 0.0
        %1397 = vmatpush1.msra.mxu0 0.0
        %1398 = vmatprep.subr.mxu0 0.0
        %1399 = vmatpush1.msra.mxu0 0.0
        %1400 = vmatprep.mubr.f32.mxu0 0.0
        %1401 = vmatmul.mubr.f32.gmra.mrb[0].mxu0 %v1243
        %v1402 = vpop.f32.mrb[0].mxu0
        %v1403 = vadd.f32 0.0, %v1402
        %v1404 = vpop.f32.mrb[0].mxu0
        %v1405 = vadd.f32 0.0, %v1404
        %1406 = vdwg.mxu0
        %v1407 = vadd.f32 %v1261, %v1332
        %v1408 = vadd.f32 %v1262, %v1334
        %v1409 = vadd.f32 %v1263, %v1403
        %v1410 = vadd.f32 %v1264, %v1405
        %v1411 = vxor.u32 %v1407, 2147483648
        %v1412 = vmul.f32 %v1411, 1.442695
        %v1413 = vpow.pop %v1412
        %v1414 = vadd.f32 %v1413, 1.0
        %v1415 = vrcp.pop %v1414
        %v1416 = vmul.f32 1.0, %v1415
        %v1417 = vxor.u32 %v1408, 2147483648
        %v1418 = vmul.f32 %v1417, 1.442695
        %v1419 = vpow.pop %v1418
        %v1420 = vadd.f32 %v1419, 1.0
        %v1421 = vrcp.pop %v1420
        %v1422 = vmul.f32 1.0, %v1421
        %v1423 = vtanh.pop %v1409
        %v1424 = vxor.u32 %v1410, 2147483648
        %v1425 = vmul.f32 %v1424, 1.442695
        %v1426 = vpow.pop %v1425
        %v1427 = vadd.f32 %v1426, 1.0
        %v1428 = vrcp.pop %v1427
        %v1429 = vmul.f32 1.0, %v1428
        %v1430 = vmul.f32 %v1422, %v1244
        %v1431 = vmul.f32 %v1416, %v1423
        %v1432 = vadd.f32 %v1430, %v1431
        %v1433 = vtanh.pop %v1432
        %v1434 = vmul.f32 %v1429, %v1433
        %v1435 = vsub.f32 %v1434, %v1243
        %1437 = vset.pattern.permute.xlu0 0
        %1438 = vperm.xlu0 %1437, %v1258
        %v1439 = vpop.permute.xlu0 %1438
        %v1441 = vmul.f32 %v1439, %v1435
        %v1442 = vadd.f32 %v1243, %v1441
        %v1443 = vsub.f32 %v1432, %v1244
        %v1444 = vmul.f32 %v1439, %v1443
        %v1445 = vadd.f32 %v1244, %v1444
        %s1446 = scalar_lea.vmem [#allocation3], 224
        %v1447 = vld [vmem:[%s1446] sm:$0xff]
        %v1448 = vld [vmem:[%s1446 + $0x8] sm:$0xff]
        %v1449 = vld [vmem:[%s1446 + $0x10] sm:$0xff]
        %v1450 = vld [vmem:[%s1446 + $0x18] sm:$0xff]
        %1451 = vmatprep.subr.mxu0 %v1179
        %1452 = vmatpush1.msra.mxu0 %v1178
        %1453 = vmatprep.subr.mxu0 %v1183
        %1454 = vmatpush1.msra.mxu0 %v1182
        %1455 = vmatprep.subr.mxu0 %v1187
        %1456 = vmatpush1.msra.mxu0 %v1186
        %1457 = vmatprep.subr.mxu0 %v1191
        %1458 = vmatpush1.msra.mxu0 %v1190
        %1459 = vmatprep.subr.mxu0 %v1195
        %1460 = vmatpush1.msra.mxu0 %v1194
        %1461 = vmatprep.subr.mxu0 %v1199
        %1462 = vmatpush1.msra.mxu0 %v1198
        %1463 = vmatprep.subr.mxu0 %v1203
        %1464 = vmatpush1.msra.mxu0 %v1202
        %1465 = vmatprep.subr.mxu0 %v1207
        %1466 = vmatpush1.msra.mxu0 %v1206
        %1467 = vmatprep.subr.mxu0 %v1211
        %1468 = vmatpush1.msra.mxu0 %v1210
        %1469 = vmatprep.subr.mxu0 %v1215
        %1470 = vmatpush1.msra.mxu0 %v1214
        %1471 = vmatprep.subr.mxu0 %v1219
        %1472 = vmatpush1.msra.mxu0 %v1218
        %1473 = vmatprep.subr.mxu0 %v1223
        %1474 = vmatpush1.msra.mxu0 %v1222
        %1475 = vmatprep.subr.mxu0 %v1227
        %1476 = vmatpush1.msra.mxu0 %v1226
        %1477 = vmatprep.subr.mxu0 %v1231
        %1478 = vmatpush1.msra.mxu0 %v1230
        %1479 = vmatprep.subr.mxu0 %v1235
        %1480 = vmatpush1.msra.mxu0 %v1234
        %1481 = vmatprep.subr.mxu0 %v1239
        %1482 = vmatpush1.msra.mxu0 %v1238
        %1483 = vmatprep.subr.mxu0 0.0
        %1484 = vmatpush1.msra.mxu0 0.0
        %1485 = vmatprep.subr.mxu0 0.0
        %1486 = vmatpush1.msra.mxu0 0.0
        %1487 = vmatprep.subr.mxu0 0.0
        %1488 = vmatpush1.msra.mxu0 0.0
        %1489 = vmatprep.subr.mxu0 0.0
        %1490 = vmatpush1.msra.mxu0 0.0
        %1491 = vmatprep.subr.mxu0 0.0
        %1492 = vmatpush1.msra.mxu0 0.0
        %1493 = vmatprep.subr.mxu0 0.0
        %1494 = vmatpush1.msra.mxu0 0.0
        %1495 = vmatprep.subr.mxu0 0.0
        %1496 = vmatpush1.msra.mxu0 0.0
        %1497 = vmatprep.subr.mxu0 0.0
        %1498 = vmatpush1.msra.mxu0 0.0
        %1499 = vmatprep.subr.mxu0 0.0
        %1500 = vmatpush1.msra.mxu0 0.0
        %1501 = vmatprep.subr.mxu0 0.0
        %1502 = vmatpush1.msra.mxu0 0.0
        %1503 = vmatprep.subr.mxu0 0.0
        %1504 = vmatpush1.msra.mxu0 0.0
        %1505 = vmatprep.subr.mxu0 0.0
        %1506 = vmatpush1.msra.mxu0 0.0
        %1507 = vmatprep.subr.mxu0 0.0
        %1508 = vmatpush1.msra.mxu0 0.0
        %1509 = vmatprep.subr.mxu0 0.0
        %1510 = vmatpush1.msra.mxu0 0.0
        %1511 = vmatprep.subr.mxu0 0.0
        %1512 = vmatpush1.msra.mxu0 0.0
        %1513 = vmatprep.subr.mxu0 0.0
        %1514 = vmatpush1.msra.mxu0 0.0
        %1515 = vmatprep.mubr.f32.mxu0 0.0
        %1516 = vmatmul.mubr.f32.gmra.mrb[0].mxu0 %v1245
        %v1517 = vpop.f32.mrb[0].mxu0
        %v1518 = vadd.f32 0.0, %v1517
        %v1519 = vpop.f32.mrb[0].mxu0
        %v1520 = vadd.f32 0.0, %v1519
        %1521 = vdwg.mxu0
        %1522 = vmatprep.subr.mxu0 %v1181
        %1523 = vmatpush1.msra.mxu0 %v1180
        %1524 = vmatprep.subr.mxu0 %v1185
        %1525 = vmatpush1.msra.mxu0 %v1184
        %1526 = vmatprep.subr.mxu0 %v1189
        %1527 = vmatpush1.msra.mxu0 %v1188
        %1528 = vmatprep.subr.mxu0 %v1193
        %1529 = vmatpush1.msra.mxu0 %v1192
        %1530 = vmatprep.subr.mxu0 %v1197
        %1531 = vmatpush1.msra.mxu0 %v1196
        %1532 = vmatprep.subr.mxu0 %v1201
        %1533 = vmatpush1.msra.mxu0 %v1200
        %1534 = vmatprep.subr.mxu0 %v1205
        %1535 = vmatpush1.msra.mxu0 %v1204
        %1536 = vmatprep.subr.mxu0 %v1209
        %1537 = vmatpush1.msra.mxu0 %v1208
        %1538 = vmatprep.subr.mxu0 %v1213
        %1539 = vmatpush1.msra.mxu0 %v1212
        %1540 = vmatprep.subr.mxu0 %v1217
        %1541 = vmatpush1.msra.mxu0 %v1216
        %1542 = vmatprep.subr.mxu0 %v1221
        %1543 = vmatpush1.msra.mxu0 %v1220
        %1544 = vmatprep.subr.mxu0 %v1225
        %1545 = vmatpush1.msra.mxu0 %v1224
        %1546 = vmatprep.subr.mxu0 %v1229
        %1547 = vmatpush1.msra.mxu0 %v1228
        %1548 = vmatprep.subr.mxu0 %v1233
        %1549 = vmatpush1.msra.mxu0 %v1232
        %1550 = vmatprep.subr.mxu0 %v1237
        %1551 = vmatpush1.msra.mxu0 %v1236
        %1552 = vmatprep.subr.mxu0 %v1241
        %1553 = vmatpush1.msra.mxu0 %v1240
        %1554 = vmatprep.subr.mxu0 0.0
        %1555 = vmatpush1.msra.mxu0 0.0
        %1556 = vmatprep.subr.mxu0 0.0
        %1557 = vmatpush1.msra.mxu0 0.0
        %1558 = vmatprep.subr.mxu0 0.0
        %1559 = vmatpush1.msra.mxu0 0.0
        %1560 = vmatprep.subr.mxu0 0.0
        %1561 = vmatpush1.msra.mxu0 0.0
        %1562 = vmatprep.subr.mxu0 0.0
        %1563 = vmatpush1.msra.mxu0 0.0
        %1564 = vmatprep.subr.mxu0 0.0
        %1565 = vmatpush1.msra.mxu0 0.0
        %1566 = vmatprep.subr.mxu0 0.0
        %1567 = vmatpush1.msra.mxu0 0.0
        %1568 = vmatprep.subr.mxu0 0.0
        %1569 = vmatpush1.msra.mxu0 0.0
        %1570 = vmatprep.subr.mxu0 0.0
        %1571 = vmatpush1.msra.mxu0 0.0
        %1572 = vmatprep.subr.mxu0 0.0
        %1573 = vmatpush1.msra.mxu0 0.0
        %1574 = vmatprep.subr.mxu0 0.0
        %1575 = vmatpush1.msra.mxu0 0.0
        %1576 = vmatprep.subr.mxu0 0.0
        %1577 = vmatpush1.msra.mxu0 0.0
        %1578 = vmatprep.subr.mxu0 0.0
        %1579 = vmatpush1.msra.mxu0 0.0
        %1580 = vmatprep.subr.mxu0 0.0
        %1581 = vmatpush1.msra.mxu0 0.0
        %1582 = vmatprep.subr.mxu0 0.0
        %1583 = vmatpush1.msra.mxu0 0.0
        %1584 = vmatprep.subr.mxu0 0.0
        %1585 = vmatpush1.msra.mxu0 0.0
        %1586 = vmatprep.mubr.f32.mxu0 0.0
        %1587 = vmatmul.mubr.f32.gmra.mrb[0].mxu0 %v1245
        %v1588 = vpop.f32.mrb[0].mxu0
        %v1589 = vadd.f32 0.0, %v1588
        %v1590 = vpop.f32.mrb[0].mxu0
        %v1591 = vadd.f32 0.0, %v1590
        %1592 = vdwg.mxu0
        %v1593 = vadd.f32 %v1447, %v1518
        %v1594 = vadd.f32 %v1448, %v1520
        %v1595 = vadd.f32 %v1449, %v1589
        %v1596 = vadd.f32 %v1450, %v1591
        %v1597 = vxor.u32 %v1593, 2147483648
        %v1598 = vmul.f32 %v1597, 1.442695
        %v1599 = vpow.pop %v1598
        %v1600 = vadd.f32 %v1599, 1.0
        %v1601 = vrcp.pop %v1600
        %v1602 = vmul.f32 1.0, %v1601
        %v1603 = vxor.u32 %v1594, 2147483648
        %v1604 = vmul.f32 %v1603, 1.442695
        %v1605 = vpow.pop %v1604
        %v1606 = vadd.f32 %v1605, 1.0
        %v1607 = vrcp.pop %v1606
        %v1608 = vmul.f32 1.0, %v1607
        %v1609 = vtanh.pop %v1595
        %v1610 = vxor.u32 %v1596, 2147483648
        %v1611 = vmul.f32 %v1610, 1.442695
        %v1612 = vpow.pop %v1611
        %v1613 = vadd.f32 %v1612, 1.0
        %v1614 = vrcp.pop %v1613
        %v1615 = vmul.f32 1.0, %v1614
        %v1616 = vmul.f32 %v1608, %v1246
        %v1617 = vmul.f32 %v1602, %v1609
        %v1618 = vadd.f32 %v1616, %v1617
        %v1619 = vtanh.pop %v1618
        %v1620 = vmul.f32 %v1615, %v1619
        %v1621 = vsub.f32 %v1620, %v1245
        %1623 = vset.pattern.permute.xlu0 0
        %1624 = vperm.xlu0 %1623, %v1260
        %v1625 = vpop.permute.xlu0 %1624
        %v1627 = vmul.f32 %v1625, %v1621
        %v1628 = vadd.f32 %v1245, %v1627
        %v1629 = vsub.f32 %v1618, %v1246
        %v1630 = vmul.f32 %v1625, %v1629
        %v1631 = vadd.f32 %v1246, %v1630
        %p1632 = scmp.lt.s32.totalorder %s1249, 13
        %s1633 = scalar_select %p1632, 0.0, -inf
        %p1634 = scmp.lt.s32.totalorder %s1252, 13
        %s1635 = scalar_select %p1634, 0.0, -inf
        %1636 = vset.pattern.permute.xlu0 0
        %1637 = vperm.xlu0 %1636, %v1257
        %v1638 = vpop.permute.xlu0 %1637
        %vm1639 = vcmp.eq.s32.totalorder %v1638, 1
        %v1640 = vstv %s1633
        %v1641 = vsel %vm1639, %v1434, %v1640
        %v1642 = vmax.f32 %v1247, %v1641
        %1643 = vset.pattern.permute.xlu0 0
        %1644 = vperm.xlu0 %1643, %v1259
        %v1645 = vpop.permute.xlu0 %1644
        %vm1646 = vcmp.eq.s32.totalorder %v1645, 1
        %v1647 = vstv %s1635
        %v1648 = vsel %vm1646, %v1620, %v1647
        %v1649 = vmax.f32 %v1248, %v1648
        %s1650 = sadd.s32 %s1249, 1
        %s1651 = sadd.s32 %s1251, 6
        %v1652 = vstv %s1650
        %vm1653 = vcmp.lt.s32.totalorder %v1652, %v1242
        %v1654 = vstv %s1651
        %vm1655 = vcmp.lt.s32.totalorder %v1654, %v1242
        %v1656 = vsel %vm1653, 1, 0
        %v1657 = vcvt.s32.f32 %v1656
        %v1658 = vsel %vm1655, 1, 0
        %v1659 = vcvt.s32.f32 %v1658
        %s1660 = scalar_lea.vmem [#allocation2], 32
        %v1661 = vld [vmem:[%s1660] sm:$0xff]
        %v1662 = vld [vmem:[%s1660 + $0x8] sm:$0xff]
        %v1663 = vld [vmem:[%s1660 + $0x10] sm:$0xff]
        %v1664 = vld [vmem:[%s1660 + $0x18] sm:$0xff]
        %1665 = vmatprep.subr.mxu0 %v1114
        %1666 = vmatpush1.msra.mxu0 %v1113
        %1667 = vmatprep.subr.mxu0 %v1118
        %1668 = vmatpush1.msra.mxu0 %v1117
        %1669 = vmatprep.subr.mxu0 %v1122
        %1670 = vmatpush1.msra.mxu0 %v1121
        %1671 = vmatprep.subr.mxu0 %v1126
        %1672 = vmatpush1.msra.mxu0 %v1125
        %1673 = vmatprep.subr.mxu0 %v1130
        %1674 = vmatpush1.msra.mxu0 %v1129
        %1675 = vmatprep.subr.mxu0 %v1134
        %1676 = vmatpush1.msra.mxu0 %v1133
        %1677 = vmatprep.subr.mxu0 %v1138
        %1678 = vmatpush1.msra.mxu0 %v1137
        %1679 = vmatprep.subr.mxu0 %v1142
        %1680 = vmatpush1.msra.mxu0 %v1141
        %1681 = vmatprep.subr.mxu0 %v1146
        %1682 = vmatpush1.msra.mxu0 %v1145
        %1683 = vmatprep.subr.mxu0 %v1150
        %1684 = vmatpush1.msra.mxu0 %v1149
        %1685 = vmatprep.subr.mxu0 %v1154
        %1686 = vmatpush1.msra.mxu0 %v1153
        %1687 = vmatprep.subr.mxu0 %v1158
        %1688 = vmatpush1.msra.mxu0 %v1157
        %1689 = vmatprep.subr.mxu0 %v1162
        %1690 = vmatpush1.msra.mxu0 %v1161
        %1691 = vmatprep.subr.mxu0 %v1166
        %1692 = vmatpush1.msra.mxu0 %v1165
        %1693 = vmatprep.subr.mxu0 %v1170
        %1694 = vmatpush1.msra.mxu0 %v1169
        %1695 = vmatprep.subr.mxu0 %v1174
        %1696 = vmatpush1.msra.mxu0 %v1173
        %1697 = vmatprep.subr.mxu0 0.0
        %1698 = vmatpush1.msra.mxu0 0.0
        %1699 = vmatprep.subr.mxu0 0.0
        %1700 = vmatpush1.msra.mxu0 0.0
        %1701 = vmatprep.subr.mxu0 0.0
        %1702 = vmatpush1.msra.mxu0 0.0
        %1703 = vmatprep.subr.mxu0 0.0
        %1704 = vmatpush1.msra.mxu0 0.0
        %1705 = vmatprep.subr.mxu0 0.0
        %1706 = vmatpush1.msra.mxu0 0.0
        %1707 = vmatprep.subr.mxu0 0.0
        %1708 = vmatpush1.msra.mxu0 0.0
        %1709 = vmatprep.subr.mxu0 0.0
        %1710 = vmatpush1.msra.mxu0 0.0
        %1711 = vmatprep.subr.mxu0 0.0
        %1712 = vmatpush1.msra.mxu0 0.0
        %1713 = vmatprep.subr.mxu0 0.0
        %1714 = vmatpush1.msra.mxu0 0.0
        %1715 = vmatprep.subr.mxu0 0.0
        %1716 = vmatpush1.msra.mxu0 0.0
        %1717 = vmatprep.subr.mxu0 0.0
        %1718 = vmatpush1.msra.mxu0 0.0
        %1719 = vmatprep.subr.mxu0 0.0
        %1720 = vmatpush1.msra.mxu0 0.0
        %1721 = vmatprep.subr.mxu0 0.0
        %1722 = vmatpush1.msra.mxu0 0.0
        %1723 = vmatprep.subr.mxu0 0.0
        %1724 = vmatpush1.msra.mxu0 0.0
        %1725 = vmatprep.subr.mxu0 0.0
        %1726 = vmatpush1.msra.mxu0 0.0
        %1727 = vmatprep.subr.mxu0 0.0
        %1728 = vmatpush1.msra.mxu0 0.0
        %1729 = vmatprep.mubr.f32.mxu0 0.0
        %1730 = vmatmul.mubr.f32.gmra.mrb[0].mxu0 %v1442
        %v1731 = vpop.f32.mrb[0].mxu0
        %v1732 = vadd.f32 0.0, %v1731
        %v1733 = vpop.f32.mrb[0].mxu0
        %v1734 = vadd.f32 0.0, %v1733
        %1735 = vdwg.mxu0
        %1736 = vmatprep.subr.mxu0 %v1116
        %1737 = vmatpush1.msra.mxu0 %v1115
        %1738 = vmatprep.subr.mxu0 %v1120
        %1739 = vmatpush1.msra.mxu0 %v1119
        %1740 = vmatprep.subr.mxu0 %v1124
        %1741 = vmatpush1.msra.mxu0 %v1123
        %1742 = vmatprep.subr.mxu0 %v1128
        %1743 = vmatpush1.msra.mxu0 %v1127
        %1744 = vmatprep.subr.mxu0 %v1132
        %1745 = vmatpush1.msra.mxu0 %v1131
        %1746 = vmatprep.subr.mxu0 %v1136
        %1747 = vmatpush1.msra.mxu0 %v1135
        %1748 = vmatprep.subr.mxu0 %v1140
        %1749 = vmatpush1.msra.mxu0 %v1139
        %1750 = vmatprep.subr.mxu0 %v1144
        %1751 = vmatpush1.msra.mxu0 %v1143
        %1752 = vmatprep.subr.mxu0 %v1148
        %1753 = vmatpush1.msra.mxu0 %v1147
        %1754 = vmatprep.subr.mxu0 %v1152
        %1755 = vmatpush1.msra.mxu0 %v1151
        %1756 = vmatprep.subr.mxu0 %v1156
        %1757 = vmatpush1.msra.mxu0 %v1155
        %1758 = vmatprep.subr.mxu0 %v1160
        %1759 = vmatpush1.msra.mxu0 %v1159
        %1760 = vmatprep.subr.mxu0 %v1164
        %1761 = vmatpush1.msra.mxu0 %v1163
        %1762 = vmatprep.subr.mxu0 %v1168
        %1763 = vmatpush1.msra.mxu0 %v1167
        %1764 = vmatprep.subr.mxu0 %v1172
        %1765 = vmatpush1.msra.mxu0 %v1171
        %1766 = vmatprep.subr.mxu0 %v1176
        %1767 = vmatpush1.msra.mxu0 %v1175
        %1768 = vmatprep.subr.mxu0 0.0
        %1769 = vmatpush1.msra.mxu0 0.0
        %1770 = vmatprep.subr.mxu0 0.0
        %1771 = vmatpush1.msra.mxu0 0.0
        %1772 = vmatprep.subr.mxu0 0.0
        %1773 = vmatpush1.msra.mxu0 0.0
        %1774 = vmatprep.subr.mxu0 0.0
        %1775 = vmatpush1.msra.mxu0 0.0
        %1776 = vmatprep.subr.mxu0 0.0
        %1777 = vmatpush1.msra.mxu0 0.0
        %1778 = vmatprep.subr.mxu0 0.0
        %1779 = vmatpush1.msra.mxu0 0.0
        %1780 = vmatprep.subr.mxu0 0.0
        %1781 = vmatpush1.msra.mxu0 0.0
        %1782 = vmatprep.subr.mxu0 0.0
        %1783 = vmatpush1.msra.mxu0 0.0
        %1784 = vmatprep.subr.mxu0 0.0
        %1785 = vmatpush1.msra.mxu0 0.0
        %1786 = vmatprep.subr.mxu0 0.0
        %1787 = vmatpush1.msra.mxu0 0.0
        %1788 = vmatprep.subr.mxu0 0.0
        %1789 = vmatpush1.msra.mxu0 0.0
        %1790 = vmatprep.subr.mxu0 0.0
        %1791 = vmatpush1.msra.mxu0 0.0
        %1792 = vmatprep.subr.mxu0 0.0
        %1793 = vmatpush1.msra.mxu0 0.0
        %1794 = vmatprep.subr.mxu0 0.0
        %1795 = vmatpush1.msra.mxu0 0.0
        %1796 = vmatprep.subr.mxu0 0.0
        %1797 = vmatpush1.msra.mxu0 0.0
        %1798 = vmatprep.subr.mxu0 0.0
        %1799 = vmatpush1.msra.mxu0 0.0
        %1800 = vmatprep.mubr.f32.mxu0 0.0
        %1801 = vmatmul.mubr.f32.gmra.mrb[0].mxu0 %v1442
        %v1802 = vpop.f32.mrb[0].mxu0
        %v1803 = vadd.f32 0.0, %v1802
        %v1804 = vpop.f32.mrb[0].mxu0
        %v1805 = vadd.f32 0.0, %v1804
        %1806 = vdwg.mxu0
        %v1807 = vadd.f32 %v1661, %v1732
        %v1808 = vadd.f32 %v1662, %v1734
        %v1809 = vadd.f32 %v1663, %v1803
        %v1810 = vadd.f32 %v1664, %v1805
        %v1811 = vxor.u32 %v1807, 2147483648
        %v1812 = vmul.f32 %v1811, 1.442695
        %v1813 = vpow.pop %v1812
        %v1814 = vadd.f32 %v1813, 1.0
        %v1815 = vrcp.pop %v1814
        %v1816 = vmul.f32 1.0, %v1815
        %v1817 = vxor.u32 %v1808, 2147483648
        %v1818 = vmul.f32 %v1817, 1.442695
        %v1819 = vpow.pop %v1818
        %v1820 = vadd.f32 %v1819, 1.0
        %v1821 = vrcp.pop %v1820
        %v1822 = vmul.f32 1.0, %v1821
        %v1823 = vtanh.pop %v1809
        %v1824 = vxor.u32 %v1810, 2147483648
        %v1825 = vmul.f32 %v1824, 1.442695
        %v1826 = vpow.pop %v1825
        %v1827 = vadd.f32 %v1826, 1.0
        %v1828 = vrcp.pop %v1827
        %v1829 = vmul.f32 1.0, %v1828
        %v1830 = vmul.f32 %v1822, %v1445
        %v1831 = vmul.f32 %v1816, %v1823
        %v1832 = vadd.f32 %v1830, %v1831
        %v1833 = vtanh.pop %v1832
        %v1834 = vmul.f32 %v1829, %v1833
        %v1835 = vsub.f32 %v1834, %v1442
        %1837 = vset.pattern.permute.xlu0 0
        %1838 = vperm.xlu0 %1837, %v1657
        %v1839 = vpop.permute.xlu0 %1838
        %v1841 = vmul.f32 %v1839, %v1835
        %v1842 = vadd.f32 %v1442, %v1841
        %v1843 = vsub.f32 %v1832, %v1445
        %v1844 = vmul.f32 %v1839, %v1843
        %v1845 = vadd.f32 %v1445, %v1844
        %s1846 = scalar_lea.vmem [#allocation3], 192
        %v1847 = vld [vmem:[%s1846] sm:$0xff]
        %v1848 = vld [vmem:[%s1846 + $0x8] sm:$0xff]
        %v1849 = vld [vmem:[%s1846 + $0x10] sm:$0xff]
        %v1850 = vld [vmem:[%s1846 + $0x18] sm:$0xff]
        %1851 = vmatprep.subr.mxu0 %v1179
        %1852 = vmatpush1.msra.mxu0 %v1178
        %1853 = vmatprep.subr.mxu0 %v1183
        %1854 = vmatpush1.msra.mxu0 %v1182
        %1855 = vmatprep.subr.mxu0 %v1187
        %1856 = vmatpush1.msra.mxu0 %v1186
        %1857 = vmatprep.subr.mxu0 %v1191
        %1858 = vmatpush1.msra.mxu0 %v1190
        %1859 = vmatprep.subr.mxu0 %v1195
        %1860 = vmatpush1.msra.mxu0 %v1194
        %1861 = vmatprep.subr.mxu0 %v1199
        %1862 = vmatpush1.msra.mxu0 %v1198
        %1863 = vmatprep.subr.mxu0 %v1203
        %1864 = vmatpush1.msra.mxu0 %v1202
        %1865 = vmatprep.subr.mxu0 %v1207
        %1866 = vmatpush1.msra.mxu0 %v1206
        %1867 = vmatprep.subr.mxu0 %v1211
        %1868 = vmatpush1.msra.mxu0 %v1210
        %1869 = vmatprep.subr.mxu0 %v1215
        %1870 = vmatpush1.msra.mxu0 %v1214
        %1871 = vmatprep.subr.mxu0 %v1219
        %1872 = vmatpush1.msra.mxu0 %v1218
        %1873 = vmatprep.subr.mxu0 %v1223
        %1874 = vmatpush1.msra.mxu0 %v1222
        %1875 = vmatprep.subr.mxu0 %v1227
        %1876 = vmatpush1.msra.mxu0 %v1226
        %1877 = vmatprep.subr.mxu0 %v1231
        %1878 = vmatpush1.msra.mxu0 %v1230
        %1879 = vmatprep.subr.mxu0 %v1235
        %1880 = vmatpush1.msra.mxu0 %v1234
        %1881 = vmatprep.subr.mxu0 %v1239
        %1882 = vmatpush1.msra.mxu0 %v1238
        %1883 = vmatprep.subr.mxu0 0.0
        %1884 = vmatpush1.msra.mxu0 0.0
        %1885 = vmatprep.subr.mxu0 0.0
        %1886 = vmatpush1.msra.mxu0 0.0
        %1887 = vmatprep.subr.mxu0 0.0
        %1888 = vmatpush1.msra.mxu0 0.0
        %1889 = vmatprep.subr.mxu0 0.0
        %1890 = vmatpush1.msra.mxu0 0.0
        %1891 = vmatprep.subr.mxu0 0.0
        %1892 = vmatpush1.msra.mxu0 0.0
        %1893 = vmatprep.subr.mxu0 0.0
        %1894 = vmatpush1.msra.mxu0 0.0
        %1895 = vmatprep.subr.mxu0 0.0
        %1896 = vmatpush1.msra.mxu0 0.0
        %1897 = vmatprep.subr.mxu0 0.0
        %1898 = vmatpush1.msra.mxu0 0.0
        %1899 = vmatprep.subr.mxu0 0.0
        %1900 = vmatpush1.msra.mxu0 0.0
        %1901 = vmatprep.subr.mxu0 0.0
        %1902 = vmatpush1.msra.mxu0 0.0
        %1903 = vmatprep.subr.mxu0 0.0
        %1904 = vmatpush1.msra.mxu0 0.0
        %1905 = vmatprep.subr.mxu0 0.0
        %1906 = vmatpush1.msra.mxu0 0.0
        %1907 = vmatprep.subr.mxu0 0.0
        %1908 = vmatpush1.msra.mxu0 0.0
        %1909 = vmatprep.subr.mxu0 0.0
        %1910 = vmatpush1.msra.mxu0 0.0
        %1911 = vmatprep.subr.mxu0 0.0
        %1912 = vmatpush1.msra.mxu0 0.0
        %1913 = vmatprep.subr.mxu0 0.0
        %1914 = vmatpush1.msra.mxu0 0.0
        %1915 = vmatprep.mubr.f32.mxu0 0.0
        %1916 = vmatmul.mubr.f32.gmra.mrb[0].mxu0 %v1628
        %v1917 = vpop.f32.mrb[0].mxu0
        %v1918 = vadd.f32 0.0, %v1917
        %v1919 = vpop.f32.mrb[0].mxu0
        %v1920 = vadd.f32 0.0, %v1919
        %1921 = vdwg.mxu0
        %1922 = vmatprep.subr.mxu0 %v1181
        %1923 = vmatpush1.msra.mxu0 %v1180
        %1924 = vmatprep.subr.mxu0 %v1185
        %1925 = vmatpush1.msra.mxu0 %v1184
        %1926 = vmatprep.subr.mxu0 %v1189
        %1927 = vmatpush1.msra.mxu0 %v1188
        %1928 = vmatprep.subr.mxu0 %v1193
        %1929 = vmatpush1.msra.mxu0 %v1192
        %1930 = vmatprep.subr.mxu0 %v1197
        %1931 = vmatpush1.msra.mxu0 %v1196
        %1932 = vmatprep.subr.mxu0 %v1201
        %1933 = vmatpush1.msra.mxu0 %v1200
        %1934 = vmatprep.subr.mxu0 %v1205
        %1935 = vmatpush1.msra.mxu0 %v1204
        %1936 = vmatprep.subr.mxu0 %v1209
        %1937 = vmatpush1.msra.mxu0 %v1208
        %1938 = vmatprep.subr.mxu0 %v1213
        %1939 = vmatpush1.msra.mxu0 %v1212
        %1940 = vmatprep.subr.mxu0 %v1217
        %1941 = vmatpush1.msra.mxu0 %v1216
        %1942 = vmatprep.subr.mxu0 %v1221
        %1943 = vmatpush1.msra.mxu0 %v1220
        %1944 = vmatprep.subr.mxu0 %v1225
        %1945 = vmatpush1.msra.mxu0 %v1224
        %1946 = vmatprep.subr.mxu0 %v1229
        %1947 = vmatpush1.msra.mxu0 %v1228
        %1948 = vmatprep.subr.mxu0 %v1233
        %1949 = vmatpush1.msra.mxu0 %v1232
        %1950 = vmatprep.subr.mxu0 %v1237
        %1951 = vmatpush1.msra.mxu0 %v1236
        %1952 = vmatprep.subr.mxu0 %v1241
        %1953 = vmatpush1.msra.mxu0 %v1240
        %1954 = vmatprep.subr.mxu0 0.0
        %1955 = vmatpush1.msra.mxu0 0.0
        %1956 = vmatprep.subr.mxu0 0.0
        %1957 = vmatpush1.msra.mxu0 0.0
        %1958 = vmatprep.subr.mxu0 0.0
        %1959 = vmatpush1.msra.mxu0 0.0
        %1960 = vmatprep.subr.mxu0 0.0
        %1961 = vmatpush1.msra.mxu0 0.0
        %1962 = vmatprep.subr.mxu0 0.0
        %1963 = vmatpush1.msra.mxu0 0.0
        %1964 = vmatprep.subr.mxu0 0.0
        %1965 = vmatpush1.msra.mxu0 0.0
        %1966 = vmatprep.subr.mxu0 0.0
        %1967 = vmatpush1.msra.mxu0 0.0
        %1968 = vmatprep.subr.mxu0 0.0
        %1969 = vmatpush1.msra.mxu0 0.0
        %1970 = vmatprep.subr.mxu0 0.0
        %1971 = vmatpush1.msra.mxu0 0.0
        %1972 = vmatprep.subr.mxu0 0.0
        %1973 = vmatpush1.msra.mxu0 0.0
        %1974 = vmatprep.subr.mxu0 0.0
        %1975 = vmatpush1.msra.mxu0 0.0
        %1976 = vmatprep.subr.mxu0 0.0
        %1977 = vmatpush1.msra.mxu0 0.0
        %1978 = vmatprep.subr.mxu0 0.0
        %1979 = vmatpush1.msra.mxu0 0.0
        %1980 = vmatprep.subr.mxu0 0.0
        %1981 = vmatpush1.msra.mxu0 0.0
        %1982 = vmatprep.subr.mxu0 0.0
        %1983 = vmatpush1.msra.mxu0 0.0
        %1984 = vmatprep.subr.mxu0 0.0
        %1985 = vmatpush1.msra.mxu0 0.0
        %1986 = vmatprep.mubr.f32.mxu0 0.0
        %1987 = vmatmul.mubr.f32.gmra.mrb[0].mxu0 %v1628
        %v1988 = vpop.f32.mrb[0].mxu0
        %v1989 = vadd.f32 0.0, %v1988
        %v1990 = vpop.f32.mrb[0].mxu0
        %v1991 = vadd.f32 0.0, %v1990
        %1992 = vdwg.mxu0
        %v1993 = vadd.f32 %v1847, %v1918
        %v1994 = vadd.f32 %v1848, %v1920
        %v1995 = vadd.f32 %v1849, %v1989
        %v1996 = vadd.f32 %v1850, %v1991
        %v1997 = vxor.u32 %v1993, 2147483648
        %v1998 = vmul.f32 %v1997, 1.442695
        %v1999 = vpow.pop %v1998
        %v2000 = vadd.f32 %v1999, 1.0
        %v2001 = vrcp.pop %v2000
        %v2002 = vmul.f32 1.0, %v2001
        %v2003 = vxor.u32 %v1994, 2147483648
        %v2004 = vmul.f32 %v2003, 1.442695
        %v2005 = vpow.pop %v2004
        %v2006 = vadd.f32 %v2005, 1.0
        %v2007 = vrcp.pop %v2006
        %v2008 = vmul.f32 1.0, %v2007
        %v2009 = vtanh.pop %v1995
        %v2010 = vxor.u32 %v1996, 2147483648
        %v2011 = vmul.f32 %v2010, 1.442695
        %v2012 = vpow.pop %v2011
        %v2013 = vadd.f32 %v2012, 1.0
        %v2014 = vrcp.pop %v2013
        %v2015 = vmul.f32 1.0, %v2014
        %v2016 = vmul.f32 %v2008, %v1631
        %v2017 = vmul.f32 %v2002, %v2009
        %v2018 = vadd.f32 %v2016, %v2017
        %v2019 = vtanh.pop %v2018
        %v2020 = vmul.f32 %v2015, %v2019
        %v2021 = vsub.f32 %v2020, %v1628
        %2023 = vset.pattern.permute.xlu0 0
        %2024 = vperm.xlu0 %2023, %v1659
        %v2025 = vpop.permute.xlu0 %2024
        %v2027 = vmul.f32 %v2025, %v2021
        %v2028 = vadd.f32 %v1628, %v2027
        %v2029 = vsub.f32 %v2018, %v1631
        %v2030 = vmul.f32 %v2025, %v2029
        %v2031 = vadd.f32 %v1631, %v2030
        %p2032 = scmp.lt.s32.totalorder %s1650, 13
        %s2033 = scalar_select %p2032, 0.0, -inf
        %p2034 = scmp.lt.s32.totalorder %s1651, 13
        %s2035 = scalar_select %p2034, 0.0, -inf
        %2036 = vset.pattern.permute.xlu0 0
        %2037 = vperm.xlu0 %2036, %v1656
        %v2038 = vpop.permute.xlu0 %2037
        %vm2039 = vcmp.eq.s32.totalorder %v2038, 1
        %v2040 = vstv %s2033
        %v2041 = vsel %vm2039, %v1834, %v2040
        %v2042 = vmax.f32 %v1642, %v2041
        %2043 = vset.pattern.permute.xlu0 0
        %2044 = vperm.xlu0 %2043, %v1658
        %v2045 = vpop.permute.xlu0 %2044
        %vm2046 = vcmp.eq.s32.totalorder %v2045, 1
        %v2047 = vstv %s2035
        %v2048 = vsel %vm2046, %v2020, %v2047
        %v2049 = vmax.f32 %v1649, %v2048
        %s2050 = sadd.s32 %s1249, 2
        %s2051 = sadd.s32 %s1251, 5
        %v2052 = vstv %s2050
        %vm2053 = vcmp.lt.s32.totalorder %v2052, %v1242
        %v2054 = vstv %s2051
        %vm2055 = vcmp.lt.s32.totalorder %v2054, %v1242
        %v2056 = vsel %vm2053, 1, 0
        %v2057 = vcvt.s32.f32 %v2056
        %v2058 = vsel %vm2055, 1, 0
        %v2059 = vcvt.s32.f32 %v2058
        %s2060 = scalar_lea.vmem [#allocation2], 64
        %v2061 = vld [vmem:[%s2060] sm:$0xff]
        %v2062 = vld [vmem:[%s2060 + $0x8] sm:$0xff]
        %v2063 = vld [vmem:[%s2060 + $0x10] sm:$0xff]
        %v2064 = vld [vmem:[%s2060 + $0x18] sm:$0xff]
        %2065 = vmatprep.subr.mxu0 %v1114
        %2066 = vmatpush1.msra.mxu0 %v1113
        %2067 = vmatprep.subr.mxu0 %v1118
        %2068 = vmatpush1.msra.mxu0 %v1117
        %2069 = vmatprep.subr.mxu0 %v1122
        %2070 = vmatpush1.msra.mxu0 %v1121
        %2071 = vmatprep.subr.mxu0 %v1126
        %2072 = vmatpush1.msra.mxu0 %v1125
        %2073 = vmatprep.subr.mxu0 %v1130
        %2074 = vmatpush1.msra.mxu0 %v1129
        %2075 = vmatprep.subr.mxu0 %v1134
        %2076 = vmatpush1.msra.mxu0 %v1133
        %2077 = vmatprep.subr.mxu0 %v1138
        %2078 = vmatpush1.msra.mxu0 %v1137
        %2079 = vmatprep.subr.mxu0 %v1142
        %2080 = vmatpush1.msra.mxu0 %v1141
        %2081 = vmatprep.subr.mxu0 %v1146
        %2082 = vmatpush1.msra.mxu0 %v1145
        %2083 = vmatprep.subr.mxu0 %v1150
        %2084 = vmatpush1.msra.mxu0 %v1149
        %2085 = vmatprep.subr.mxu0 %v1154
        %2086 = vmatpush1.msra.mxu0 %v1153
        %2087 = vmatprep.subr.mxu0 %v1158
        %2088 = vmatpush1.msra.mxu0 %v1157
        %2089 = vmatprep.subr.mxu0 %v1162
        %2090 = vmatpush1.msra.mxu0 %v1161
        %2091 = vmatprep.subr.mxu0 %v1166
        %2092 = vmatpush1.msra.mxu0 %v1165
        %2093 = vmatprep.subr.mxu0 %v1170
        %2094 = vmatpush1.msra.mxu0 %v1169
        %2095 = vmatprep.subr.mxu0 %v1174
        %2096 = vmatpush1.msra.mxu0 %v1173
        %2097 = vmatprep.subr.mxu0 0.0
        %2098 = vmatpush1.msra.mxu0 0.0
        %2099 = vmatprep.subr.mxu0 0.0
        %2100 = vmatpush1.msra.mxu0 0.0
        %2101 = vmatprep.subr.mxu0 0.0
        %2102 = vmatpush1.msra.mxu0 0.0
        %2103 = vmatprep.subr.mxu0 0.0
        %2104 = vmatpush1.msra.mxu0 0.0
        %2105 = vmatprep.subr.mxu0 0.0
        %2106 = vmatpush1.msra.mxu0 0.0
        %2107 = vmatprep.subr.mxu0 0.0
        %2108 = vmatpush1.msra.mxu0 0.0
        %2109 = vmatprep.subr.mxu0 0.0
        %2110 = vmatpush1.msra.mxu0 0.0
        %2111 = vmatprep.subr.mxu0 0.0
        %2112 = vmatpush1.msra.mxu0 0.0
        %2113 = vmatprep.subr.mxu0 0.0
        %2114 = vmatpush1.msra.mxu0 0.0
        %2115 = vmatprep.subr.mxu0 0.0
        %2116 = vmatpush1.msra.mxu0 0.0
        %2117 = vmatprep.subr.mxu0 0.0
        %2118 = vmatpush1.msra.mxu0 0.0
        %2119 = vmatprep.subr.mxu0 0.0
        %2120 = vmatpush1.msra.mxu0 0.0
        %2121 = vmatprep.subr.mxu0 0.0
        %2122 = vmatpush1.msra.mxu0 0.0
        %2123 = vmatprep.subr.mxu0 0.0
        %2124 = vmatpush1.msra.mxu0 0.0
        %2125 = vmatprep.subr.mxu0 0.0
        %2126 = vmatpush1.msra.mxu0 0.0
        %2127 = vmatprep.subr.mxu0 0.0
        %2128 = vmatpush1.msra.mxu0 0.0
        %2129 = vmatprep.mubr.f32.mxu0 0.0
        %2130 = vmatmul.mubr.f32.gmra.mrb[0].mxu0 %v1842
        %v2131 = vpop.f32.mrb[0].mxu0
        %v2132 = vadd.f32 0.0, %v2131
        %v2133 = vpop.f32.mrb[0].mxu0
        %v2134 = vadd.f32 0.0, %v2133
        %2135 = vdwg.mxu0
        %2136 = vmatprep.subr.mxu0 %v1116
        %2137 = vmatpush1.msra.mxu0 %v1115
        %2138 = vmatprep.subr.mxu0 %v1120
        %2139 = vmatpush1.msra.mxu0 %v1119
        %2140 = vmatprep.subr.mxu0 %v1124
        %2141 = vmatpush1.msra.mxu0 %v1123
        %2142 = vmatprep.subr.mxu0 %v1128
        %2143 = vmatpush1.msra.mxu0 %v1127
        %2144 = vmatprep.subr.mxu0 %v1132
        %2145 = vmatpush1.msra.mxu0 %v1131
        %2146 = vmatprep.subr.mxu0 %v1136
        %2147 = vmatpush1.msra.mxu0 %v1135
        %2148 = vmatprep.subr.mxu0 %v1140
        %2149 = vmatpush1.msra.mxu0 %v1139
        %2150 = vmatprep.subr.mxu0 %v1144
        %2151 = vmatpush1.msra.mxu0 %v1143
        %2152 = vmatprep.subr.mxu0 %v1148
        %2153 = vmatpush1.msra.mxu0 %v1147
        %2154 = vmatprep.subr.mxu0 %v1152
        %2155 = vmatpush1.msra.mxu0 %v1151
        %2156 = vmatprep.subr.mxu0 %v1156
        %2157 = vmatpush1.msra.mxu0 %v1155
        %2158 = vmatprep.subr.mxu0 %v1160
        %2159 = vmatpush1.msra.mxu0 %v1159
        %2160 = vmatprep.subr.mxu0 %v1164
        %2161 = vmatpush1.msra.mxu0 %v1163
        %2162 = vmatprep.subr.mxu0 %v1168
        %2163 = vmatpush1.msra.mxu0 %v1167
        %2164 = vmatprep.subr.mxu0 %v1172
        %2165 = vmatpush1.msra.mxu0 %v1171
        %2166 = vmatprep.subr.mxu0 %v1176
        %2167 = vmatpush1.msra.mxu0 %v1175
        %2168 = vmatprep.subr.mxu0 0.0
        %2169 = vmatpush1.msra.mxu0 0.0
        %2170 = vmatprep.subr.mxu0 0.0
        %2171 = vmatpush1.msra.mxu0 0.0
        %2172 = vmatprep.subr.mxu0 0.0
        %2173 = vmatpush1.msra.mxu0 0.0
        %2174 = vmatprep.subr.mxu0 0.0
        %2175 = vmatpush1.msra.mxu0 0.0
        %2176 = vmatprep.subr.mxu0 0.0
        %2177 = vmatpush1.msra.mxu0 0.0
        %2178 = vmatprep.subr.mxu0 0.0
        %2179 = vmatpush1.msra.mxu0 0.0
        %2180 = vmatprep.subr.mxu0 0.0
        %2181 = vmatpush1.msra.mxu0 0.0
        %2182 = vmatprep.subr.mxu0 0.0
        %2183 = vmatpush1.msra.mxu0 0.0
        %2184 = vmatprep.subr.mxu0 0.0
        %2185 = vmatpush1.msra.mxu0 0.0
        %2186 = vmatprep.subr.mxu0 0.0
        %2187 = vmatpush1.msra.mxu0 0.0
        %2188 = vmatprep.subr.mxu0 0.0
        %2189 = vmatpush1.msra.mxu0 0.0
        %2190 = vmatprep.subr.mxu0 0.0
        %2191 = vmatpush1.msra.mxu0 0.0
        %2192 = vmatprep.subr.mxu0 0.0
        %2193 = vmatpush1.msra.mxu0 0.0
        %2194 = vmatprep.subr.mxu0 0.0
        %2195 = vmatpush1.msra.mxu0 0.0
        %2196 = vmatprep.subr.mxu0 0.0
        %2197 = vmatpush1.msra.mxu0 0.0
        %2198 = vmatprep.subr.mxu0 0.0
        %2199 = vmatpush1.msra.mxu0 0.0
        %2200 = vmatprep.mubr.f32.mxu0 0.0
        %2201 = vmatmul.mubr.f32.gmra.mrb[0].mxu0 %v1842
        %v2202 = vpop.f32.mrb[0].mxu0
        %v2203 = vadd.f32 0.0, %v2202
        %v2204 = vpop.f32.mrb[0].mxu0
        %v2205 = vadd.f32 0.0, %v2204
        %2206 = vdwg.mxu0
        %v2207 = vadd.f32 %v2061, %v2132
        %v2208 = vadd.f32 %v2062, %v2134
        %v2209 = vadd.f32 %v2063, %v2203
        %v2210 = vadd.f32 %v2064, %v2205
        %v2211 = vxor.u32 %v2207, 2147483648
        %v2212 = vmul.f32 %v2211, 1.442695
        %v2213 = vpow.pop %v2212
        %v2214 = vadd.f32 %v2213, 1.0
        %v2215 = vrcp.pop %v2214
        %v2216 = vmul.f32 1.0, %v2215
        %v2217 = vxor.u32 %v2208, 2147483648
        %v2218 = vmul.f32 %v2217, 1.442695
        %v2219 = vpow.pop %v2218
        %v2220 = vadd.f32 %v2219, 1.0
        %v2221 = vrcp.pop %v2220
        %v2222 = vmul.f32 1.0, %v2221
        %v2223 = vtanh.pop %v2209
        %v2224 = vxor.u32 %v2210, 2147483648
        %v2225 = vmul.f32 %v2224, 1.442695
        %v2226 = vpow.pop %v2225
        %v2227 = vadd.f32 %v2226, 1.0
        %v2228 = vrcp.pop %v2227
        %v2229 = vmul.f32 1.0, %v2228
        %v2230 = vmul.f32 %v2222, %v1845
        %v2231 = vmul.f32 %v2216, %v2223
        %v2232 = vadd.f32 %v2230, %v2231
        %v2233 = vtanh.pop %v2232
        %v2234 = vmul.f32 %v2229, %v2233
        %v2235 = vsub.f32 %v2234, %v1842
        %2237 = vset.pattern.permute.xlu0 0
        %2238 = vperm.xlu0 %2237, %v2057
        %v2239 = vpop.permute.xlu0 %2238
        %v2241 = vmul.f32 %v2239, %v2235
        %v2242 = vadd.f32 %v1842, %v2241
        %v2243 = vsub.f32 %v2232, %v1845
        %v2244 = vmul.f32 %v2239, %v2243
        %v2245 = vadd.f32 %v1845, %v2244
        %s2246 = scalar_lea.vmem [#allocation3], 160
        %v2247 = vld [vmem:[%s2246] sm:$0xff]
        %v2248 = vld [vmem:[%s2246 + $0x8] sm:$0xff]
        %v2249 = vld [vmem:[%s2246 + $0x10] sm:$0xff]
        %v2250 = vld [vmem:[%s2246 + $0x18] sm:$0xff]
        %2251 = vmatprep.subr.mxu0 %v1179
        %2252 = vmatpush1.msra.mxu0 %v1178
        %2253 = vmatprep.subr.mxu0 %v1183
        %2254 = vmatpush1.msra.mxu0 %v1182
        %2255 = vmatprep.subr.mxu0 %v1187
        %2256 = vmatpush1.msra.mxu0 %v1186
        %2257 = vmatprep.subr.mxu0 %v1191
        %2258 = vmatpush1.msra.mxu0 %v1190
        %2259 = vmatprep.subr.mxu0 %v1195
        %2260 = vmatpush1.msra.mxu0 %v1194
        %2261 = vmatprep.subr.mxu0 %v1199
        %2262 = vmatpush1.msra.mxu0 %v1198
        %2263 = vmatprep.subr.mxu0 %v1203
        %2264 = vmatpush1.msra.mxu0 %v1202
        %2265 = vmatprep.subr.mxu0 %v1207
        %2266 = vmatpush1.msra.mxu0 %v1206
        %2267 = vmatprep.subr.mxu0 %v1211
        %2268 = vmatpush1.msra.mxu0 %v1210
        %2269 = vmatprep.subr.mxu0 %v1215
        %2270 = vmatpush1.msra.mxu0 %v1214
        %2271 = vmatprep.subr.mxu0 %v1219
        %2272 = vmatpush1.msra.mxu0 %v1218
        %2273 = vmatprep.subr.mxu0 %v1223
        %2274 = vmatpush1.msra.mxu0 %v1222
        %2275 = vmatprep.subr.mxu0 %v1227
        %2276 = vmatpush1.msra.mxu0 %v1226
        %2277 = vmatprep.subr.mxu0 %v1231
        %2278 = vmatpush1.msra.mxu0 %v1230
        %2279 = vmatprep.subr.mxu0 %v1235
        %2280 = vmatpush1.msra.mxu0 %v1234
        %2281 = vmatprep.subr.mxu0 %v1239
        %2282 = vmatpush1.msra.mxu0 %v1238
        %2283 = vmatprep.subr.mxu0 0.0
        %2284 = vmatpush1.msra.mxu0 0.0
        %2285 = vmatprep.subr.mxu0 0.0
        %2286 = vmatpush1.msra.mxu0 0.0
        %2287 = vmatprep.subr.mxu0 0.0
        %2288 = vmatpush1.msra.mxu0 0.0
        %2289 = vmatprep.subr.mxu0 0.0
        %2290 = vmatpush1.msra.mxu0 0.0
        %2291 = vmatprep.subr.mxu0 0.0
        %2292 = vmatpush1.msra.mxu0 0.0
        %2293 = vmatprep.subr.mxu0 0.0
        %2294 = vmatpush1.msra.mxu0 0.0
        %2295 = vmatprep.subr.mxu0 0.0
        %2296 = vmatpush1.msra.mxu0 0.0
        %2297 = vmatprep.subr.mxu0 0.0
        %2298 = vmatpush1.msra.mxu0 0.0
        %2299 = vmatprep.subr.mxu0 0.0
        %2300 = vmatpush1.msra.mxu0 0.0
        %2301 = vmatprep.subr.mxu0 0.0
        %2302 = vmatpush1.msra.mxu0 0.0
        %2303 = vmatprep.subr.mxu0 0.0
        %2304 = vmatpush1.msra.mxu0 0.0
        %2305 = vmatprep.subr.mxu0 0.0
        %2306 = vmatpush1.msra.mxu0 0.0
        %2307 = vmatprep.subr.mxu0 0.0
        %2308 = vmatpush1.msra.mxu0 0.0
        %2309 = vmatprep.subr.mxu0 0.0
        %2310 = vmatpush1.msra.mxu0 0.0
        %2311 = vmatprep.subr.mxu0 0.0
        %2312 = vmatpush1.msra.mxu0 0.0
        %2313 = vmatprep.subr.mxu0 0.0
        %2314 = vmatpush1.msra.mxu0 0.0
        %2315 = vmatprep.mubr.f32.mxu0 0.0
        %2316 = vmatmul.mubr.f32.gmra.mrb[0].mxu0 %v2028
        %v2317 = vpop.f32.mrb[0].mxu0
        %v2318 = vadd.f32 0.0, %v2317
        %v2319 = vpop.f32.mrb[0].mxu0
        %v2320 = vadd.f32 0.0, %v2319
        %2321 = vdwg.mxu0
        %2322 = vmatprep.subr.mxu0 %v1181
        %2323 = vmatpush1.msra.mxu0 %v1180
        %2324 = vmatprep.subr.mxu0 %v1185
        %2325 = vmatpush1.msra.mxu0 %v1184
        %2326 = vmatprep.subr.mxu0 %v1189
        %2327 = vmatpush1.msra.mxu0 %v1188
        %2328 = vmatprep.subr.mxu0 %v1193
        %2329 = vmatpush1.msra.mxu0 %v1192
        %2330 = vmatprep.subr.mxu0 %v1197
        %2331 = vmatpush1.msra.mxu0 %v1196
        %2332 = vmatprep.subr.mxu0 %v1201
        %2333 = vmatpush1.msra.mxu0 %v1200
        %2334 = vmatprep.subr.mxu0 %v1205
        %2335 = vmatpush1.msra.mxu0 %v1204
        %2336 = vmatprep.subr.mxu0 %v1209
        %2337 = vmatpush1.msra.mxu0 %v1208
        %2338 = vmatprep.subr.mxu0 %v1213
        %2339 = vmatpush1.msra.mxu0 %v1212
        %2340 = vmatprep.subr.mxu0 %v1217
        %2341 = vmatpush1.msra.mxu0 %v1216
        %2342 = vmatprep.subr.mxu0 %v1221
        %2343 = vmatpush1.msra.mxu0 %v1220
        %2344 = vmatprep.subr.mxu0 %v1225
        %2345 = vmatpush1.msra.mxu0 %v1224
        %2346 = vmatprep.subr.mxu0 %v1229
        %2347 = vmatpush1.msra.mxu0 %v1228
        %2348 = vmatprep.subr.mxu0 %v1233
        %2349 = vmatpush1.msra.mxu0 %v1232
        %2350 = vmatprep.subr.mxu0 %v1237
        %2351 = vmatpush1.msra.mxu0 %v1236
        %2352 = vmatprep.subr.mxu0 %v1241
        %2353 = vmatpush1.msra.mxu0 %v1240
        %2354 = vmatprep.subr.mxu0 0.0
        %2355 = vmatpush1.msra.mxu0 0.0
        %2356 = vmatprep.subr.mxu0 0.0
        %2357 = vmatpush1.msra.mxu0 0.0
        %2358 = vmatprep.subr.mxu0 0.0
        %2359 = vmatpush1.msra.mxu0 0.0
        %2360 = vmatprep.subr.mxu0 0.0
        %2361 = vmatpush1.msra.mxu0 0.0
        %2362 = vmatprep.subr.mxu0 0.0
        %2363 = vmatpush1.msra.mxu0 0.0
        %2364 = vmatprep.subr.mxu0 0.0
        %2365 = vmatpush1.msra.mxu0 0.0
        %2366 = vmatprep.subr.mxu0 0.0
        %2367 = vmatpush1.msra.mxu0 0.0
        %2368 = vmatprep.subr.mxu0 0.0
        %2369 = vmatpush1.msra.mxu0 0.0
        %2370 = vmatprep.subr.mxu0 0.0
        %2371 = vmatpush1.msra.mxu0 0.0
        %2372 = vmatprep.subr.mxu0 0.0
        %2373 = vmatpush1.msra.mxu0 0.0
        %2374 = vmatprep.subr.mxu0 0.0
        %2375 = vmatpush1.msra.mxu0 0.0
        %2376 = vmatprep.subr.mxu0 0.0
        %2377 = vmatpush1.msra.mxu0 0.0
        %2378 = vmatprep.subr.mxu0 0.0
        %2379 = vmatpush1.msra.mxu0 0.0
        %2380 = vmatprep.subr.mxu0 0.0
        %2381 = vmatpush1.msra.mxu0 0.0
        %2382 = vmatprep.subr.mxu0 0.0
        %2383 = vmatpush1.msra.mxu0 0.0
        %2384 = vmatprep.subr.mxu0 0.0
        %2385 = vmatpush1.msra.mxu0 0.0
        %2386 = vmatprep.mubr.f32.mxu0 0.0
        %2387 = vmatmul.mubr.f32.gmra.mrb[0].mxu0 %v2028
        %v2388 = vpop.f32.mrb[0].mxu0
        %v2389 = vadd.f32 0.0, %v2388
        %v2390 = vpop.f32.mrb[0].mxu0
        %v2391 = vadd.f32 0.0, %v2390
        %2392 = vdwg.mxu0
        %v2393 = vadd.f32 %v2247, %v2318
        %v2394 = vadd.f32 %v2248, %v2320
        %v2395 = vadd.f32 %v2249, %v2389
        %v2396 = vadd.f32 %v2250, %v2391
        %v2397 = vxor.u32 %v2393, 2147483648
        %v2398 = vmul.f32 %v2397, 1.442695
        %v2399 = vpow.pop %v2398
        %v2400 = vadd.f32 %v2399, 1.0
        %v2401 = vrcp.pop %v2400
        %v2402 = vmul.f32 1.0, %v2401
        %v2403 = vxor.u32 %v2394, 2147483648
        %v2404 = vmul.f32 %v2403, 1.442695
        %v2405 = vpow.pop %v2404
        %v2406 = vadd.f32 %v2405, 1.0
        %v2407 = vrcp.pop %v2406
        %v2408 = vmul.f32 1.0, %v2407
        %v2409 = vtanh.pop %v2395
        %v2410 = vxor.u32 %v2396, 2147483648
        %v2411 = vmul.f32 %v2410, 1.442695
        %v2412 = vpow.pop %v2411
        %v2413 = vadd.f32 %v2412, 1.0
        %v2414 = vrcp.pop %v2413
        %v2415 = vmul.f32 1.0, %v2414
        %v2416 = vmul.f32 %v2408, %v2031
        %v2417 = vmul.f32 %v2402, %v2409
        %v2418 = vadd.f32 %v2416, %v2417
        %v2419 = vtanh.pop %v2418
        %v2420 = vmul.f32 %v2415, %v2419
        %v2421 = vsub.f32 %v2420, %v2028
        %2423 = vset.pattern.permute.xlu0 0
        %2424 = vperm.xlu0 %2423, %v2059
        %v2425 = vpop.permute.xlu0 %2424
        %v2427 = vmul.f32 %v2425, %v2421
        %v2428 = vadd.f32 %v2028, %v2427
        %v2429 = vsub.f32 %v2418, %v2031
        %v2430 = vmul.f32 %v2425, %v2429
        %v2431 = vadd.f32 %v2031, %v2430
        %p2432 = scmp.lt.s32.totalorder %s2050, 13
        %s2433 = scalar_select %p2432, 0.0, -inf
        %p2434 = scmp.lt.s32.totalorder %s2051, 13
        %s2435 = scalar_select %p2434, 0.0, -inf
        %2436 = vset.pattern.permute.xlu0 0
        %2437 = vperm.xlu0 %2436, %v2056
        %v2438 = vpop.permute.xlu0 %2437
        %vm2439 = vcmp.eq.s32.totalorder %v2438, 1
        %v2440 = vstv %s2433
        %v2441 = vsel %vm2439, %v2234, %v2440
        %v2442 = vmax.f32 %v2042, %v2441
        %2443 = vset.pattern.permute.xlu0 0
        %2444 = vperm.xlu0 %2443, %v2058
        %v2445 = vpop.permute.xlu0 %2444
        %vm2446 = vcmp.eq.s32.totalorder %v2445, 1
        %v2447 = vstv %s2435
        %v2448 = vsel %vm2446, %v2420, %v2447
        %v2449 = vmax.f32 %v2049, %v2448
        %s2450 = sadd.s32 %s1249, 3
        %s2451 = sadd.s32 %s1251, 4
        %v2452 = vstv %s2450
        %vm2453 = vcmp.lt.s32.totalorder %v2452, %v1242
        %v2454 = vstv %s2451
        %vm2455 = vcmp.lt.s32.totalorder %v2454, %v1242
        %v2456 = vsel %vm2453, 1, 0
        %v2457 = vcvt.s32.f32 %v2456
        %v2458 = vsel %vm2455, 1, 0
        %v2459 = vcvt.s32.f32 %v2458
        %s2460 = scalar_lea.vmem [#allocation2], 96
        %v2461 = vld [vmem:[%s2460] sm:$0xff]
        %v2462 = vld [vmem:[%s2460 + $0x8] sm:$0xff]
        %v2463 = vld [vmem:[%s2460 + $0x10] sm:$0xff]
        %v2464 = vld [vmem:[%s2460 + $0x18] sm:$0xff]
        %2465 = vmatprep.subr.mxu0 %v1114
        %2466 = vmatpush1.msra.mxu0 %v1113
        %2467 = vmatprep.subr.mxu0 %v1118
        %2468 = vmatpush1.msra.mxu0 %v1117
        %2469 = vmatprep.subr.mxu0 %v1122
        %2470 = vmatpush1.msra.mxu0 %v1121
        %2471 = vmatprep.subr.mxu0 %v1126
        %2472 = vmatpush1.msra.mxu0 %v1125
        %2473 = vmatprep.subr.mxu0 %v1130
        %2474 = vmatpush1.msra.mxu0 %v1129
        %2475 = vmatprep.subr.mxu0 %v1134
        %2476 = vmatpush1.msra.mxu0 %v1133
        %2477 = vmatprep.subr.mxu0 %v1138
        %2478 = vmatpush1.msra.mxu0 %v1137
        %2479 = vmatprep.subr.mxu0 %v1142
        %2480 = vmatpush1.msra.mxu0 %v1141
        %2481 = vmatprep.subr.mxu0 %v1146
        %2482 = vmatpush1.msra.mxu0 %v1145
        %2483 = vmatprep.subr.mxu0 %v1150
        %2484 = vmatpush1.msra.mxu0 %v1149
        %2485 = vmatprep.subr.mxu0 %v1154
        %2486 = vmatpush1.msra.mxu0 %v1153
        %2487 = vmatprep.subr.mxu0 %v1158
        %2488 = vmatpush1.msra.mxu0 %v1157
        %2489 = vmatprep.subr.mxu0 %v1162
        %2490 = vmatpush1.msra.mxu0 %v1161
        %2491 = vmatprep.subr.mxu0 %v1166
        %2492 = vmatpush1.msra.mxu0 %v1165
        %2493 = vmatprep.subr.mxu0 %v1170
        %2494 = vmatpush1.msra.mxu0 %v1169
        %2495 = vmatprep.subr.mxu0 %v1174
        %2496 = vmatpush1.msra.mxu0 %v1173
        %2497 = vmatprep.subr.mxu0 0.0
        %2498 = vmatpush1.msra.mxu0 0.0
        %2499 = vmatprep.subr.mxu0 0.0
        %2500 = vmatpush1.msra.mxu0 0.0
        %2501 = vmatprep.subr.mxu0 0.0
        %2502 = vmatpush1.msra.mxu0 0.0
        %2503 = vmatprep.subr.mxu0 0.0
        %2504 = vmatpush1.msra.mxu0 0.0
        %2505 = vmatprep.subr.mxu0 0.0
        %2506 = vmatpush1.msra.mxu0 0.0
        %2507 = vmatprep.subr.mxu0 0.0
        %2508 = vmatpush1.msra.mxu0 0.0
        %2509 = vmatprep.subr.mxu0 0.0
        %2510 = vmatpush1.msra.mxu0 0.0
        %2511 = vmatprep.subr.mxu0 0.0
        %2512 = vmatpush1.msra.mxu0 0.0
        %2513 = vmatprep.subr.mxu0 0.0
        %2514 = vmatpush1.msra.mxu0 0.0
        %2515 = vmatprep.subr.mxu0 0.0
        %2516 = vmatpush1.msra.mxu0 0.0
        %2517 = vmatprep.subr.mxu0 0.0
        %2518 = vmatpush1.msra.mxu0 0.0
        %2519 = vmatprep.subr.mxu0 0.0
        %2520 = vmatpush1.msra.mxu0 0.0
        %2521 = vmatprep.subr.mxu0 0.0
        %2522 = vmatpush1.msra.mxu0 0.0
        %2523 = vmatprep.subr.mxu0 0.0
        %2524 = vmatpush1.msra.mxu0 0.0
        %2525 = vmatprep.subr.mxu0 0.0
        %2526 = vmatpush1.msra.mxu0 0.0
        %2527 = vmatprep.subr.mxu0 0.0
        %2528 = vmatpush1.msra.mxu0 0.0
        %2529 = vmatprep.mubr.f32.mxu0 0.0
        %2530 = vmatmul.mubr.f32.gmra.mrb[0].mxu0 %v2242
        %v2531 = vpop.f32.mrb[0].mxu0
        %v2532 = vadd.f32 0.0, %v2531
        %v2533 = vpop.f32.mrb[0].mxu0
        %v2534 = vadd.f32 0.0, %v2533
        %2535 = vdwg.mxu0
        %2536 = vmatprep.subr.mxu0 %v1116
        %2537 = vmatpush1.msra.mxu0 %v1115
        %2538 = vmatprep.subr.mxu0 %v1120
        %2539 = vmatpush1.msra.mxu0 %v1119
        %2540 = vmatprep.subr.mxu0 %v1124
        %2541 = vmatpush1.msra.mxu0 %v1123
        %2542 = vmatprep.subr.mxu0 %v1128
        %2543 = vmatpush1.msra.mxu0 %v1127
        %2544 = vmatprep.subr.mxu0 %v1132
        %2545 = vmatpush1.msra.mxu0 %v1131
        %2546 = vmatprep.subr.mxu0 %v1136
        %2547 = vmatpush1.msra.mxu0 %v1135
        %2548 = vmatprep.subr.mxu0 %v1140
        %2549 = vmatpush1.msra.mxu0 %v1139
        %2550 = vmatprep.subr.mxu0 %v1144
        %2551 = vmatpush1.msra.mxu0 %v1143
        %2552 = vmatprep.subr.mxu0 %v1148
        %2553 = vmatpush1.msra.mxu0 %v1147
        %2554 = vmatprep.subr.mxu0 %v1152
        %2555 = vmatpush1.msra.mxu0 %v1151
        %2556 = vmatprep.subr.mxu0 %v1156
        %2557 = vmatpush1.msra.mxu0 %v1155
        %2558 = vmatprep.subr.mxu0 %v1160
        %2559 = vmatpush1.msra.mxu0 %v1159
        %2560 = vmatprep.subr.mxu0 %v1164
        %2561 = vmatpush1.msra.mxu0 %v1163
        %2562 = vmatprep.subr.mxu0 %v1168
        %2563 = vmatpush1.msra.mxu0 %v1167
        %2564 = vmatprep.subr.mxu0 %v1172
        %2565 = vmatpush1.msra.mxu0 %v1171
        %2566 = vmatprep.subr.mxu0 %v1176
        %2567 = vmatpush1.msra.mxu0 %v1175
        %2568 = vmatprep.subr.mxu0 0.0
        %2569 = vmatpush1.msra.mxu0 0.0
        %2570 = vmatprep.subr.mxu0 0.0
        %2571 = vmatpush1.msra.mxu0 0.0
        %2572 = vmatprep.subr.mxu0 0.0
        %2573 = vmatpush1.msra.mxu0 0.0
        %2574 = vmatprep.subr.mxu0 0.0
        %2575 = vmatpush1.msra.mxu0 0.0
        %2576 = vmatprep.subr.mxu0 0.0
        %2577 = vmatpush1.msra.mxu0 0.0
        %2578 = vmatprep.subr.mxu0 0.0
        %2579 = vmatpush1.msra.mxu0 0.0
        %2580 = vmatprep.subr.mxu0 0.0
        %2581 = vmatpush1.msra.mxu0 0.0
        %2582 = vmatprep.subr.mxu0 0.0
        %2583 = vmatpush1.msra.mxu0 0.0
        %2584 = vmatprep.subr.mxu0 0.0
        %2585 = vmatpush1.msra.mxu0 0.0
        %2586 = vmatprep.subr.mxu0 0.0
        %2587 = vmatpush1.msra.mxu0 0.0
        %2588 = vmatprep.subr.mxu0 0.0
        %2589 = vmatpush1.msra.mxu0 0.0
        %2590 = vmatprep.subr.mxu0 0.0
        %2591 = vmatpush1.msra.mxu0 0.0
        %2592 = vmatprep.subr.mxu0 0.0
        %2593 = vmatpush1.msra.mxu0 0.0
        %2594 = vmatprep.subr.mxu0 0.0
        %2595 = vmatpush1.msra.mxu0 0.0
        %2596 = vmatprep.subr.mxu0 0.0
        %2597 = vmatpush1.msra.mxu0 0.0
        %2598 = vmatprep.subr.mxu0 0.0
        %2599 = vmatpush1.msra.mxu0 0.0
        %2600 = vmatprep.mubr.f32.mxu0 0.0
        %2601 = vmatmul.mubr.f32.gmra.mrb[0].mxu0 %v2242
        %v2602 = vpop.f32.mrb[0].mxu0
        %v2603 = vadd.f32 0.0, %v2602
        %v2604 = vpop.f32.mrb[0].mxu0
        %v2605 = vadd.f32 0.0, %v2604
        %2606 = vdwg.mxu0
        %v2607 = vadd.f32 %v2461, %v2532
        %v2608 = vadd.f32 %v2462, %v2534
        %v2609 = vadd.f32 %v2463, %v2603
        %v2610 = vadd.f32 %v2464, %v2605
        %v2611 = vxor.u32 %v2607, 2147483648
        %v2612 = vmul.f32 %v2611, 1.442695
        %v2613 = vpow.pop %v2612
        %v2614 = vadd.f32 %v2613, 1.0
        %v2615 = vrcp.pop %v2614
        %v2616 = vmul.f32 1.0, %v2615
        %v2617 = vxor.u32 %v2608, 2147483648
        %v2618 = vmul.f32 %v2617, 1.442695
        %v2619 = vpow.pop %v2618
        %v2620 = vadd.f32 %v2619, 1.0
        %v2621 = vrcp.pop %v2620
        %v2622 = vmul.f32 1.0, %v2621
        %v2623 = vtanh.pop %v2609
        %v2624 = vxor.u32 %v2610, 2147483648
        %v2625 = vmul.f32 %v2624, 1.442695
        %v2626 = vpow.pop %v2625
        %v2627 = vadd.f32 %v2626, 1.0
        %v2628 = vrcp.pop %v2627
        %v2629 = vmul.f32 1.0, %v2628
        %v2630 = vmul.f32 %v2622, %v2245
        %v2631 = vmul.f32 %v2616, %v2623
        %v2632 = vadd.f32 %v2630, %v2631
        %v2633 = vtanh.pop %v2632
        %v2634 = vmul.f32 %v2629, %v2633
        %v2635 = vsub.f32 %v2634, %v2242
        %2637 = vset.pattern.permute.xlu0 0
        %2638 = vperm.xlu0 %2637, %v2457
        %v2639 = vpop.permute.xlu0 %2638
        %v2641 = vmul.f32 %v2639, %v2635
        %v2642 = vadd.f32 %v2242, %v2641
        %v2643 = vsub.f32 %v2632, %v2245
        %v2644 = vmul.f32 %v2639, %v2643
        %v2645 = vadd.f32 %v2245, %v2644
        %s2646 = scalar_lea.vmem [#allocation3], 128
        %v2647 = vld [vmem:[%s2646] sm:$0xff]
        %v2648 = vld [vmem:[%s2646 + $0x8] sm:$0xff]
        %v2649 = vld [vmem:[%s2646 + $0x10] sm:$0xff]
        %v2650 = vld [vmem:[%s2646 + $0x18] sm:$0xff]
        %2651 = vmatprep.subr.mxu0 %v1179
        %2652 = vmatpush1.msra.mxu0 %v1178
        %2653 = vmatprep.subr.mxu0 %v1183
        %2654 = vmatpush1.msra.mxu0 %v1182
        %2655 = vmatprep.subr.mxu0 %v1187
        %2656 = vmatpush1.msra.mxu0 %v1186
        %2657 = vmatprep.subr.mxu0 %v1191
        %2658 = vmatpush1.msra.mxu0 %v1190
        %2659 = vmatprep.subr.mxu0 %v1195
        %2660 = vmatpush1.msra.mxu0 %v1194
        %2661 = vmatprep.subr.mxu0 %v1199
        %2662 = vmatpush1.msra.mxu0 %v1198
        %2663 = vmatprep.subr.mxu0 %v1203
        %2664 = vmatpush1.msra.mxu0 %v1202
        %2665 = vmatprep.subr.mxu0 %v1207
        %2666 = vmatpush1.msra.mxu0 %v1206
        %2667 = vmatprep.subr.mxu0 %v1211
        %2668 = vmatpush1.msra.mxu0 %v1210
        %2669 = vmatprep.subr.mxu0 %v1215
        %2670 = vmatpush1.msra.mxu0 %v1214
        %2671 = vmatprep.subr.mxu0 %v1219
        %2672 = vmatpush1.msra.mxu0 %v1218
        %2673 = vmatprep.subr.mxu0 %v1223
        %2674 = vmatpush1.msra.mxu0 %v1222
        %2675 = vmatprep.subr.mxu0 %v1227
        %2676 = vmatpush1.msra.mxu0 %v1226
        %2677 = vmatprep.subr.mxu0 %v1231
        %2678 = vmatpush1.msra.mxu0 %v1230
        %2679 = vmatprep.subr.mxu0 %v1235
        %2680 = vmatpush1.msra.mxu0 %v1234
        %2681 = vmatprep.subr.mxu0 %v1239
        %2682 = vmatpush1.msra.mxu0 %v1238
        %2683 = vmatprep.subr.mxu0 0.0
        %2684 = vmatpush1.msra.mxu0 0.0
        %2685 = vmatprep.subr.mxu0 0.0
        %2686 = vmatpush1.msra.mxu0 0.0
        %2687 = vmatprep.subr.mxu0 0.0
        %2688 = vmatpush1.msra.mxu0 0.0
        %2689 = vmatprep.subr.mxu0 0.0
        %2690 = vmatpush1.msra.mxu0 0.0
        %2691 = vmatprep.subr.mxu0 0.0
        %2692 = vmatpush1.msra.mxu0 0.0
        %2693 = vmatprep.subr.mxu0 0.0
        %2694 = vmatpush1.msra.mxu0 0.0
        %2695 = vmatprep.subr.mxu0 0.0
        %2696 = vmatpush1.msra.mxu0 0.0
        %2697 = vmatprep.subr.mxu0 0.0
        %2698 = vmatpush1.msra.mxu0 0.0
        %2699 = vmatprep.subr.mxu0 0.0
        %2700 = vmatpush1.msra.mxu0 0.0
        %2701 = vmatprep.subr.mxu0 0.0
        %2702 = vmatpush1.msra.mxu0 0.0
        %2703 = vmatprep.subr.mxu0 0.0
        %2704 = vmatpush1.msra.mxu0 0.0
        %2705 = vmatprep.subr.mxu0 0.0
        %2706 = vmatpush1.msra.mxu0 0.0
        %2707 = vmatprep.subr.mxu0 0.0
        %2708 = vmatpush1.msra.mxu0 0.0
        %2709 = vmatprep.subr.mxu0 0.0
        %2710 = vmatpush1.msra.mxu0 0.0
        %2711 = vmatprep.subr.mxu0 0.0
        %2712 = vmatpush1.msra.mxu0 0.0
        %2713 = vmatprep.subr.mxu0 0.0
        %2714 = vmatpush1.msra.mxu0 0.0
        %2715 = vmatprep.mubr.f32.mxu0 0.0
        %2716 = vmatmul.mubr.f32.gmra.mrb[0].mxu0 %v2428
        %v2717 = vpop.f32.mrb[0].mxu0
        %v2718 = vadd.f32 0.0, %v2717
        %v2719 = vpop.f32.mrb[0].mxu0
        %v2720 = vadd.f32 0.0, %v2719
        %2721 = vdwg.mxu0
        %2722 = vmatprep.subr.mxu0 %v1181
        %2723 = vmatpush1.msra.mxu0 %v1180
        %2724 = vmatprep.subr.mxu0 %v1185
        %2725 = vmatpush1.msra.mxu0 %v1184
        %2726 = vmatprep.subr.mxu0 %v1189
        %2727 = vmatpush1.msra.mxu0 %v1188
        %2728 = vmatprep.subr.mxu0 %v1193
        %2729 = vmatpush1.msra.mxu0 %v1192
        %2730 = vmatprep.subr.mxu0 %v1197
        %2731 = vmatpush1.msra.mxu0 %v1196
        %2732 = vmatprep.subr.mxu0 %v1201
        %2733 = vmatpush1.msra.mxu0 %v1200
        %2734 = vmatprep.subr.mxu0 %v1205
        %2735 = vmatpush1.msra.mxu0 %v1204
        %2736 = vmatprep.subr.mxu0 %v1209
        %2737 = vmatpush1.msra.mxu0 %v1208
        %2738 = vmatprep.subr.mxu0 %v1213
        %2739 = vmatpush1.msra.mxu0 %v1212
        %2740 = vmatprep.subr.mxu0 %v1217
        %2741 = vmatpush1.msra.mxu0 %v1216
        %2742 = vmatprep.subr.mxu0 %v1221
        %2743 = vmatpush1.msra.mxu0 %v1220
        %2744 = vmatprep.subr.mxu0 %v1225
        %2745 = vmatpush1.msra.mxu0 %v1224
        %2746 = vmatprep.subr.mxu0 %v1229
        %2747 = vmatpush1.msra.mxu0 %v1228
        %2748 = vmatprep.subr.mxu0 %v1233
        %2749 = vmatpush1.msra.mxu0 %v1232
        %2750 = vmatprep.subr.mxu0 %v1237
        %2751 = vmatpush1.msra.mxu0 %v1236
        %2752 = vmatprep.subr.mxu0 %v1241
        %2753 = vmatpush1.msra.mxu0 %v1240
        %2754 = vmatprep.subr.mxu0 0.0
        %2755 = vmatpush1.msra.mxu0 0.0
        %2756 = vmatprep.subr.mxu0 0.0
        %2757 = vmatpush1.msra.mxu0 0.0
        %2758 = vmatprep.subr.mxu0 0.0
        %2759 = vmatpush1.msra.mxu0 0.0
        %2760 = vmatprep.subr.mxu0 0.0
        %2761 = vmatpush1.msra.mxu0 0.0
        %2762 = vmatprep.subr.mxu0 0.0
        %2763 = vmatpush1.msra.mxu0 0.0
        %2764 = vmatprep.subr.mxu0 0.0
        %2765 = vmatpush1.msra.mxu0 0.0
        %2766 = vmatprep.subr.mxu0 0.0
        %2767 = vmatpush1.msra.mxu0 0.0
        %2768 = vmatprep.subr.mxu0 0.0
        %2769 = vmatpush1.msra.mxu0 0.0
        %2770 = vmatprep.subr.mxu0 0.0
        %2771 = vmatpush1.msra.mxu0 0.0
        %2772 = vmatprep.subr.mxu0 0.0
        %2773 = vmatpush1.msra.mxu0 0.0
        %2774 = vmatprep.subr.mxu0 0.0
        %2775 = vmatpush1.msra.mxu0 0.0
        %2776 = vmatprep.subr.mxu0 0.0
        %2777 = vmatpush1.msra.mxu0 0.0
        %2778 = vmatprep.subr.mxu0 0.0
        %2779 = vmatpush1.msra.mxu0 0.0
        %2780 = vmatprep.subr.mxu0 0.0
        %2781 = vmatpush1.msra.mxu0 0.0
        %2782 = vmatprep.subr.mxu0 0.0
        %2783 = vmatpush1.msra.mxu0 0.0
        %2784 = vmatprep.subr.mxu0 0.0
        %2785 = vmatpush1.msra.mxu0 0.0
        %2786 = vmatprep.mubr.f32.mxu0 0.0
        %2787 = vmatmul.mubr.f32.gmra.mrb[0].mxu0 %v2428
        %v2788 = vpop.f32.mrb[0].mxu0
        %v2789 = vadd.f32 0.0, %v2788
        %v2790 = vpop.f32.mrb[0].mxu0
        %v2791 = vadd.f32 0.0, %v2790
        %2792 = vdwg.mxu0
        %v2793 = vadd.f32 %v2647, %v2718
        %v2794 = vadd.f32 %v2648, %v2720
        %v2795 = vadd.f32 %v2649, %v2789
        %v2796 = vadd.f32 %v2650, %v2791
        %v2797 = vxor.u32 %v2793, 2147483648
        %v2798 = vmul.f32 %v2797, 1.442695
        %v2799 = vpow.pop %v2798
        %v2800 = vadd.f32 %v2799, 1.0
        %v2801 = vrcp.pop %v2800
        %v2802 = vmul.f32 1.0, %v2801
        %v2803 = vxor.u32 %v2794, 2147483648
        %v2804 = vmul.f32 %v2803, 1.442695
        %v2805 = vpow.pop %v2804
        %v2806 = vadd.f32 %v2805, 1.0
        %v2807 = vrcp.pop %v2806
        %v2808 = vmul.f32 1.0, %v2807
        %v2809 = vtanh.pop %v2795
        %v2810 = vxor.u32 %v2796, 2147483648
        %v2811 = vmul.f32 %v2810, 1.442695
        %v2812 = vpow.pop %v2811
        %v2813 = vadd.f32 %v2812, 1.0
        %v2814 = vrcp.pop %v2813
        %v2815 = vmul.f32 1.0, %v2814
        %v2816 = vmul.f32 %v2808, %v2431
        %v2817 = vmul.f32 %v2802, %v2809
        %v2818 = vadd.f32 %v2816, %v2817
        %v2819 = vtanh.pop %v2818
        %v2820 = vmul.f32 %v2815, %v2819
        %v2821 = vsub.f32 %v2820, %v2428
        %2823 = vset.pattern.permute.xlu0 0
        %2824 = vperm.xlu0 %2823, %v2459
        %v2825 = vpop.permute.xlu0 %2824
        %v2827 = vmul.f32 %v2825, %v2821
        %v2828 = vadd.f32 %v2428, %v2827
        %v2829 = vsub.f32 %v2818, %v2431
        %v2830 = vmul.f32 %v2825, %v2829
        %v2831 = vadd.f32 %v2431, %v2830
        %p2832 = scmp.lt.s32.totalorder %s2450, 13
        %s2833 = scalar_select %p2832, 0.0, -inf
        %p2834 = scmp.lt.s32.totalorder %s2451, 13
        %s2835 = scalar_select %p2834, 0.0, -inf
        %2836 = vset.pattern.permute.xlu0 0
        %2837 = vperm.xlu0 %2836, %v2456
        %v2838 = vpop.permute.xlu0 %2837
        %vm2839 = vcmp.eq.s32.totalorder %v2838, 1
        %v2840 = vstv %s2833
        %v2841 = vsel %vm2839, %v2634, %v2840
        %v2842 = vmax.f32 %v2442, %v2841
        %2843 = vset.pattern.permute.xlu0 0
        %2844 = vperm.xlu0 %2843, %v2458
        %v2845 = vpop.permute.xlu0 %2844
        %vm2846 = vcmp.eq.s32.totalorder %v2845, 1
        %v2847 = vstv %s2835
        %v2848 = vsel %vm2846, %v2820, %v2847
        %v2849 = vmax.f32 %v2449, %v2848
        %s2850 = sadd.s32 %s1249, 4
        %s2851 = sadd.s32 %s1251, 3
        %v2852 = vstv %s2850
        %vm2853 = vcmp.lt.s32.totalorder %v2852, %v1242
        %v2854 = vstv %s2851
        %vm2855 = vcmp.lt.s32.totalorder %v2854, %v1242
        %v2856 = vsel %vm2853, 1, 0
        %v2857 = vcvt.s32.f32 %v2856
        %v2858 = vsel %vm2855, 1, 0
        %v2859 = vcvt.s32.f32 %v2858
        %s2860 = scalar_lea.vmem [#allocation2], 128
        %v2861 = vld [vmem:[%s2860] sm:$0xff]
        %v2862 = vld [vmem:[%s2860 + $0x8] sm:$0xff]
        %v2863 = vld [vmem:[%s2860 + $0x10] sm:$0xff]
        %v2864 = vld [vmem:[%s2860 + $0x18] sm:$0xff]
        %2865 = vmatprep.subr.mxu0 %v1114
        %2866 = vmatpush1.msra.mxu0 %v1113
        %2867 = vmatprep.subr.mxu0 %v1118
        %2868 = vmatpush1.msra.mxu0 %v1117
        %2869 = vmatprep.subr.mxu0 %v1122
        %2870 = vmatpush1.msra.mxu0 %v1121
        %2871 = vmatprep.subr.mxu0 %v1126
        %2872 = vmatpush1.msra.mxu0 %v1125
        %2873 = vmatprep.subr.mxu0 %v1130
        %2874 = vmatpush1.msra.mxu0 %v1129
        %2875 = vmatprep.subr.mxu0 %v1134
        %2876 = vmatpush1.msra.mxu0 %v1133
        %2877 = vmatprep.subr.mxu0 %v1138
        %2878 = vmatpush1.msra.mxu0 %v1137
        %2879 = vmatprep.subr.mxu0 %v1142
        %2880 = vmatpush1.msra.mxu0 %v1141
        %2881 = vmatprep.subr.mxu0 %v1146
        %2882 = vmatpush1.msra.mxu0 %v1145
        %2883 = vmatprep.subr.mxu0 %v1150
        %2884 = vmatpush1.msra.mxu0 %v1149
        %2885 = vmatprep.subr.mxu0 %v1154
        %2886 = vmatpush1.msra.mxu0 %v1153
        %2887 = vmatprep.subr.mxu0 %v1158
        %2888 = vmatpush1.msra.mxu0 %v1157
        %2889 = vmatprep.subr.mxu0 %v1162
        %2890 = vmatpush1.msra.mxu0 %v1161
        %2891 = vmatprep.subr.mxu0 %v1166
        %2892 = vmatpush1.msra.mxu0 %v1165
        %2893 = vmatprep.subr.mxu0 %v1170
        %2894 = vmatpush1.msra.mxu0 %v1169
        %2895 = vmatprep.subr.mxu0 %v1174
        %2896 = vmatpush1.msra.mxu0 %v1173
        %2897 = vmatprep.subr.mxu0 0.0
        %2898 = vmatpush1.msra.mxu0 0.0
        %2899 = vmatprep.subr.mxu0 0.0
        %2900 = vmatpush1.msra.mxu0 0.0
        %2901 = vmatprep.subr.mxu0 0.0
        %2902 = vmatpush1.msra.mxu0 0.0
        %2903 = vmatprep.subr.mxu0 0.0
        %2904 = vmatpush1.msra.mxu0 0.0
        %2905 = vmatprep.subr.mxu0 0.0
        %2906 = vmatpush1.msra.mxu0 0.0
        %2907 = vmatprep.subr.mxu0 0.0
        %2908 = vmatpush1.msra.mxu0 0.0
        %2909 = vmatprep.subr.mxu0 0.0
        %2910 = vmatpush1.msra.mxu0 0.0
        %2911 = vmatprep.subr.mxu0 0.0
        %2912 = vmatpush1.msra.mxu0 0.0
        %2913 = vmatprep.subr.mxu0 0.0
        %2914 = vmatpush1.msra.mxu0 0.0
        %2915 = vmatprep.subr.mxu0 0.0
        %2916 = vmatpush1.msra.mxu0 0.0
        %2917 = vmatprep.subr.mxu0 0.0
        %2918 = vmatpush1.msra.mxu0 0.0
        %2919 = vmatprep.subr.mxu0 0.0
        %2920 = vmatpush1.msra.mxu0 0.0
        %2921 = vmatprep.subr.mxu0 0.0
        %2922 = vmatpush1.msra.mxu0 0.0
        %2923 = vmatprep.subr.mxu0 0.0
        %2924 = vmatpush1.msra.mxu0 0.0
        %2925 = vmatprep.subr.mxu0 0.0
        %2926 = vmatpush1.msra.mxu0 0.0
        %2927 = vmatprep.subr.mxu0 0.0
        %2928 = vmatpush1.msra.mxu0 0.0
        %2929 = vmatprep.mubr.f32.mxu0 0.0
        %2930 = vmatmul.mubr.f32.gmra.mrb[0].mxu0 %v2642
        %v2931 = vpop.f32.mrb[0].mxu0
        %v2932 = vadd.f32 0.0, %v2931
        %v2933 = vpop.f32.mrb[0].mxu0
        %v2934 = vadd.f32 0.0, %v2933
        %2935 = vdwg.mxu0
        %2936 = vmatprep.subr.mxu0 %v1116
        %2937 = vmatpush1.msra.mxu0 %v1115
        %2938 = vmatprep.subr.mxu0 %v1120
        %2939 = vmatpush1.msra.mxu0 %v1119
        %2940 = vmatprep.subr.mxu0 %v1124
        %2941 = vmatpush1.msra.mxu0 %v1123
        %2942 = vmatprep.subr.mxu0 %v1128
        %2943 = vmatpush1.msra.mxu0 %v1127
        %2944 = vmatprep.subr.mxu0 %v1132
        %2945 = vmatpush1.msra.mxu0 %v1131
        %2946 = vmatprep.subr.mxu0 %v1136
        %2947 = vmatpush1.msra.mxu0 %v1135
        %2948 = vmatprep.subr.mxu0 %v1140
        %2949 = vmatpush1.msra.mxu0 %v1139
        %2950 = vmatprep.subr.mxu0 %v1144
        %2951 = vmatpush1.msra.mxu0 %v1143
        %2952 = vmatprep.subr.mxu0 %v1148
        %2953 = vmatpush1.msra.mxu0 %v1147
        %2954 = vmatprep.subr.mxu0 %v1152
        %2955 = vmatpush1.msra.mxu0 %v1151
        %2956 = vmatprep.subr.mxu0 %v1156
        %2957 = vmatpush1.msra.mxu0 %v1155
        %2958 = vmatprep.subr.mxu0 %v1160
        %2959 = vmatpush1.msra.mxu0 %v1159
        %2960 = vmatprep.subr.mxu0 %v1164
        %2961 = vmatpush1.msra.mxu0 %v1163
        %2962 = vmatprep.subr.mxu0 %v1168
        %2963 = vmatpush1.msra.mxu0 %v1167
        %2964 = vmatprep.subr.mxu0 %v1172
        %2965 = vmatpush1.msra.mxu0 %v1171
        %2966 = vmatprep.subr.mxu0 %v1176
        %2967 = vmatpush1.msra.mxu0 %v1175
        %2968 = vmatprep.subr.mxu0 0.0
        %2969 = vmatpush1.msra.mxu0 0.0
        %2970 = vmatprep.subr.mxu0 0.0
        %2971 = vmatpush1.msra.mxu0 0.0
        %2972 = vmatprep.subr.mxu0 0.0
        %2973 = vmatpush1.msra.mxu0 0.0
        %2974 = vmatprep.subr.mxu0 0.0
        %2975 = vmatpush1.msra.mxu0 0.0
        %2976 = vmatprep.subr.mxu0 0.0
        %2977 = vmatpush1.msra.mxu0 0.0
        %2978 = vmatprep.subr.mxu0 0.0
        %2979 = vmatpush1.msra.mxu0 0.0
        %2980 = vmatprep.subr.mxu0 0.0
        %2981 = vmatpush1.msra.mxu0 0.0
        %2982 = vmatprep.subr.mxu0 0.0
        %2983 = vmatpush1.msra.mxu0 0.0
        %2984 = vmatprep.subr.mxu0 0.0
        %2985 = vmatpush1.msra.mxu0 0.0
        %2986 = vmatprep.subr.mxu0 0.0
        %2987 = vmatpush1.msra.mxu0 0.0
        %2988 = vmatprep.subr.mxu0 0.0
        %2989 = vmatpush1.msra.mxu0 0.0
        %2990 = vmatprep.subr.mxu0 0.0
        %2991 = vmatpush1.msra.mxu0 0.0
        %2992 = vmatprep.subr.mxu0 0.0
        %2993 = vmatpush1.msra.mxu0 0.0
        %2994 = vmatprep.subr.mxu0 0.0
        %2995 = vmatpush1.msra.mxu0 0.0
        %2996 = vmatprep.subr.mxu0 0.0
        %2997 = vmatpush1.msra.mxu0 0.0
        %2998 = vmatprep.subr.mxu0 0.0
        %2999 = vmatpush1.msra.mxu0 0.0
        %3000 = vmatprep.mubr.f32.mxu0 0.0
        %3001 = vmatmul.mubr.f32.gmra.mrb[0].mxu0 %v2642
        %v3002 = vpop.f32.mrb[0].mxu0
        %v3003 = vadd.f32 0.0, %v3002
        %v3004 = vpop.f32.mrb[0].mxu0
        %v3005 = vadd.f32 0.0, %v3004
        %3006 = vdwg.mxu0
        %v3007 = vadd.f32 %v2861, %v2932
        %v3008 = vadd.f32 %v2862, %v2934
        %v3009 = vadd.f32 %v2863, %v3003
        %v3010 = vadd.f32 %v2864, %v3005
        %v3011 = vxor.u32 %v3007, 2147483648
        %v3012 = vmul.f32 %v3011, 1.442695
        %v3013 = vpow.pop %v3012
        %v3014 = vadd.f32 %v3013, 1.0
        %v3015 = vrcp.pop %v3014
        %v3016 = vmul.f32 1.0, %v3015
        %v3017 = vxor.u32 %v3008, 2147483648
        %v3018 = vmul.f32 %v3017, 1.442695
        %v3019 = vpow.pop %v3018
        %v3020 = vadd.f32 %v3019, 1.0
        %v3021 = vrcp.pop %v3020
        %v3022 = vmul.f32 1.0, %v3021
        %v3023 = vtanh.pop %v3009
        %v3024 = vxor.u32 %v3010, 2147483648
        %v3025 = vmul.f32 %v3024, 1.442695
        %v3026 = vpow.pop %v3025
        %v3027 = vadd.f32 %v3026, 1.0
        %v3028 = vrcp.pop %v3027
        %v3029 = vmul.f32 1.0, %v3028
        %v3030 = vmul.f32 %v3022, %v2645
        %v3031 = vmul.f32 %v3016, %v3023
        %v3032 = vadd.f32 %v3030, %v3031
        %v3033 = vtanh.pop %v3032
        %v3034 = vmul.f32 %v3029, %v3033
        %v3035 = vsub.f32 %v3034, %v2642
        %3037 = vset.pattern.permute.xlu0 0
        %3038 = vperm.xlu0 %3037, %v2857
        %v3039 = vpop.permute.xlu0 %3038
        %v3041 = vmul.f32 %v3039, %v3035
        %v3042 = vadd.f32 %v2642, %v3041
        %v3043 = vsub.f32 %v3032, %v2645
        %v3044 = vmul.f32 %v3039, %v3043
        %v3045 = vadd.f32 %v2645, %v3044
        %s3046 = scalar_lea.vmem [#allocation3], 96
        %v3047 = vld [vmem:[%s3046] sm:$0xff]
        %v3048 = vld [vmem:[%s3046 + $0x8] sm:$0xff]
        %v3049 = vld [vmem:[%s3046 + $0x10] sm:$0xff]
        %v3050 = vld [vmem:[%s3046 + $0x18] sm:$0xff]
        %3051 = vmatprep.subr.mxu0 %v1179
        %3052 = vmatpush1.msra.mxu0 %v1178
        %3053 = vmatprep.subr.mxu0 %v1183
        %3054 = vmatpush1.msra.mxu0 %v1182
        %3055 = vmatprep.subr.mxu0 %v1187
        %3056 = vmatpush1.msra.mxu0 %v1186
        %3057 = vmatprep.subr.mxu0 %v1191
        %3058 = vmatpush1.msra.mxu0 %v1190
        %3059 = vmatprep.subr.mxu0 %v1195
        %3060 = vmatpush1.msra.mxu0 %v1194
        %3061 = vmatprep.subr.mxu0 %v1199
        %3062 = vmatpush1.msra.mxu0 %v1198
        %3063 = vmatprep.subr.mxu0 %v1203
        %3064 = vmatpush1.msra.mxu0 %v1202
        %3065 = vmatprep.subr.mxu0 %v1207
        %3066 = vmatpush1.msra.mxu0 %v1206
        %3067 = vmatprep.subr.mxu0 %v1211
        %3068 = vmatpush1.msra.mxu0 %v1210
        %3069 = vmatprep.subr.mxu0 %v1215
        %3070 = vmatpush1.msra.mxu0 %v1214
        %3071 = vmatprep.subr.mxu0 %v1219
        %3072 = vmatpush1.msra.mxu0 %v1218
        %3073 = vmatprep.subr.mxu0 %v1223
        %3074 = vmatpush1.msra.mxu0 %v1222
        %3075 = vmatprep.subr.mxu0 %v1227
        %3076 = vmatpush1.msra.mxu0 %v1226
        %3077 = vmatprep.subr.mxu0 %v1231
        %3078 = vmatpush1.msra.mxu0 %v1230
        %3079 = vmatprep.subr.mxu0 %v1235
        %3080 = vmatpush1.msra.mxu0 %v1234
        %3081 = vmatprep.subr.mxu0 %v1239
        %3082 = vmatpush1.msra.mxu0 %v1238
        %3083 = vmatprep.subr.mxu0 0.0
        %3084 = vmatpush1.msra.mxu0 0.0
        %3085 = vmatprep.subr.mxu0 0.0
        %3086 = vmatpush1.msra.mxu0 0.0
        %3087 = vmatprep.subr.mxu0 0.0
        %3088 = vmatpush1.msra.mxu0 0.0
        %3089 = vmatprep.subr.mxu0 0.0
        %3090 = vmatpush1.msra.mxu0 0.0
        %3091 = vmatprep.subr.mxu0 0.0
        %3092 = vmatpush1.msra.mxu0 0.0
        %3093 = vmatprep.subr.mxu0 0.0
        %3094 = vmatpush1.msra.mxu0 0.0
        %3095 = vmatprep.subr.mxu0 0.0
        %3096 = vmatpush1.msra.mxu0 0.0
        %3097 = vmatprep.subr.mxu0 0.0
        %3098 = vmatpush1.msra.mxu0 0.0
        %3099 = vmatprep.subr.mxu0 0.0
        %3100 = vmatpush1.msra.mxu0 0.0
        %3101 = vmatprep.subr.mxu0 0.0
        %3102 = vmatpush1.msra.mxu0 0.0
        %3103 = vmatprep.subr.mxu0 0.0
        %3104 = vmatpush1.msra.mxu0 0.0
        %3105 = vmatprep.subr.mxu0 0.0
        %3106 = vmatpush1.msra.mxu0 0.0
        %3107 = vmatprep.subr.mxu0 0.0
        %3108 = vmatpush1.msra.mxu0 0.0
        %3109 = vmatprep.subr.mxu0 0.0
        %3110 = vmatpush1.msra.mxu0 0.0
        %3111 = vmatprep.subr.mxu0 0.0
        %3112 = vmatpush1.msra.mxu0 0.0
        %3113 = vmatprep.subr.mxu0 0.0
        %3114 = vmatpush1.msra.mxu0 0.0
        %3115 = vmatprep.mubr.f32.mxu0 0.0
        %3116 = vmatmul.mubr.f32.gmra.mrb[0].mxu0 %v2828
        %v3117 = vpop.f32.mrb[0].mxu0
        %v3118 = vadd.f32 0.0, %v3117
        %v3119 = vpop.f32.mrb[0].mxu0
        %v3120 = vadd.f32 0.0, %v3119
        %3121 = vdwg.mxu0
        %3122 = vmatprep.subr.mxu0 %v1181
        %3123 = vmatpush1.msra.mxu0 %v1180
        %3124 = vmatprep.subr.mxu0 %v1185
        %3125 = vmatpush1.msra.mxu0 %v1184
        %3126 = vmatprep.subr.mxu0 %v1189
        %3127 = vmatpush1.msra.mxu0 %v1188
        %3128 = vmatprep.subr.mxu0 %v1193
        %3129 = vmatpush1.msra.mxu0 %v1192
        %3130 = vmatprep.subr.mxu0 %v1197
        %3131 = vmatpush1.msra.mxu0 %v1196
        %3132 = vmatprep.subr.mxu0 %v1201
        %3133 = vmatpush1.msra.mxu0 %v1200
        %3134 = vmatprep.subr.mxu0 %v1205
        %3135 = vmatpush1.msra.mxu0 %v1204
        %3136 = vmatprep.subr.mxu0 %v1209
        %3137 = vmatpush1.msra.mxu0 %v1208
        %3138 = vmatprep.subr.mxu0 %v1213
        %3139 = vmatpush1.msra.mxu0 %v1212
        %3140 = vmatprep.subr.mxu0 %v1217
        %3141 = vmatpush1.msra.mxu0 %v1216
        %3142 = vmatprep.subr.mxu0 %v1221
        %3143 = vmatpush1.msra.mxu0 %v1220
        %3144 = vmatprep.subr.mxu0 %v1225
        %3145 = vmatpush1.msra.mxu0 %v1224
        %3146 = vmatprep.subr.mxu0 %v1229
        %3147 = vmatpush1.msra.mxu0 %v1228
        %3148 = vmatprep.subr.mxu0 %v1233
        %3149 = vmatpush1.msra.mxu0 %v1232
        %3150 = vmatprep.subr.mxu0 %v1237
        %3151 = vmatpush1.msra.mxu0 %v1236
        %3152 = vmatprep.subr.mxu0 %v1241
        %3153 = vmatpush1.msra.mxu0 %v1240
        %3154 = vmatprep.subr.mxu0 0.0
        %3155 = vmatpush1.msra.mxu0 0.0
        %3156 = vmatprep.subr.mxu0 0.0
        %3157 = vmatpush1.msra.mxu0 0.0
        %3158 = vmatprep.subr.mxu0 0.0
        %3159 = vmatpush1.msra.mxu0 0.0
        %3160 = vmatprep.subr.mxu0 0.0
        %3161 = vmatpush1.msra.mxu0 0.0
        %3162 = vmatprep.subr.mxu0 0.0
        %3163 = vmatpush1.msra.mxu0 0.0
        %3164 = vmatprep.subr.mxu0 0.0
        %3165 = vmatpush1.msra.mxu0 0.0
        %3166 = vmatprep.subr.mxu0 0.0
        %3167 = vmatpush1.msra.mxu0 0.0
        %3168 = vmatprep.subr.mxu0 0.0
        %3169 = vmatpush1.msra.mxu0 0.0
        %3170 = vmatprep.subr.mxu0 0.0
        %3171 = vmatpush1.msra.mxu0 0.0
        %3172 = vmatprep.subr.mxu0 0.0
        %3173 = vmatpush1.msra.mxu0 0.0
        %3174 = vmatprep.subr.mxu0 0.0
        %3175 = vmatpush1.msra.mxu0 0.0
        %3176 = vmatprep.subr.mxu0 0.0
        %3177 = vmatpush1.msra.mxu0 0.0
        %3178 = vmatprep.subr.mxu0 0.0
        %3179 = vmatpush1.msra.mxu0 0.0
        %3180 = vmatprep.subr.mxu0 0.0
        %3181 = vmatpush1.msra.mxu0 0.0
        %3182 = vmatprep.subr.mxu0 0.0
        %3183 = vmatpush1.msra.mxu0 0.0
        %3184 = vmatprep.subr.mxu0 0.0
        %3185 = vmatpush1.msra.mxu0 0.0
        %3186 = vmatprep.mubr.f32.mxu0 0.0
        %3187 = vmatmul.mubr.f32.gmra.mrb[0].mxu0 %v2828
        %v3188 = vpop.f32.mrb[0].mxu0
        %v3189 = vadd.f32 0.0, %v3188
        %v3190 = vpop.f32.mrb[0].mxu0
        %v3191 = vadd.f32 0.0, %v3190
        %3192 = vdwg.mxu0
        %v3193 = vadd.f32 %v3047, %v3118
        %v3194 = vadd.f32 %v3048, %v3120
        %v3195 = vadd.f32 %v3049, %v3189
        %v3196 = vadd.f32 %v3050, %v3191
        %v3197 = vxor.u32 %v3193, 2147483648
        %v3198 = vmul.f32 %v3197, 1.442695
        %v3199 = vpow.pop %v3198
        %v3200 = vadd.f32 %v3199, 1.0
        %v3201 = vrcp.pop %v3200
        %v3202 = vmul.f32 1.0, %v3201
        %v3203 = vxor.u32 %v3194, 2147483648
        %v3204 = vmul.f32 %v3203, 1.442695
        %v3205 = vpow.pop %v3204
        %v3206 = vadd.f32 %v3205, 1.0
        %v3207 = vrcp.pop %v3206
        %v3208 = vmul.f32 1.0, %v3207
        %v3209 = vtanh.pop %v3195
        %v3210 = vxor.u32 %v3196, 2147483648
        %v3211 = vmul.f32 %v3210, 1.442695
        %v3212 = vpow.pop %v3211
        %v3213 = vadd.f32 %v3212, 1.0
        %v3214 = vrcp.pop %v3213
        %v3215 = vmul.f32 1.0, %v3214
        %v3216 = vmul.f32 %v3208, %v2831
        %v3217 = vmul.f32 %v3202, %v3209
        %v3218 = vadd.f32 %v3216, %v3217
        %v3219 = vtanh.pop %v3218
        %v3220 = vmul.f32 %v3215, %v3219
        %v3221 = vsub.f32 %v3220, %v2828
        %3223 = vset.pattern.permute.xlu0 0
        %3224 = vperm.xlu0 %3223, %v2859
        %v3225 = vpop.permute.xlu0 %3224
        %v3227 = vmul.f32 %v3225, %v3221
        %v3228 = vadd.f32 %v2828, %v3227
        %v3229 = vsub.f32 %v3218, %v2831
        %v3230 = vmul.f32 %v3225, %v3229
        %v3231 = vadd.f32 %v2831, %v3230
        %p3232 = scmp.lt.s32.totalorder %s2850, 13
        %s3233 = scalar_select %p3232, 0.0, -inf
        %p3234 = scmp.lt.s32.totalorder %s2851, 13
        %s3235 = scalar_select %p3234, 0.0, -inf
        %3236 = vset.pattern.permute.xlu0 0
        %3237 = vperm.xlu0 %3236, %v2856
        %v3238 = vpop.permute.xlu0 %3237
        %vm3239 = vcmp.eq.s32.totalorder %v3238, 1
        %v3240 = vstv %s3233
        %v3241 = vsel %vm3239, %v3034, %v3240
        %v3242 = vmax.f32 %v2842, %v3241
        %3243 = vset.pattern.permute.xlu0 0
        %3244 = vperm.xlu0 %3243, %v2858
        %v3245 = vpop.permute.xlu0 %3244
        %vm3246 = vcmp.eq.s32.totalorder %v3245, 1
        %v3247 = vstv %s3235
        %v3248 = vsel %vm3246, %v3220, %v3247
        %v3249 = vmax.f32 %v2849, %v3248
        %s3250 = sadd.s32 %s1249, 5
        %s3251 = sadd.s32 %s1251, 2
        %v3252 = vstv %s3250
        %vm3253 = vcmp.lt.s32.totalorder %v3252, %v1242
        %v3254 = vstv %s3251
        %vm3255 = vcmp.lt.s32.totalorder %v3254, %v1242
        %v3256 = vsel %vm3253, 1, 0
        %v3257 = vcvt.s32.f32 %v3256
        %v3258 = vsel %vm3255, 1, 0
        %v3259 = vcvt.s32.f32 %v3258
        %s3260 = scalar_lea.vmem [#allocation2], 160
        %v3261 = vld [vmem:[%s3260] sm:$0xff]
        %v3262 = vld [vmem:[%s3260 + $0x8] sm:$0xff]
        %v3263 = vld [vmem:[%s3260 + $0x10] sm:$0xff]
        %v3264 = vld [vmem:[%s3260 + $0x18] sm:$0xff]
        %3265 = vmatprep.subr.mxu0 %v1114
        %3266 = vmatpush1.msra.mxu0 %v1113
        %3267 = vmatprep.subr.mxu0 %v1118
        %3268 = vmatpush1.msra.mxu0 %v1117
        %3269 = vmatprep.subr.mxu0 %v1122
        %3270 = vmatpush1.msra.mxu0 %v1121
        %3271 = vmatprep.subr.mxu0 %v1126
        %3272 = vmatpush1.msra.mxu0 %v1125
        %3273 = vmatprep.subr.mxu0 %v1130
        %3274 = vmatpush1.msra.mxu0 %v1129
        %3275 = vmatprep.subr.mxu0 %v1134
        %3276 = vmatpush1.msra.mxu0 %v1133
        %3277 = vmatprep.subr.mxu0 %v1138
        %3278 = vmatpush1.msra.mxu0 %v1137
        %3279 = vmatprep.subr.mxu0 %v1142
        %3280 = vmatpush1.msra.mxu0 %v1141
        %3281 = vmatprep.subr.mxu0 %v1146
        %3282 = vmatpush1.msra.mxu0 %v1145
        %3283 = vmatprep.subr.mxu0 %v1150
        %3284 = vmatpush1.msra.mxu0 %v1149
        %3285 = vmatprep.subr.mxu0 %v1154
        %3286 = vmatpush1.msra.mxu0 %v1153
        %3287 = vmatprep.subr.mxu0 %v1158
        %3288 = vmatpush1.msra.mxu0 %v1157
        %3289 = vmatprep.subr.mxu0 %v1162
        %3290 = vmatpush1.msra.mxu0 %v1161
        %3291 = vmatprep.subr.mxu0 %v1166
        %3292 = vmatpush1.msra.mxu0 %v1165
        %3293 = vmatprep.subr.mxu0 %v1170
        %3294 = vmatpush1.msra.mxu0 %v1169
        %3295 = vmatprep.subr.mxu0 %v1174
        %3296 = vmatpush1.msra.mxu0 %v1173
        %3297 = vmatprep.subr.mxu0 0.0
        %3298 = vmatpush1.msra.mxu0 0.0
        %3299 = vmatprep.subr.mxu0 0.0
        %3300 = vmatpush1.msra.mxu0 0.0
        %3301 = vmatprep.subr.mxu0 0.0
        %3302 = vmatpush1.msra.mxu0 0.0
        %3303 = vmatprep.subr.mxu0 0.0
        %3304 = vmatpush1.msra.mxu0 0.0
        %3305 = vmatprep.subr.mxu0 0.0
        %3306 = vmatpush1.msra.mxu0 0.0
        %3307 = vmatprep.subr.mxu0 0.0
        %3308 = vmatpush1.msra.mxu0 0.0
        %3309 = vmatprep.subr.mxu0 0.0
        %3310 = vmatpush1.msra.mxu0 0.0
        %3311 = vmatprep.subr.mxu0 0.0
        %3312 = vmatpush1.msra.mxu0 0.0
        %3313 = vmatprep.subr.mxu0 0.0
        %3314 = vmatpush1.msra.mxu0 0.0
        %3315 = vmatprep.subr.mxu0 0.0
        %3316 = vmatpush1.msra.mxu0 0.0
        %3317 = vmatprep.subr.mxu0 0.0
        %3318 = vmatpush1.msra.mxu0 0.0
        %3319 = vmatprep.subr.mxu0 0.0
        %3320 = vmatpush1.msra.mxu0 0.0
        %3321 = vmatprep.subr.mxu0 0.0
        %3322 = vmatpush1.msra.mxu0 0.0
        %3323 = vmatprep.subr.mxu0 0.0
        %3324 = vmatpush1.msra.mxu0 0.0
        %3325 = vmatprep.subr.mxu0 0.0
        %3326 = vmatpush1.msra.mxu0 0.0
        %3327 = vmatprep.subr.mxu0 0.0
        %3328 = vmatpush1.msra.mxu0 0.0
        %3329 = vmatprep.mubr.f32.mxu0 0.0
        %3330 = vmatmul.mubr.f32.gmra.mrb[0].mxu0 %v3042
        %v3331 = vpop.f32.mrb[0].mxu0
        %v3332 = vadd.f32 0.0, %v3331
        %v3333 = vpop.f32.mrb[0].mxu0
        %v3334 = vadd.f32 0.0, %v3333
        %3335 = vdwg.mxu0
        %3336 = vmatprep.subr.mxu0 %v1116
        %3337 = vmatpush1.msra.mxu0 %v1115
        %3338 = vmatprep.subr.mxu0 %v1120
        %3339 = vmatpush1.msra.mxu0 %v1119
        %3340 = vmatprep.subr.mxu0 %v1124
        %3341 = vmatpush1.msra.mxu0 %v1123
        %3342 = vmatprep.subr.mxu0 %v1128
        %3343 = vmatpush1.msra.mxu0 %v1127
        %3344 = vmatprep.subr.mxu0 %v1132
        %3345 = vmatpush1.msra.mxu0 %v1131
        %3346 = vmatprep.subr.mxu0 %v1136
        %3347 = vmatpush1.msra.mxu0 %v1135
        %3348 = vmatprep.subr.mxu0 %v1140
        %3349 = vmatpush1.msra.mxu0 %v1139
        %3350 = vmatprep.subr.mxu0 %v1144
        %3351 = vmatpush1.msra.mxu0 %v1143
        %3352 = vmatprep.subr.mxu0 %v1148
        %3353 = vmatpush1.msra.mxu0 %v1147
        %3354 = vmatprep.subr.mxu0 %v1152
        %3355 = vmatpush1.msra.mxu0 %v1151
        %3356 = vmatprep.subr.mxu0 %v1156
        %3357 = vmatpush1.msra.mxu0 %v1155
        %3358 = vmatprep.subr.mxu0 %v1160
        %3359 = vmatpush1.msra.mxu0 %v1159
        %3360 = vmatprep.subr.mxu0 %v1164
        %3361 = vmatpush1.msra.mxu0 %v1163
        %3362 = vmatprep.subr.mxu0 %v1168
        %3363 = vmatpush1.msra.mxu0 %v1167
        %3364 = vmatprep.subr.mxu0 %v1172
        %3365 = vmatpush1.msra.mxu0 %v1171
        %3366 = vmatprep.subr.mxu0 %v1176
        %3367 = vmatpush1.msra.mxu0 %v1175
        %3368 = vmatprep.subr.mxu0 0.0
        %3369 = vmatpush1.msra.mxu0 0.0
        %3370 = vmatprep.subr.mxu0 0.0
        %3371 = vmatpush1.msra.mxu0 0.0
        %3372 = vmatprep.subr.mxu0 0.0
        %3373 = vmatpush1.msra.mxu0 0.0
        %3374 = vmatprep.subr.mxu0 0.0
        %3375 = vmatpush1.msra.mxu0 0.0
        %3376 = vmatprep.subr.mxu0 0.0
        %3377 = vmatpush1.msra.mxu0 0.0
        %3378 = vmatprep.subr.mxu0 0.0
        %3379 = vmatpush1.msra.mxu0 0.0
        %3380 = vmatprep.subr.mxu0 0.0
        %3381 = vmatpush1.msra.mxu0 0.0
        %3382 = vmatprep.subr.mxu0 0.0
        %3383 = vmatpush1.msra.mxu0 0.0
        %3384 = vmatprep.subr.mxu0 0.0
        %3385 = vmatpush1.msra.mxu0 0.0
        %3386 = vmatprep.subr.mxu0 0.0
        %3387 = vmatpush1.msra.mxu0 0.0
        %3388 = vmatprep.subr.mxu0 0.0
        %3389 = vmatpush1.msra.mxu0 0.0
        %3390 = vmatprep.subr.mxu0 0.0
        %3391 = vmatpush1.msra.mxu0 0.0
        %3392 = vmatprep.subr.mxu0 0.0
        %3393 = vmatpush1.msra.mxu0 0.0
        %3394 = vmatprep.subr.mxu0 0.0
        %3395 = vmatpush1.msra.mxu0 0.0
        %3396 = vmatprep.subr.mxu0 0.0
        %3397 = vmatpush1.msra.mxu0 0.0
        %3398 = vmatprep.subr.mxu0 0.0
        %3399 = vmatpush1.msra.mxu0 0.0
        %3400 = vmatprep.mubr.f32.mxu0 0.0
        %3401 = vmatmul.mubr.f32.gmra.mrb[0].mxu0 %v3042
        %v3402 = vpop.f32.mrb[0].mxu0
        %v3403 = vadd.f32 0.0, %v3402
        %v3404 = vpop.f32.mrb[0].mxu0
        %v3405 = vadd.f32 0.0, %v3404
        %3406 = vdwg.mxu0
        %v3407 = vadd.f32 %v3261, %v3332
        %v3408 = vadd.f32 %v3262, %v3334
        %v3409 = vadd.f32 %v3263, %v3403
        %v3410 = vadd.f32 %v3264, %v3405
        %v3411 = vxor.u32 %v3407, 2147483648
        %v3412 = vmul.f32 %v3411, 1.442695
        %v3413 = vpow.pop %v3412
        %v3414 = vadd.f32 %v3413, 1.0
        %v3415 = vrcp.pop %v3414
        %v3416 = vmul.f32 1.0, %v3415
        %v3417 = vxor.u32 %v3408, 2147483648
        %v3418 = vmul.f32 %v3417, 1.442695
        %v3419 = vpow.pop %v3418
        %v3420 = vadd.f32 %v3419, 1.0
        %v3421 = vrcp.pop %v3420
        %v3422 = vmul.f32 1.0, %v3421
        %v3423 = vtanh.pop %v3409
        %v3424 = vxor.u32 %v3410, 2147483648
        %v3425 = vmul.f32 %v3424, 1.442695
        %v3426 = vpow.pop %v3425
        %v3427 = vadd.f32 %v3426, 1.0
        %v3428 = vrcp.pop %v3427
        %v3429 = vmul.f32 1.0, %v3428
        %v3430 = vmul.f32 %v3422, %v3045
        %v3431 = vmul.f32 %v3416, %v3423
        %v3432 = vadd.f32 %v3430, %v3431
        %v3433 = vtanh.pop %v3432
        %v3434 = vmul.f32 %v3429, %v3433
        %v3435 = vsub.f32 %v3434, %v3042
        %3437 = vset.pattern.permute.xlu0 0
        %3438 = vperm.xlu0 %3437, %v3257
        %v3439 = vpop.permute.xlu0 %3438
        %v3441 = vmul.f32 %v3439, %v3435
        %v3442 = vadd.f32 %v3042, %v3441
        %v3443 = vsub.f32 %v3432, %v3045
        %v3444 = vmul.f32 %v3439, %v3443
        %v3445 = vadd.f32 %v3045, %v3444
        %s3446 = scalar_lea.vmem [#allocation3], 64
        %v3447 = vld [vmem:[%s3446] sm:$0xff]
        %v3448 = vld [vmem:[%s3446 + $0x8] sm:$0xff]
        %v3449 = vld [vmem:[%s3446 + $0x10] sm:$0xff]
        %v3450 = vld [vmem:[%s3446 + $0x18] sm:$0xff]
        %3451 = vmatprep.subr.mxu0 %v1179
        %3452 = vmatpush1.msra.mxu0 %v1178
        %3453 = vmatprep.subr.mxu0 %v1183
        %3454 = vmatpush1.msra.mxu0 %v1182
        %3455 = vmatprep.subr.mxu0 %v1187
        %3456 = vmatpush1.msra.mxu0 %v1186
        %3457 = vmatprep.subr.mxu0 %v1191
        %3458 = vmatpush1.msra.mxu0 %v1190
        %3459 = vmatprep.subr.mxu0 %v1195
        %3460 = vmatpush1.msra.mxu0 %v1194
        %3461 = vmatprep.subr.mxu0 %v1199
        %3462 = vmatpush1.msra.mxu0 %v1198
        %3463 = vmatprep.subr.mxu0 %v1203
        %3464 = vmatpush1.msra.mxu0 %v1202
        %3465 = vmatprep.subr.mxu0 %v1207
        %3466 = vmatpush1.msra.mxu0 %v1206
        %3467 = vmatprep.subr.mxu0 %v1211
        %3468 = vmatpush1.msra.mxu0 %v1210
        %3469 = vmatprep.subr.mxu0 %v1215
        %3470 = vmatpush1.msra.mxu0 %v1214
        %3471 = vmatprep.subr.mxu0 %v1219
        %3472 = vmatpush1.msra.mxu0 %v1218
        %3473 = vmatprep.subr.mxu0 %v1223
        %3474 = vmatpush1.msra.mxu0 %v1222
        %3475 = vmatprep.subr.mxu0 %v1227
        %3476 = vmatpush1.msra.mxu0 %v1226
        %3477 = vmatprep.subr.mxu0 %v1231
        %3478 = vmatpush1.msra.mxu0 %v1230
        %3479 = vmatprep.subr.mxu0 %v1235
        %3480 = vmatpush1.msra.mxu0 %v1234
        %3481 = vmatprep.subr.mxu0 %v1239
        %3482 = vmatpush1.msra.mxu0 %v1238
        %3483 = vmatprep.subr.mxu0 0.0
        %3484 = vmatpush1.msra.mxu0 0.0
        %3485 = vmatprep.subr.mxu0 0.0
        %3486 = vmatpush1.msra.mxu0 0.0
        %3487 = vmatprep.subr.mxu0 0.0
        %3488 = vmatpush1.msra.mxu0 0.0
        %3489 = vmatprep.subr.mxu0 0.0
        %3490 = vmatpush1.msra.mxu0 0.0
        %3491 = vmatprep.subr.mxu0 0.0
        %3492 = vmatpush1.msra.mxu0 0.0
        %3493 = vmatprep.subr.mxu0 0.0
        %3494 = vmatpush1.msra.mxu0 0.0
        %3495 = vmatprep.subr.mxu0 0.0
        %3496 = vmatpush1.msra.mxu0 0.0
        %3497 = vmatprep.subr.mxu0 0.0
        %3498 = vmatpush1.msra.mxu0 0.0
        %3499 = vmatprep.subr.mxu0 0.0
        %3500 = vmatpush1.msra.mxu0 0.0
        %3501 = vmatprep.subr.mxu0 0.0
        %3502 = vmatpush1.msra.mxu0 0.0
        %3503 = vmatprep.subr.mxu0 0.0
        %3504 = vmatpush1.msra.mxu0 0.0
        %3505 = vmatprep.subr.mxu0 0.0
        %3506 = vmatpush1.msra.mxu0 0.0
        %3507 = vmatprep.subr.mxu0 0.0
        %3508 = vmatpush1.msra.mxu0 0.0
        %3509 = vmatprep.subr.mxu0 0.0
        %3510 = vmatpush1.msra.mxu0 0.0
        %3511 = vmatprep.subr.mxu0 0.0
        %3512 = vmatpush1.msra.mxu0 0.0
        %3513 = vmatprep.subr.mxu0 0.0
        %3514 = vmatpush1.msra.mxu0 0.0
        %3515 = vmatprep.mubr.f32.mxu0 0.0
        %3516 = vmatmul.mubr.f32.gmra.mrb[0].mxu0 %v3228
        %v3517 = vpop.f32.mrb[0].mxu0
        %v3518 = vadd.f32 0.0, %v3517
        %v3519 = vpop.f32.mrb[0].mxu0
        %v3520 = vadd.f32 0.0, %v3519
        %3521 = vdwg.mxu0
        %3522 = vmatprep.subr.mxu0 %v1181
        %3523 = vmatpush1.msra.mxu0 %v1180
        %3524 = vmatprep.subr.mxu0 %v1185
        %3525 = vmatpush1.msra.mxu0 %v1184
        %3526 = vmatprep.subr.mxu0 %v1189
        %3527 = vmatpush1.msra.mxu0 %v1188
        %3528 = vmatprep.subr.mxu0 %v1193
        %3529 = vmatpush1.msra.mxu0 %v1192
        %3530 = vmatprep.subr.mxu0 %v1197
        %3531 = vmatpush1.msra.mxu0 %v1196
        %3532 = vmatprep.subr.mxu0 %v1201
        %3533 = vmatpush1.msra.mxu0 %v1200
        %3534 = vmatprep.subr.mxu0 %v1205
        %3535 = vmatpush1.msra.mxu0 %v1204
        %3536 = vmatprep.subr.mxu0 %v1209
        %3537 = vmatpush1.msra.mxu0 %v1208
        %3538 = vmatprep.subr.mxu0 %v1213
        %3539 = vmatpush1.msra.mxu0 %v1212
        %3540 = vmatprep.subr.mxu0 %v1217
        %3541 = vmatpush1.msra.mxu0 %v1216
        %3542 = vmatprep.subr.mxu0 %v1221
        %3543 = vmatpush1.msra.mxu0 %v1220
        %3544 = vmatprep.subr.mxu0 %v1225
        %3545 = vmatpush1.msra.mxu0 %v1224
        %3546 = vmatprep.subr.mxu0 %v1229
        %3547 = vmatpush1.msra.mxu0 %v1228
        %3548 = vmatprep.subr.mxu0 %v1233
        %3549 = vmatpush1.msra.mxu0 %v1232
        %3550 = vmatprep.subr.mxu0 %v1237
        %3551 = vmatpush1.msra.mxu0 %v1236
        %3552 = vmatprep.subr.mxu0 %v1241
        %3553 = vmatpush1.msra.mxu0 %v1240
        %3554 = vmatprep.subr.mxu0 0.0
        %3555 = vmatpush1.msra.mxu0 0.0
        %3556 = vmatprep.subr.mxu0 0.0
        %3557 = vmatpush1.msra.mxu0 0.0
        %3558 = vmatprep.subr.mxu0 0.0
        %3559 = vmatpush1.msra.mxu0 0.0
        %3560 = vmatprep.subr.mxu0 0.0
        %3561 = vmatpush1.msra.mxu0 0.0
        %3562 = vmatprep.subr.mxu0 0.0
        %3563 = vmatpush1.msra.mxu0 0.0
        %3564 = vmatprep.subr.mxu0 0.0
        %3565 = vmatpush1.msra.mxu0 0.0
        %3566 = vmatprep.subr.mxu0 0.0
        %3567 = vmatpush1.msra.mxu0 0.0
        %3568 = vmatprep.subr.mxu0 0.0
        %3569 = vmatpush1.msra.mxu0 0.0
        %3570 = vmatprep.subr.mxu0 0.0
        %3571 = vmatpush1.msra.mxu0 0.0
        %3572 = vmatprep.subr.mxu0 0.0
        %3573 = vmatpush1.msra.mxu0 0.0
        %3574 = vmatprep.subr.mxu0 0.0
        %3575 = vmatpush1.msra.mxu0 0.0
        %3576 = vmatprep.subr.mxu0 0.0
        %3577 = vmatpush1.msra.mxu0 0.0
        %3578 = vmatprep.subr.mxu0 0.0
        %3579 = vmatpush1.msra.mxu0 0.0
        %3580 = vmatprep.subr.mxu0 0.0
        %3581 = vmatpush1.msra.mxu0 0.0
        %3582 = vmatprep.subr.mxu0 0.0
        %3583 = vmatpush1.msra.mxu0 0.0
        %3584 = vmatprep.subr.mxu0 0.0
        %3585 = vmatpush1.msra.mxu0 0.0
        %3586 = vmatprep.mubr.f32.mxu0 0.0
        %3587 = vmatmul.mubr.f32.gmra.mrb[0].mxu0 %v3228
        %v3588 = vpop.f32.mrb[0].mxu0
        %v3589 = vadd.f32 0.0, %v3588
        %v3590 = vpop.f32.mrb[0].mxu0
        %v3591 = vadd.f32 0.0, %v3590
        %3592 = vdwg.mxu0
        %v3593 = vadd.f32 %v3447, %v3518
        %v3594 = vadd.f32 %v3448, %v3520
        %v3595 = vadd.f32 %v3449, %v3589
        %v3596 = vadd.f32 %v3450, %v3591
        %v3597 = vxor.u32 %v3593, 2147483648
        %v3598 = vmul.f32 %v3597, 1.442695
        %v3599 = vpow.pop %v3598
        %v3600 = vadd.f32 %v3599, 1.0
        %v3601 = vrcp.pop %v3600
        %v3602 = vmul.f32 1.0, %v3601
        %v3603 = vxor.u32 %v3594, 2147483648
        %v3604 = vmul.f32 %v3603, 1.442695
        %v3605 = vpow.pop %v3604
        %v3606 = vadd.f32 %v3605, 1.0
        %v3607 = vrcp.pop %v3606
        %v3608 = vmul.f32 1.0, %v3607
        %v3609 = vtanh.pop %v3595
        %v3610 = vxor.u32 %v3596, 2147483648
        %v3611 = vmul.f32 %v3610, 1.442695
        %v3612 = vpow.pop %v3611
        %v3613 = vadd.f32 %v3612, 1.0
        %v3614 = vrcp.pop %v3613
        %v3615 = vmul.f32 1.0, %v3614
        %v3616 = vmul.f32 %v3608, %v3231
        %v3617 = vmul.f32 %v3602, %v3609
        %v3618 = vadd.f32 %v3616, %v3617
        %v3619 = vtanh.pop %v3618
        %v3620 = vmul.f32 %v3615, %v3619
        %v3621 = vsub.f32 %v3620, %v3228
        %3623 = vset.pattern.permute.xlu0 0
        %3624 = vperm.xlu0 %3623, %v3259
        %v3625 = vpop.permute.xlu0 %3624
        %v3627 = vmul.f32 %v3625, %v3621
        %v3628 = vadd.f32 %v3228, %v3627
        %v3629 = vsub.f32 %v3618, %v3231
        %v3630 = vmul.f32 %v3625, %v3629
        %v3631 = vadd.f32 %v3231, %v3630
        %p3632 = scmp.lt.s32.totalorder %s3250, 13
        %s3633 = scalar_select %p3632, 0.0, -inf
        %p3634 = scmp.lt.s32.totalorder %s3251, 13
        %s3635 = scalar_select %p3634, 0.0, -inf
        %3636 = vset.pattern.permute.xlu0 0
        %3637 = vperm.xlu0 %3636, %v3256
        %v3638 = vpop.permute.xlu0 %3637
        %vm3639 = vcmp.eq.s32.totalorder %v3638, 1
        %v3640 = vstv %s3633
        %v3641 = vsel %vm3639, %v3434, %v3640
        %v3642 = vmax.f32 %v3242, %v3641
        %3643 = vset.pattern.permute.xlu0 0
        %3644 = vperm.xlu0 %3643, %v3258
        %v3645 = vpop.permute.xlu0 %3644
        %vm3646 = vcmp.eq.s32.totalorder %v3645, 1
        %v3647 = vstv %s3635
        %v3648 = vsel %vm3646, %v3620, %v3647
        %v3649 = vmax.f32 %v3249, %v3648
        %s3650 = sadd.s32 %s1249, 6
        %s3651 = sadd.s32 %s1251, 1
        %v3652 = vstv %s3650
        %vm3653 = vcmp.lt.s32.totalorder %v3652, %v1242
        %v3654 = vstv %s3651
        %vm3655 = vcmp.lt.s32.totalorder %v3654, %v1242
        %v3656 = vsel %vm3653, 1, 0
        %v3657 = vcvt.s32.f32 %v3656
        %v3658 = vsel %vm3655, 1, 0
        %v3659 = vcvt.s32.f32 %v3658
        %s3660 = scalar_lea.vmem [#allocation2], 192
        %v3661 = vld [vmem:[%s3660] sm:$0xff]
        %v3662 = vld [vmem:[%s3660 + $0x8] sm:$0xff]
        %v3663 = vld [vmem:[%s3660 + $0x10] sm:$0xff]
        %v3664 = vld [vmem:[%s3660 + $0x18] sm:$0xff]
        %3665 = vmatprep.subr.mxu0 %v1114
        %3666 = vmatpush1.msra.mxu0 %v1113
        %3667 = vmatprep.subr.mxu0 %v1118
        %3668 = vmatpush1.msra.mxu0 %v1117
        %3669 = vmatprep.subr.mxu0 %v1122
        %3670 = vmatpush1.msra.mxu0 %v1121
        %3671 = vmatprep.subr.mxu0 %v1126
        %3672 = vmatpush1.msra.mxu0 %v1125
        %3673 = vmatprep.subr.mxu0 %v1130
        %3674 = vmatpush1.msra.mxu0 %v1129
        %3675 = vmatprep.subr.mxu0 %v1134
        %3676 = vmatpush1.msra.mxu0 %v1133
        %3677 = vmatprep.subr.mxu0 %v1138
        %3678 = vmatpush1.msra.mxu0 %v1137
        %3679 = vmatprep.subr.mxu0 %v1142
        %3680 = vmatpush1.msra.mxu0 %v1141
        %3681 = vmatprep.subr.mxu0 %v1146
        %3682 = vmatpush1.msra.mxu0 %v1145
        %3683 = vmatprep.subr.mxu0 %v1150
        %3684 = vmatpush1.msra.mxu0 %v1149
        %3685 = vmatprep.subr.mxu0 %v1154
        %3686 = vmatpush1.msra.mxu0 %v1153
        %3687 = vmatprep.subr.mxu0 %v1158
        %3688 = vmatpush1.msra.mxu0 %v1157
        %3689 = vmatprep.subr.mxu0 %v1162
        %3690 = vmatpush1.msra.mxu0 %v1161
        %3691 = vmatprep.subr.mxu0 %v1166
        %3692 = vmatpush1.msra.mxu0 %v1165
        %3693 = vmatprep.subr.mxu0 %v1170
        %3694 = vmatpush1.msra.mxu0 %v1169
        %3695 = vmatprep.subr.mxu0 %v1174
        %3696 = vmatpush1.msra.mxu0 %v1173
        %3697 = vmatprep.subr.mxu0 0.0
        %3698 = vmatpush1.msra.mxu0 0.0
        %3699 = vmatprep.subr.mxu0 0.0
        %3700 = vmatpush1.msra.mxu0 0.0
        %3701 = vmatprep.subr.mxu0 0.0
        %3702 = vmatpush1.msra.mxu0 0.0
        %3703 = vmatprep.subr.mxu0 0.0
        %3704 = vmatpush1.msra.mxu0 0.0
        %3705 = vmatprep.subr.mxu0 0.0
        %3706 = vmatpush1.msra.mxu0 0.0
        %3707 = vmatprep.subr.mxu0 0.0
        %3708 = vmatpush1.msra.mxu0 0.0
        %3709 = vmatprep.subr.mxu0 0.0
        %3710 = vmatpush1.msra.mxu0 0.0
        %3711 = vmatprep.subr.mxu0 0.0
        %3712 = vmatpush1.msra.mxu0 0.0
        %3713 = vmatprep.subr.mxu0 0.0
        %3714 = vmatpush1.msra.mxu0 0.0
        %3715 = vmatprep.subr.mxu0 0.0
        %3716 = vmatpush1.msra.mxu0 0.0
        %3717 = vmatprep.subr.mxu0 0.0
        %3718 = vmatpush1.msra.mxu0 0.0
        %3719 = vmatprep.subr.mxu0 0.0
        %3720 = vmatpush1.msra.mxu0 0.0
        %3721 = vmatprep.subr.mxu0 0.0
        %3722 = vmatpush1.msra.mxu0 0.0
        %3723 = vmatprep.subr.mxu0 0.0
        %3724 = vmatpush1.msra.mxu0 0.0
        %3725 = vmatprep.subr.mxu0 0.0
        %3726 = vmatpush1.msra.mxu0 0.0
        %3727 = vmatprep.subr.mxu0 0.0
        %3728 = vmatpush1.msra.mxu0 0.0
        %3729 = vmatprep.mubr.f32.mxu0 0.0
        %3730 = vmatmul.mubr.f32.gmra.mrb[0].mxu0 %v3442
        %v3731 = vpop.f32.mrb[0].mxu0
        %v3732 = vadd.f32 0.0, %v3731
        %v3733 = vpop.f32.mrb[0].mxu0
        %v3734 = vadd.f32 0.0, %v3733
        %3735 = vdwg.mxu0
        %3736 = vmatprep.subr.mxu0 %v1116
        %3737 = vmatpush1.msra.mxu0 %v1115
        %3738 = vmatprep.subr.mxu0 %v1120
        %3739 = vmatpush1.msra.mxu0 %v1119
        %3740 = vmatprep.subr.mxu0 %v1124
        %3741 = vmatpush1.msra.mxu0 %v1123
        %3742 = vmatprep.subr.mxu0 %v1128
        %3743 = vmatpush1.msra.mxu0 %v1127
        %3744 = vmatprep.subr.mxu0 %v1132
        %3745 = vmatpush1.msra.mxu0 %v1131
        %3746 = vmatprep.subr.mxu0 %v1136
        %3747 = vmatpush1.msra.mxu0 %v1135
        %3748 = vmatprep.subr.mxu0 %v1140
        %3749 = vmatpush1.msra.mxu0 %v1139
        %3750 = vmatprep.subr.mxu0 %v1144
        %3751 = vmatpush1.msra.mxu0 %v1143
        %3752 = vmatprep.subr.mxu0 %v1148
        %3753 = vmatpush1.msra.mxu0 %v1147
        %3754 = vmatprep.subr.mxu0 %v1152
        %3755 = vmatpush1.msra.mxu0 %v1151
        %3756 = vmatprep.subr.mxu0 %v1156
        %3757 = vmatpush1.msra.mxu0 %v1155
        %3758 = vmatprep.subr.mxu0 %v1160
        %3759 = vmatpush1.msra.mxu0 %v1159
        %3760 = vmatprep.subr.mxu0 %v1164
        %3761 = vmatpush1.msra.mxu0 %v1163
        %3762 = vmatprep.subr.mxu0 %v1168
        %3763 = vmatpush1.msra.mxu0 %v1167
        %3764 = vmatprep.subr.mxu0 %v1172
        %3765 = vmatpush1.msra.mxu0 %v1171
        %3766 = vmatprep.subr.mxu0 %v1176
        %3767 = vmatpush1.msra.mxu0 %v1175
        %3768 = vmatprep.subr.mxu0 0.0
        %3769 = vmatpush1.msra.mxu0 0.0
        %3770 = vmatprep.subr.mxu0 0.0
        %3771 = vmatpush1.msra.mxu0 0.0
        %3772 = vmatprep.subr.mxu0 0.0
        %3773 = vmatpush1.msra.mxu0 0.0
        %3774 = vmatprep.subr.mxu0 0.0
        %3775 = vmatpush1.msra.mxu0 0.0
        %3776 = vmatprep.subr.mxu0 0.0
        %3777 = vmatpush1.msra.mxu0 0.0
        %3778 = vmatprep.subr.mxu0 0.0
        %3779 = vmatpush1.msra.mxu0 0.0
        %3780 = vmatprep.subr.mxu0 0.0
        %3781 = vmatpush1.msra.mxu0 0.0
        %3782 = vmatprep.subr.mxu0 0.0
        %3783 = vmatpush1.msra.mxu0 0.0
        %3784 = vmatprep.subr.mxu0 0.0
        %3785 = vmatpush1.msra.mxu0 0.0
        %3786 = vmatprep.subr.mxu0 0.0
        %3787 = vmatpush1.msra.mxu0 0.0
        %3788 = vmatprep.subr.mxu0 0.0
        %3789 = vmatpush1.msra.mxu0 0.0
        %3790 = vmatprep.subr.mxu0 0.0
        %3791 = vmatpush1.msra.mxu0 0.0
        %3792 = vmatprep.subr.mxu0 0.0
        %3793 = vmatpush1.msra.mxu0 0.0
        %3794 = vmatprep.subr.mxu0 0.0
        %3795 = vmatpush1.msra.mxu0 0.0
        %3796 = vmatprep.subr.mxu0 0.0
        %3797 = vmatpush1.msra.mxu0 0.0
        %3798 = vmatprep.subr.mxu0 0.0
        %3799 = vmatpush1.msra.mxu0 0.0
        %3800 = vmatprep.mubr.f32.mxu0 0.0
        %3801 = vmatmul.mubr.f32.gmra.mrb[0].mxu0 %v3442
        %v3802 = vpop.f32.mrb[0].mxu0
        %v3803 = vadd.f32 0.0, %v3802
        %v3804 = vpop.f32.mrb[0].mxu0
        %v3805 = vadd.f32 0.0, %v3804
        %3806 = vdwg.mxu0
        %v3807 = vadd.f32 %v3661, %v3732
        %v3808 = vadd.f32 %v3662, %v3734
        %v3809 = vadd.f32 %v3663, %v3803
        %v3810 = vadd.f32 %v3664, %v3805
        %v3811 = vxor.u32 %v3807, 2147483648
        %v3812 = vmul.f32 %v3811, 1.442695
        %v3813 = vpow.pop %v3812
        %v3814 = vadd.f32 %v3813, 1.0
        %v3815 = vrcp.pop %v3814
        %v3816 = vmul.f32 1.0, %v3815
        %v3817 = vxor.u32 %v3808, 2147483648
        %v3818 = vmul.f32 %v3817, 1.442695
        %v3819 = vpow.pop %v3818
        %v3820 = vadd.f32 %v3819, 1.0
        %v3821 = vrcp.pop %v3820
        %v3822 = vmul.f32 1.0, %v3821
        %v3823 = vtanh.pop %v3809
        %v3824 = vxor.u32 %v3810, 2147483648
        %v3825 = vmul.f32 %v3824, 1.442695
        %v3826 = vpow.pop %v3825
        %v3827 = vadd.f32 %v3826, 1.0
        %v3828 = vrcp.pop %v3827
        %v3829 = vmul.f32 1.0, %v3828
        %v3830 = vmul.f32 %v3822, %v3445
        %v3831 = vmul.f32 %v3816, %v3823
        %v3832 = vadd.f32 %v3830, %v3831
        %v3833 = vtanh.pop %v3832
        %v3834 = vmul.f32 %v3829, %v3833
        %v3835 = vsub.f32 %v3834, %v3442
        %3837 = vset.pattern.permute.xlu0 0
        %3838 = vperm.xlu0 %3837, %v3657
        %v3839 = vpop.permute.xlu0 %3838
        %v3841 = vmul.f32 %v3839, %v3835
        %v3842 = vadd.f32 %v3442, %v3841
        %v3843 = vsub.f32 %v3832, %v3445
        %v3844 = vmul.f32 %v3839, %v3843
        %v3845 = vadd.f32 %v3445, %v3844
        %s3846 = scalar_lea.vmem [#allocation3], 32
        %v3847 = vld [vmem:[%s3846] sm:$0xff]
        %v3848 = vld [vmem:[%s3846 + $0x8] sm:$0xff]
        %v3849 = vld [vmem:[%s3846 + $0x10] sm:$0xff]
        %v3850 = vld [vmem:[%s3846 + $0x18] sm:$0xff]
        %3851 = vmatprep.subr.mxu0 %v1179
        %3852 = vmatpush1.msra.mxu0 %v1178
        %3853 = vmatprep.subr.mxu0 %v1183
        %3854 = vmatpush1.msra.mxu0 %v1182
        %3855 = vmatprep.subr.mxu0 %v1187
        %3856 = vmatpush1.msra.mxu0 %v1186
        %3857 = vmatprep.subr.mxu0 %v1191
        %3858 = vmatpush1.msra.mxu0 %v1190
        %3859 = vmatprep.subr.mxu0 %v1195
        %3860 = vmatpush1.msra.mxu0 %v1194
        %3861 = vmatprep.subr.mxu0 %v1199
        %3862 = vmatpush1.msra.mxu0 %v1198
        %3863 = vmatprep.subr.mxu0 %v1203
        %3864 = vmatpush1.msra.mxu0 %v1202
        %3865 = vmatprep.subr.mxu0 %v1207
        %3866 = vmatpush1.msra.mxu0 %v1206
        %3867 = vmatprep.subr.mxu0 %v1211
        %3868 = vmatpush1.msra.mxu0 %v1210
        %3869 = vmatprep.subr.mxu0 %v1215
        %3870 = vmatpush1.msra.mxu0 %v1214
        %3871 = vmatprep.subr.mxu0 %v1219
        %3872 = vmatpush1.msra.mxu0 %v1218
        %3873 = vmatprep.subr.mxu0 %v1223
        %3874 = vmatpush1.msra.mxu0 %v1222
        %3875 = vmatprep.subr.mxu0 %v1227
        %3876 = vmatpush1.msra.mxu0 %v1226
        %3877 = vmatprep.subr.mxu0 %v1231
        %3878 = vmatpush1.msra.mxu0 %v1230
        %3879 = vmatprep.subr.mxu0 %v1235
        %3880 = vmatpush1.msra.mxu0 %v1234
        %3881 = vmatprep.subr.mxu0 %v1239
        %3882 = vmatpush1.msra.mxu0 %v1238
        %3883 = vmatprep.subr.mxu0 0.0
        %3884 = vmatpush1.msra.mxu0 0.0
        %3885 = vmatprep.subr.mxu0 0.0
        %3886 = vmatpush1.msra.mxu0 0.0
        %3887 = vmatprep.subr.mxu0 0.0
        %3888 = vmatpush1.msra.mxu0 0.0
        %3889 = vmatprep.subr.mxu0 0.0
        %3890 = vmatpush1.msra.mxu0 0.0
        %3891 = vmatprep.subr.mxu0 0.0
        %3892 = vmatpush1.msra.mxu0 0.0
        %3893 = vmatprep.subr.mxu0 0.0
        %3894 = vmatpush1.msra.mxu0 0.0
        %3895 = vmatprep.subr.mxu0 0.0
        %3896 = vmatpush1.msra.mxu0 0.0
        %3897 = vmatprep.subr.mxu0 0.0
        %3898 = vmatpush1.msra.mxu0 0.0
        %3899 = vmatprep.subr.mxu0 0.0
        %3900 = vmatpush1.msra.mxu0 0.0
        %3901 = vmatprep.subr.mxu0 0.0
        %3902 = vmatpush1.msra.mxu0 0.0
        %3903 = vmatprep.subr.mxu0 0.0
        %3904 = vmatpush1.msra.mxu0 0.0
        %3905 = vmatprep.subr.mxu0 0.0
        %3906 = vmatpush1.msra.mxu0 0.0
        %3907 = vmatprep.subr.mxu0 0.0
        %3908 = vmatpush1.msra.mxu0 0.0
        %3909 = vmatprep.subr.mxu0 0.0
        %3910 = vmatpush1.msra.mxu0 0.0
        %3911 = vmatprep.subr.mxu0 0.0
        %3912 = vmatpush1.msra.mxu0 0.0
        %3913 = vmatprep.subr.mxu0 0.0
        %3914 = vmatpush1.msra.mxu0 0.0
        %3915 = vmatprep.mubr.f32.mxu0 0.0
        %3916 = vmatmul.mubr.f32.gmra.mrb[0].mxu0 %v3628
        %v3917 = vpop.f32.mrb[0].mxu0
        %v3918 = vadd.f32 0.0, %v3917
        %v3919 = vpop.f32.mrb[0].mxu0
        %v3920 = vadd.f32 0.0, %v3919
        %3921 = vdwg.mxu0
        %3922 = vmatprep.subr.mxu0 %v1181
        %3923 = vmatpush1.msra.mxu0 %v1180
        %3924 = vmatprep.subr.mxu0 %v1185
        %3925 = vmatpush1.msra.mxu0 %v1184
        %3926 = vmatprep.subr.mxu0 %v1189
        %3927 = vmatpush1.msra.mxu0 %v1188
        %3928 = vmatprep.subr.mxu0 %v1193
        %3929 = vmatpush1.msra.mxu0 %v1192
        %3930 = vmatprep.subr.mxu0 %v1197
        %3931 = vmatpush1.msra.mxu0 %v1196
        %3932 = vmatprep.subr.mxu0 %v1201
        %3933 = vmatpush1.msra.mxu0 %v1200
        %3934 = vmatprep.subr.mxu0 %v1205
        %3935 = vmatpush1.msra.mxu0 %v1204
        %3936 = vmatprep.subr.mxu0 %v1209
        %3937 = vmatpush1.msra.mxu0 %v1208
        %3938 = vmatprep.subr.mxu0 %v1213
        %3939 = vmatpush1.msra.mxu0 %v1212
        %3940 = vmatprep.subr.mxu0 %v1217
        %3941 = vmatpush1.msra.mxu0 %v1216
        %3942 = vmatprep.subr.mxu0 %v1221
        %3943 = vmatpush1.msra.mxu0 %v1220
        %3944 = vmatprep.subr.mxu0 %v1225
        %3945 = vmatpush1.msra.mxu0 %v1224
        %3946 = vmatprep.subr.mxu0 %v1229
        %3947 = vmatpush1.msra.mxu0 %v1228
        %3948 = vmatprep.subr.mxu0 %v1233
        %3949 = vmatpush1.msra.mxu0 %v1232
        %3950 = vmatprep.subr.mxu0 %v1237
        %3951 = vmatpush1.msra.mxu0 %v1236
        %3952 = vmatprep.subr.mxu0 %v1241
        %3953 = vmatpush1.msra.mxu0 %v1240
        %3954 = vmatprep.subr.mxu0 0.0
        %3955 = vmatpush1.msra.mxu0 0.0
        %3956 = vmatprep.subr.mxu0 0.0
        %3957 = vmatpush1.msra.mxu0 0.0
        %3958 = vmatprep.subr.mxu0 0.0
        %3959 = vmatpush1.msra.mxu0 0.0
        %3960 = vmatprep.subr.mxu0 0.0
        %3961 = vmatpush1.msra.mxu0 0.0
        %3962 = vmatprep.subr.mxu0 0.0
        %3963 = vmatpush1.msra.mxu0 0.0
        %3964 = vmatprep.subr.mxu0 0.0
        %3965 = vmatpush1.msra.mxu0 0.0
        %3966 = vmatprep.subr.mxu0 0.0
        %3967 = vmatpush1.msra.mxu0 0.0
        %3968 = vmatprep.subr.mxu0 0.0
        %3969 = vmatpush1.msra.mxu0 0.0
        %3970 = vmatprep.subr.mxu0 0.0
        %3971 = vmatpush1.msra.mxu0 0.0
        %3972 = vmatprep.subr.mxu0 0.0
        %3973 = vmatpush1.msra.mxu0 0.0
        %3974 = vmatprep.subr.mxu0 0.0
        %3975 = vmatpush1.msra.mxu0 0.0
        %3976 = vmatprep.subr.mxu0 0.0
        %3977 = vmatpush1.msra.mxu0 0.0
        %3978 = vmatprep.subr.mxu0 0.0
        %3979 = vmatpush1.msra.mxu0 0.0
        %3980 = vmatprep.subr.mxu0 0.0
        %3981 = vmatpush1.msra.mxu0 0.0
        %3982 = vmatprep.subr.mxu0 0.0
        %3983 = vmatpush1.msra.mxu0 0.0
        %3984 = vmatprep.subr.mxu0 0.0
        %3985 = vmatpush1.msra.mxu0 0.0
        %3986 = vmatprep.mubr.f32.mxu0 0.0
        %3987 = vmatmul.mubr.f32.gmra.mrb[0].mxu0 %v3628
        %v3988 = vpop.f32.mrb[0].mxu0
        %v3989 = vadd.f32 0.0, %v3988
        %v3990 = vpop.f32.mrb[0].mxu0
        %v3991 = vadd.f32 0.0, %v3990
        %3992 = vdwg.mxu0
        %v3993 = vadd.f32 %v3847, %v3918
        %v3994 = vadd.f32 %v3848, %v3920
        %v3995 = vadd.f32 %v3849, %v3989
        %v3996 = vadd.f32 %v3850, %v3991
        %v3997 = vxor.u32 %v3993, 2147483648
        %v3998 = vmul.f32 %v3997, 1.442695
        %v3999 = vpow.pop %v3998
        %v4000 = vadd.f32 %v3999, 1.0
        %v4001 = vrcp.pop %v4000
        %v4002 = vmul.f32 1.0, %v4001
        %v4003 = vxor.u32 %v3994, 2147483648
        %v4004 = vmul.f32 %v4003, 1.442695
        %v4005 = vpow.pop %v4004
        %v4006 = vadd.f32 %v4005, 1.0
        %v4007 = vrcp.pop %v4006
        %v4008 = vmul.f32 1.0, %v4007
        %v4009 = vtanh.pop %v3995
        %v4010 = vxor.u32 %v3996, 2147483648
        %v4011 = vmul.f32 %v4010, 1.442695
        %v4012 = vpow.pop %v4011
        %v4013 = vadd.f32 %v4012, 1.0
        %v4014 = vrcp.pop %v4013
        %v4015 = vmul.f32 1.0, %v4014
        %v4016 = vmul.f32 %v4008, %v3631
        %v4017 = vmul.f32 %v4002, %v4009
        %v4018 = vadd.f32 %v4016, %v4017
        %v4019 = vtanh.pop %v4018
        %v4020 = vmul.f32 %v4015, %v4019
        %v4021 = vsub.f32 %v4020, %v3628
        %4023 = vset.pattern.permute.xlu0 0
        %4024 = vperm.xlu0 %4023, %v3659
        %v4025 = vpop.permute.xlu0 %4024
        %v4027 = vmul.f32 %v4025, %v4021
        %v4028 = vadd.f32 %v3628, %v4027
        %v4029 = vsub.f32 %v4018, %v3631
        %v4030 = vmul.f32 %v4025, %v4029
        %v4031 = vadd.f32 %v3631, %v4030
        %p4032 = scmp.lt.s32.totalorder %s3650, 13
        %s4033 = scalar_select %p4032, 0.0, -inf
        %p4034 = scmp.lt.s32.totalorder %s3651, 13
        %s4035 = scalar_select %p4034, 0.0, -inf
        %4036 = vset.pattern.permute.xlu0 0
        %4037 = vperm.xlu0 %4036, %v3656
        %v4038 = vpop.permute.xlu0 %4037
        %vm4039 = vcmp.eq.s32.totalorder %v4038, 1
        %v4040 = vstv %s4033
        %v4041 = vsel %vm4039, %v3834, %v4040
        %v4042 = vmax.f32 %v3642, %v4041
        %4043 = vset.pattern.permute.xlu0 0
        %4044 = vperm.xlu0 %4043, %v3658
        %v4045 = vpop.permute.xlu0 %4044
        %vm4046 = vcmp.eq.s32.totalorder %v4045, 1
        %v4047 = vstv %s4035
        %v4048 = vsel %vm4046, %v4020, %v4047
        %v4049 = vmax.f32 %v3649, %v4048
        %s4050 = sadd.s32 %s1249, 7
        %v4051 = vstv %s4050
        %vm4052 = vcmp.lt.s32.totalorder %v4051, %v1242
        %v4053 = vstv %s1251
        %vm4054 = vcmp.lt.s32.totalorder %v4053, %v1242
        %v4055 = vsel %vm4052, 1, 0
        %v4056 = vcvt.s32.f32 %v4055
        %v4057 = vsel %vm4054, 1, 0
        %v4058 = vcvt.s32.f32 %v4057
        %s4059 = scalar_lea.vmem [#allocation2], 224
        %v4060 = vld [vmem:[%s4059] sm:$0xff]
        %v4061 = vld [vmem:[%s4059 + $0x8] sm:$0xff]
        %v4062 = vld [vmem:[%s4059 + $0x10] sm:$0xff]
        %v4063 = vld [vmem:[%s4059 + $0x18] sm:$0xff]
        %4064 = vmatprep.subr.mxu0 %v1114
        %4065 = vmatpush1.msra.mxu0 %v1113
        %4066 = vmatprep.subr.mxu0 %v1118
        %4067 = vmatpush1.msra.mxu0 %v1117
        %4068 = vmatprep.subr.mxu0 %v1122
        %4069 = vmatpush1.msra.mxu0 %v1121
        %4070 = vmatprep.subr.mxu0 %v1126
        %4071 = vmatpush1.msra.mxu0 %v1125
        %4072 = vmatprep.subr.mxu0 %v1130
        %4073 = vmatpush1.msra.mxu0 %v1129
        %4074 = vmatprep.subr.mxu0 %v1134
        %4075 = vmatpush1.msra.mxu0 %v1133
        %4076 = vmatprep.subr.mxu0 %v1138
        %4077 = vmatpush1.msra.mxu0 %v1137
        %4078 = vmatprep.subr.mxu0 %v1142
        %4079 = vmatpush1.msra.mxu0 %v1141
        %4080 = vmatprep.subr.mxu0 %v1146
        %4081 = vmatpush1.msra.mxu0 %v1145
        %4082 = vmatprep.subr.mxu0 %v1150
        %4083 = vmatpush1.msra.mxu0 %v1149
        %4084 = vmatprep.subr.mxu0 %v1154
        %4085 = vmatpush1.msra.mxu0 %v1153
        %4086 = vmatprep.subr.mxu0 %v1158
        %4087 = vmatpush1.msra.mxu0 %v1157
        %4088 = vmatprep.subr.mxu0 %v1162
        %4089 = vmatpush1.msra.mxu0 %v1161
        %4090 = vmatprep.subr.mxu0 %v1166
        %4091 = vmatpush1.msra.mxu0 %v1165
        %4092 = vmatprep.subr.mxu0 %v1170
        %4093 = vmatpush1.msra.mxu0 %v1169
        %4094 = vmatprep.subr.mxu0 %v1174
        %4095 = vmatpush1.msra.mxu0 %v1173
        %4096 = vmatprep.subr.mxu0 0.0
        %4097 = vmatpush1.msra.mxu0 0.0
        %4098 = vmatprep.subr.mxu0 0.0
        %4099 = vmatpush1.msra.mxu0 0.0
        %4100 = vmatprep.subr.mxu0 0.0
        %4101 = vmatpush1.msra.mxu0 0.0
        %4102 = vmatprep.subr.mxu0 0.0
        %4103 = vmatpush1.msra.mxu0 0.0
        %4104 = vmatprep.subr.mxu0 0.0
        %4105 = vmatpush1.msra.mxu0 0.0
        %4106 = vmatprep.subr.mxu0 0.0
        %4107 = vmatpush1.msra.mxu0 0.0
        %4108 = vmatprep.subr.mxu0 0.0
        %4109 = vmatpush1.msra.mxu0 0.0
        %4110 = vmatprep.subr.mxu0 0.0
        %4111 = vmatpush1.msra.mxu0 0.0
        %4112 = vmatprep.subr.mxu0 0.0
        %4113 = vmatpush1.msra.mxu0 0.0
        %4114 = vmatprep.subr.mxu0 0.0
        %4115 = vmatpush1.msra.mxu0 0.0
        %4116 = vmatprep.subr.mxu0 0.0
        %4117 = vmatpush1.msra.mxu0 0.0
        %4118 = vmatprep.subr.mxu0 0.0
        %4119 = vmatpush1.msra.mxu0 0.0
        %4120 = vmatprep.subr.mxu0 0.0
        %4121 = vmatpush1.msra.mxu0 0.0
        %4122 = vmatprep.subr.mxu0 0.0
        %4123 = vmatpush1.msra.mxu0 0.0
        %4124 = vmatprep.subr.mxu0 0.0
        %4125 = vmatpush1.msra.mxu0 0.0
        %4126 = vmatprep.subr.mxu0 0.0
        %4127 = vmatpush1.msra.mxu0 0.0
        %4128 = vmatprep.mubr.f32.mxu0 0.0
        %4129 = vmatmul.mubr.f32.gmra.mrb[0].mxu0 %v3842
        %v4130 = vpop.f32.mrb[0].mxu0
        %v4131 = vadd.f32 0.0, %v4130
        %v4132 = vpop.f32.mrb[0].mxu0
        %v4133 = vadd.f32 0.0, %v4132
        %4134 = vdwg.mxu0
        %4135 = vmatprep.subr.mxu0 %v1116
        %4136 = vmatpush1.msra.mxu0 %v1115
        %4137 = vmatprep.subr.mxu0 %v1120
        %4138 = vmatpush1.msra.mxu0 %v1119
        %4139 = vmatprep.subr.mxu0 %v1124
        %4140 = vmatpush1.msra.mxu0 %v1123
        %4141 = vmatprep.subr.mxu0 %v1128
        %4142 = vmatpush1.msra.mxu0 %v1127
        %4143 = vmatprep.subr.mxu0 %v1132
        %4144 = vmatpush1.msra.mxu0 %v1131
        %4145 = vmatprep.subr.mxu0 %v1136
        %4146 = vmatpush1.msra.mxu0 %v1135
        %4147 = vmatprep.subr.mxu0 %v1140
        %4148 = vmatpush1.msra.mxu0 %v1139
        %4149 = vmatprep.subr.mxu0 %v1144
        %4150 = vmatpush1.msra.mxu0 %v1143
        %4151 = vmatprep.subr.mxu0 %v1148
        %4152 = vmatpush1.msra.mxu0 %v1147
        %4153 = vmatprep.subr.mxu0 %v1152
        %4154 = vmatpush1.msra.mxu0 %v1151
        %4155 = vmatprep.subr.mxu0 %v1156
        %4156 = vmatpush1.msra.mxu0 %v1155
        %4157 = vmatprep.subr.mxu0 %v1160
        %4158 = vmatpush1.msra.mxu0 %v1159
        %4159 = vmatprep.subr.mxu0 %v1164
        %4160 = vmatpush1.msra.mxu0 %v1163
        %4161 = vmatprep.subr.mxu0 %v1168
        %4162 = vmatpush1.msra.mxu0 %v1167
        %4163 = vmatprep.subr.mxu0 %v1172
        %4164 = vmatpush1.msra.mxu0 %v1171
        %4165 = vmatprep.subr.mxu0 %v1176
        %4166 = vmatpush1.msra.mxu0 %v1175
        %4167 = vmatprep.subr.mxu0 0.0
        %4168 = vmatpush1.msra.mxu0 0.0
        %4169 = vmatprep.subr.mxu0 0.0
        %4170 = vmatpush1.msra.mxu0 0.0
        %4171 = vmatprep.subr.mxu0 0.0
        %4172 = vmatpush1.msra.mxu0 0.0
        %4173 = vmatprep.subr.mxu0 0.0
        %4174 = vmatpush1.msra.mxu0 0.0
        %4175 = vmatprep.subr.mxu0 0.0
        %4176 = vmatpush1.msra.mxu0 0.0
        %4177 = vmatprep.subr.mxu0 0.0
        %4178 = vmatpush1.msra.mxu0 0.0
        %4179 = vmatprep.subr.mxu0 0.0
        %4180 = vmatpush1.msra.mxu0 0.0
        %4181 = vmatprep.subr.mxu0 0.0
        %4182 = vmatpush1.msra.mxu0 0.0
        %4183 = vmatprep.subr.mxu0 0.0
        %4184 = vmatpush1.msra.mxu0 0.0
        %4185 = vmatprep.subr.mxu0 0.0
        %4186 = vmatpush1.msra.mxu0 0.0
        %4187 = vmatprep.subr.mxu0 0.0
        %4188 = vmatpush1.msra.mxu0 0.0
        %4189 = vmatprep.subr.mxu0 0.0
        %4190 = vmatpush1.msra.mxu0 0.0
        %4191 = vmatprep.subr.mxu0 0.0
        %4192 = vmatpush1.msra.mxu0 0.0
        %4193 = vmatprep.subr.mxu0 0.0
        %4194 = vmatpush1.msra.mxu0 0.0
        %4195 = vmatprep.subr.mxu0 0.0
        %4196 = vmatpush1.msra.mxu0 0.0
        %4197 = vmatprep.subr.mxu0 0.0
        %4198 = vmatpush1.msra.mxu0 0.0
        %4199 = vmatprep.mubr.f32.mxu0 0.0
        %4200 = vmatmul.mubr.f32.gmra.mrb[0].mxu0 %v3842
        %v4201 = vpop.f32.mrb[0].mxu0
        %v4202 = vadd.f32 0.0, %v4201
        %v4203 = vpop.f32.mrb[0].mxu0
        %v4204 = vadd.f32 0.0, %v4203
        %4205 = vdwg.mxu0
        %v4206 = vadd.f32 %v4060, %v4131
        %v4207 = vadd.f32 %v4061, %v4133
        %v4208 = vadd.f32 %v4062, %v4202
        %v4209 = vadd.f32 %v4063, %v4204
        %v4210 = vxor.u32 %v4206, 2147483648
        %v4211 = vmul.f32 %v4210, 1.442695
        %v4212 = vpow.pop %v4211
        %v4213 = vadd.f32 %v4212, 1.0
        %v4214 = vrcp.pop %v4213
        %v4215 = vmul.f32 1.0, %v4214
        %v4216 = vxor.u32 %v4207, 2147483648
        %v4217 = vmul.f32 %v4216, 1.442695
        %v4218 = vpow.pop %v4217
        %v4219 = vadd.f32 %v4218, 1.0
        %v4220 = vrcp.pop %v4219
        %v4221 = vmul.f32 1.0, %v4220
        %v4222 = vtanh.pop %v4208
        %v4223 = vxor.u32 %v4209, 2147483648
        %v4224 = vmul.f32 %v4223, 1.442695
        %v4225 = vpow.pop %v4224
        %v4226 = vadd.f32 %v4225, 1.0
        %v4227 = vrcp.pop %v4226
        %v4228 = vmul.f32 1.0, %v4227
        %v4229 = vmul.f32 %v4221, %v3845
        %v4230 = vmul.f32 %v4215, %v4222
        %v4231 = vadd.f32 %v4229, %v4230
        %v4232 = vtanh.pop %v4231
        %v4233 = vmul.f32 %v4228, %v4232
        %v4234 = vsub.f32 %v4233, %v3842
        %4236 = vset.pattern.permute.xlu0 0
        %4237 = vperm.xlu0 %4236, %v4056
        %v4238 = vpop.permute.xlu0 %4237
        %v4240 = vmul.f32 %v4238, %v4234
        %v4241 = vadd.f32 %v3842, %v4240
        %v4242 = vsub.f32 %v4231, %v3845
        %v4243 = vmul.f32 %v4238, %v4242
        %v4244 = vadd.f32 %v3845, %v4243
        %v4245 = vld [vmem:[#allocation3] sm:$0xff]
        %v4246 = vld [vmem:[#allocation3 + $0x8] sm:$0xff]
        %v4247 = vld [vmem:[#allocation3 + $0x10] sm:$0xff]
        %v4248 = vld [vmem:[#allocation3 + $0x18] sm:$0xff]
        %4249 = vmatprep.subr.mxu0 %v1179
        %4250 = vmatpush1.msra.mxu0 %v1178
        %4251 = vmatprep.subr.mxu0 %v1183
        %4252 = vmatpush1.msra.mxu0 %v1182
        %4253 = vmatprep.subr.mxu0 %v1187
        %4254 = vmatpush1.msra.mxu0 %v1186
        %4255 = vmatprep.subr.mxu0 %v1191
        %4256 = vmatpush1.msra.mxu0 %v1190
        %4257 = vmatprep.subr.mxu0 %v1195
        %4258 = vmatpush1.msra.mxu0 %v1194
        %4259 = vmatprep.subr.mxu0 %v1199
        %4260 = vmatpush1.msra.mxu0 %v1198
        %4261 = vmatprep.subr.mxu0 %v1203
        %4262 = vmatpush1.msra.mxu0 %v1202
        %4263 = vmatprep.subr.mxu0 %v1207
        %4264 = vmatpush1.msra.mxu0 %v1206
        %4265 = vmatprep.subr.mxu0 %v1211
        %4266 = vmatpush1.msra.mxu0 %v1210
        %4267 = vmatprep.subr.mxu0 %v1215
        %4268 = vmatpush1.msra.mxu0 %v1214
        %4269 = vmatprep.subr.mxu0 %v1219
        %4270 = vmatpush1.msra.mxu0 %v1218
        %4271 = vmatprep.subr.mxu0 %v1223
        %4272 = vmatpush1.msra.mxu0 %v1222
        %4273 = vmatprep.subr.mxu0 %v1227
        %4274 = vmatpush1.msra.mxu0 %v1226
        %4275 = vmatprep.subr.mxu0 %v1231
        %4276 = vmatpush1.msra.mxu0 %v1230
        %4277 = vmatprep.subr.mxu0 %v1235
        %4278 = vmatpush1.msra.mxu0 %v1234
        %4279 = vmatprep.subr.mxu0 %v1239
        %4280 = vmatpush1.msra.mxu0 %v1238
        %4281 = vmatprep.subr.mxu0 0.0
        %4282 = vmatpush1.msra.mxu0 0.0
        %4283 = vmatprep.subr.mxu0 0.0
        %4284 = vmatpush1.msra.mxu0 0.0
        %4285 = vmatprep.subr.mxu0 0.0
        %4286 = vmatpush1.msra.mxu0 0.0
        %4287 = vmatprep.subr.mxu0 0.0
        %4288 = vmatpush1.msra.mxu0 0.0
        %4289 = vmatprep.subr.mxu0 0.0
        %4290 = vmatpush1.msra.mxu0 0.0
        %4291 = vmatprep.subr.mxu0 0.0
        %4292 = vmatpush1.msra.mxu0 0.0
        %4293 = vmatprep.subr.mxu0 0.0
        %4294 = vmatpush1.msra.mxu0 0.0
        %4295 = vmatprep.subr.mxu0 0.0
        %4296 = vmatpush1.msra.mxu0 0.0
        %4297 = vmatprep.subr.mxu0 0.0
        %4298 = vmatpush1.msra.mxu0 0.0
        %4299 = vmatprep.subr.mxu0 0.0
        %4300 = vmatpush1.msra.mxu0 0.0
        %4301 = vmatprep.subr.mxu0 0.0
        %4302 = vmatpush1.msra.mxu0 0.0
        %4303 = vmatprep.subr.mxu0 0.0
        %4304 = vmatpush1.msra.mxu0 0.0
        %4305 = vmatprep.subr.mxu0 0.0
        %4306 = vmatpush1.msra.mxu0 0.0
        %4307 = vmatprep.subr.mxu0 0.0
        %4308 = vmatpush1.msra.mxu0 0.0
        %4309 = vmatprep.subr.mxu0 0.0
        %4310 = vmatpush1.msra.mxu0 0.0
        %4311 = vmatprep.subr.mxu0 0.0
        %4312 = vmatpush1.msra.mxu0 0.0
        %4313 = vmatprep.mubr.f32.mxu0 0.0
        %4314 = vmatmul.mubr.f32.gmra.mrb[0].mxu0 %v4028
        %v4315 = vpop.f32.mrb[0].mxu0
        %v4316 = vadd.f32 0.0, %v4315
        %v4317 = vpop.f32.mrb[0].mxu0
        %v4318 = vadd.f32 0.0, %v4317
        %4319 = vdwg.mxu0
        %4320 = vmatprep.subr.mxu0 %v1181
        %4321 = vmatpush1.msra.mxu0 %v1180
        %4322 = vmatprep.subr.mxu0 %v1185
        %4323 = vmatpush1.msra.mxu0 %v1184
        %4324 = vmatprep.subr.mxu0 %v1189
        %4325 = vmatpush1.msra.mxu0 %v1188
        %4326 = vmatprep.subr.mxu0 %v1193
        %4327 = vmatpush1.msra.mxu0 %v1192
        %4328 = vmatprep.subr.mxu0 %v1197
        %4329 = vmatpush1.msra.mxu0 %v1196
        %4330 = vmatprep.subr.mxu0 %v1201
        %4331 = vmatpush1.msra.mxu0 %v1200
        %4332 = vmatprep.subr.mxu0 %v1205
        %4333 = vmatpush1.msra.mxu0 %v1204
        %4334 = vmatprep.subr.mxu0 %v1209
        %4335 = vmatpush1.msra.mxu0 %v1208
        %4336 = vmatprep.subr.mxu0 %v1213
        %4337 = vmatpush1.msra.mxu0 %v1212
        %4338 = vmatprep.subr.mxu0 %v1217
        %4339 = vmatpush1.msra.mxu0 %v1216
        %4340 = vmatprep.subr.mxu0 %v1221
        %4341 = vmatpush1.msra.mxu0 %v1220
        %4342 = vmatprep.subr.mxu0 %v1225
        %4343 = vmatpush1.msra.mxu0 %v1224
        %4344 = vmatprep.subr.mxu0 %v1229
        %4345 = vmatpush1.msra.mxu0 %v1228
        %4346 = vmatprep.subr.mxu0 %v1233
        %4347 = vmatpush1.msra.mxu0 %v1232
        %4348 = vmatprep.subr.mxu0 %v1237
        %4349 = vmatpush1.msra.mxu0 %v1236
        %4350 = vmatprep.subr.mxu0 %v1241
        %4351 = vmatpush1.msra.mxu0 %v1240
        %4352 = vmatprep.subr.mxu0 0.0
        %4353 = vmatpush1.msra.mxu0 0.0
        %4354 = vmatprep.subr.mxu0 0.0
        %4355 = vmatpush1.msra.mxu0 0.0
        %4356 = vmatprep.subr.mxu0 0.0
        %4357 = vmatpush1.msra.mxu0 0.0
        %4358 = vmatprep.subr.mxu0 0.0
        %4359 = vmatpush1.msra.mxu0 0.0
        %4360 = vmatprep.subr.mxu0 0.0
        %4361 = vmatpush1.msra.mxu0 0.0
        %4362 = vmatprep.subr.mxu0 0.0
        %4363 = vmatpush1.msra.mxu0 0.0
        %4364 = vmatprep.subr.mxu0 0.0
        %4365 = vmatpush1.msra.mxu0 0.0
        %4366 = vmatprep.subr.mxu0 0.0
        %4367 = vmatpush1.msra.mxu0 0.0
        %4368 = vmatprep.subr.mxu0 0.0
        %4369 = vmatpush1.msra.mxu0 0.0
        %4370 = vmatprep.subr.mxu0 0.0
        %4371 = vmatpush1.msra.mxu0 0.0
        %4372 = vmatprep.subr.mxu0 0.0
        %4373 = vmatpush1.msra.mxu0 0.0
        %4374 = vmatprep.subr.mxu0 0.0
        %4375 = vmatpush1.msra.mxu0 0.0
        %4376 = vmatprep.subr.mxu0 0.0
        %4377 = vmatpush1.msra.mxu0 0.0
        %4378 = vmatprep.subr.mxu0 0.0
        %4379 = vmatpush1.msra.mxu0 0.0
        %4380 = vmatprep.subr.mxu0 0.0
        %4381 = vmatpush1.msra.mxu0 0.0
        %4382 = vmatprep.subr.mxu0 0.0
        %4383 = vmatpush1.msra.mxu0 0.0
        %4384 = vmatprep.mubr.f32.mxu0 0.0
        %4385 = vmatmul.mubr.f32.gmra.mrb[0].mxu0 %v4028
        %v4386 = vpop.f32.mrb[0].mxu0
        %v4387 = vadd.f32 0.0, %v4386
        %v4388 = vpop.f32.mrb[0].mxu0
        %v4389 = vadd.f32 0.0, %v4388
        %4390 = vdwg.mxu0
        %v4391 = vadd.f32 %v4245, %v4316
        %v4392 = vadd.f32 %v4246, %v4318
        %v4393 = vadd.f32 %v4247, %v4387
        %v4394 = vadd.f32 %v4248, %v4389
        %v4395 = vxor.u32 %v4391, 2147483648
        %v4396 = vmul.f32 %v4395, 1.442695
        %v4397 = vpow.pop %v4396
        %v4398 = vadd.f32 %v4397, 1.0
        %v4399 = vrcp.pop %v4398
        %v4400 = vmul.f32 1.0, %v4399
        %v4401 = vxor.u32 %v4392, 2147483648
        %v4402 = vmul.f32 %v4401, 1.442695
        %v4403 = vpow.pop %v4402
        %v4404 = vadd.f32 %v4403, 1.0
        %v4405 = vrcp.pop %v4404
        %v4406 = vmul.f32 1.0, %v4405
        %v4407 = vtanh.pop %v4393
        %v4408 = vxor.u32 %v4394, 2147483648
        %v4409 = vmul.f32 %v4408, 1.442695
        %v4410 = vpow.pop %v4409
        %v4411 = vadd.f32 %v4410, 1.0
        %v4412 = vrcp.pop %v4411
        %v4413 = vmul.f32 1.0, %v4412
        %v4414 = vmul.f32 %v4406, %v4031
        %v4415 = vmul.f32 %v4400, %v4407
        %v4416 = vadd.f32 %v4414, %v4415
        %v4417 = vtanh.pop %v4416
        %v4418 = vmul.f32 %v4413, %v4417
        %v4419 = vsub.f32 %v4418, %v4028
        %4421 = vset.pattern.permute.xlu0 0
        %4422 = vperm.xlu0 %4421, %v4058
        %v4423 = vpop.permute.xlu0 %4422
        %v4425 = vmul.f32 %v4423, %v4419
        %v4426 = vadd.f32 %v4028, %v4425
        %v4427 = vsub.f32 %v4416, %v4031
        %v4428 = vmul.f32 %v4423, %v4427
        %v4429 = vadd.f32 %v4031, %v4428
        %p4430 = scmp.lt.s32.totalorder %s4050, 13
        %s4431 = scalar_select %p4430, 0.0, -inf
        %p4432 = scmp.lt.s32.totalorder %s1251, 13
        %s4433 = scalar_select %p4432, 0.0, -inf
        %4434 = vset.pattern.permute.xlu0 0
        %4435 = vperm.xlu0 %4434, %v4055
        %v4436 = vpop.permute.xlu0 %4435
        %vm4437 = vcmp.eq.s32.totalorder %v4436, 1
        %v4438 = vstv %s4431
        %v4439 = vsel %vm4437, %v4233, %v4438
        %v4440 = vmax.f32 %v4042, %v4439
        %4441 = vset.pattern.permute.xlu0 0
        %4442 = vperm.xlu0 %4441, %v4057
        %v4443 = vpop.permute.xlu0 %4442
        %vm4444 = vcmp.eq.s32.totalorder %v4443, 1
        %v4445 = vstv %s4433
        %v4446 = vsel %vm4444, %v4418, %v4445
        %v4447 = vmax.f32 %v4049, %v4446
        %4448 = vst [vmem:[#allocation4] sm:$0xff] %v4241
        %4449 = vst [vmem:[#allocation5] sm:$0xff] %v4244
        %4450 = vst [vmem:[#allocation6] sm:$0xff] %v4426
        %4451 = vst [vmem:[#allocation7] sm:$0xff] %v4429
        %4452 = vst [vmem:[#allocation16] sm:$0xff] %v4440
        %4453 = vst [vmem:[#allocation16 + $0x8] sm:$0xff] %v4447
        // Predicated region
        $region65: #{tpu_custom_call.1} parent=43 // pred_check
          %p4454 = pneg %p176
        $region66: #{tpu_custom_call.1} parent=43 // pred_check_branch
          %4456 = sbr.rel (%p4454) target = $region68
        $region67: #{tpu_custom_call.1} parent=43 // pred_region
          %s4458 = ssub.s32 256, 256
          %4459 = vsyncadd [#allocation10], %s4458
          %s4461 = sshll.u32 [#allocation16], 4
          %s4462 = int_to_ptr.vmem [resolvable:$true] %s4461
          %4464 = dma.vmem_to_hbm [thread:$0]  %s4462, 256, %s6, [#allocation10]
        $region68: #{tpu_custom_call.1} parent=43 // pred_fallthru
          _
        // Predicated region
        $region69: #{tpu_custom_call.1} parent=43 // pred_check
          %p4465 = pneg %p176
        $region70: #{tpu_custom_call.1} parent=43 // pred_check_branch
          %4467 = sbr.rel (%p4465) target = $region72
        $region71: #{tpu_custom_call.1} parent=43 // pred_region
          %4468 = dma.done [#allocation10], 256
        $region72: #{tpu_custom_call.1} parent=43 // pred_fallthru
          _
      $region44: #{tpu_custom_call.1} parent=5 // pred_fallthru
        _
      %p4469 = scmp.le.s32.totalorder 2, %s20
      // Predicated region
      $region73: #{tpu_custom_call.1} parent=5 // pred_check
        %p4470 = pneg %p4469
      $region74: #{tpu_custom_call.1} parent=5 // pred_check_branch
        %4472 = sbr.rel (%p4470) target = $region76
      $region75: #{tpu_custom_call.1} parent=5 // pred_region
        %s4473 = ssub.s32 %s20, 2
      $region76: #{tpu_custom_call.1} parent=5 // pred_fallthru
        _
    $region6: #{tpu_custom_call.1} parent=1 // loop_footer
      %s24 = sadd.s32 1, %s20
    $region7: #{tpu_custom_call.1} parent=1 // loop_footer_branch
      %19 = sbr.rel target = $region3
    $region8: #{tpu_custom_call.1} parent=1 // loop_exit
      _
    %4474 = vsyncpa [#allocation9], 1
    %s4475 = scalar_lea.sflag [#allocation9], 1
    %4476 = vsyncpa %s4475, 1
    %4477 = vsyncpa [#allocation12], 1
    %s4478 = scalar_lea.sflag [#allocation12], 1
    %4479 = vsyncpa %s4478, 1
    %4480 = vsyncpa [#allocation15], 1
    %4481 = vsyncpa [#allocation10], 1
    %s4482 = scalar_lea.sflag [#allocation10], 1
    %4483 = vsyncpa %s4482, 1

</llo_original>
